<compile_context>
chip_gen: v7x
topology: tpu7x:2x2x1
jax: 0.10.0
libtpu: 0.0.40
codegen_flags: <defaults>
</compile_context>

<pallas_src>
import math

import jax
import jax.numpy as jnp
from jax import lax
from jax.experimental import pallas as pl
from jax.experimental.pallas import tpu as pltpu

LRELU_SLOPE = 0.2
IN_EPS = 1e-8
KSIZE = 4
LANE = 128                               # lane width; Cout padded to this
ACT_DTYPE = jnp.bfloat16                 # inter-layer activations / MXU operands
VMEM_LIMIT_BYTES = 48 * 1024 * 1024
DEFAULT_ROW_TILE_BUDGET = 8 * 1024 * 1024


def _round_up(n, m):
    return ((n + m - 1) // m) * m


# ------------------------------ Pallas kernels ------------------------------ #

def _conv_taps(xs_ref, w_ref, rows, cols):
    """Four k=2/s=1 taps on a space-to-depth tile: sum_{sh,sw} xs[sh:,sw:] @ w[sh,sw].

    xs_ref: [rows+1, cols+1, K] bf16 (halo of +1 row / +1 col)
    w_ref : [2, 2, K, C] bf16
    returns f32 [rows*cols, C]
    """
    K = xs_ref.shape[-1]
    C = w_ref.shape[-1]
    M = rows * cols
    acc = jnp.zeros((M, C), jnp.float32)
    for sh in range(2):
        for sw in range(2):
            lhs = xs_ref[sh:sh + rows, sw:sw + cols, :].reshape(M, K)
            acc = acc + jnp.dot(lhs, w_ref[sh, sw],
                                preferred_element_type=jnp.float32)
    return acc


def _conv_in_lrelu_fused_kernel(xs_ref, w_ref, b_ref, o_ref):
    """One batch item, full image: conv + bias + InstanceNorm + LeakyReLU."""
    Hs, Ws, _ = xs_ref.shape
    Ho, Wo = Hs - 1, Ws - 1
    y = _conv_taps(xs_ref, w_ref, Ho, Wo) + b_ref[...]          # [Ho*Wo, C] f32
    inv_m = 1.0 / (Ho * Wo)
    mean = jnp.sum(y, axis=0, keepdims=True) * inv_m
    ex2 = jnp.sum(y * y, axis=0, keepdims=True) * inv_m
    var = jnp.maximum(ex2 - mean * mean, 0.0)
    yn = (y - mean) * lax.rsqrt(var + IN_EPS)
    o_ref[...] = jnp.where(yn > 0, yn, LRELU_SLOPE * yn).astype(o_ref.dtype)


def _conv_stats_kernel(xs_ref, w_ref, b_ref, y_ref, st_ref):
    """Row tile of one batch item: conv + bias, raw f32 y + partial IN stats."""
    TRp1, Ws, _ = xs_ref.shape
    TR, Wo = TRp1 - 1, Ws - 1
    y = _conv_taps(xs_ref, w_ref, TR, Wo) + b_ref[...]          # [TR*Wo, C] f32
    y_ref[...] = y
    s1 = jnp.sum(y, axis=0, keepdims=True)
    s2 = jnp.sum(y * y, axis=0, keepdims=True)
    st_ref[...] = jnp.concatenate([s1, s2], axis=0)             # [2, C]


def _in_lrelu_kernel(y_ref, mv_ref, o_ref):
    """Normalize a row tile with precomputed per-(batch, channel) mean/inv_std."""
    yn = (y_ref[...] - mv_ref[0:1, :]) * mv_ref[1:2, :]
    o_ref[...] = jnp.where(yn > 0, yn, LRELU_SLOPE * yn).astype(o_ref.dtype)


def _matmul_bias_kernel(p_ref, w_ref, b_ref, o_ref):
    """Final conv: [M, K] @ [K, C] + bias, batch folded into M."""
    o_ref[...] = jnp.dot(p_ref[...], w_ref[...],
                         preferred_element_type=jnp.float32) + b_ref[...]


# --------------------------- pallas_call wrappers --------------------------- #

def _conv_layer_fused(xs, w_s2d, b2, Ho, Wo, cout_p):
    B, Hs, Ws, K = xs.shape
    return pl.pallas_call(
        _conv_in_lrelu_fused_kernel,
        out_shape=jax.ShapeDtypeStruct((B, Ho * Wo, cout_p), ACT_DTYPE),
        grid=(B,),
        in_specs=[
            pl.BlockSpec((None, Hs, Ws, K), lambda b: (b, 0, 0, 0)),
            pl.BlockSpec((2, 2, K, cout_p), lambda b: (0, 0, 0, 0)),
            pl.BlockSpec((1, cout_p), lambda b: (0, 0)),
        ],
        out_specs=pl.BlockSpec((None, Ho * Wo, cout_p), lambda b: (b, 0, 0)),
        compiler_params=pltpu.CompilerParams(
            dimension_semantics=("parallel",),
            vmem_limit_bytes=VMEM_LIMIT_BYTES),
    )(xs, w_s2d, b2)


def _conv_layer_tiled(xs, w_s2d, b2, Ho, Wo, cout_p, TR):
    B, Hs, Ws, K = xs.shape
    HT = Ho // TR
    TM = TR * Wo
    # Halo'd row tiles: duplicates one super-row per tile (negligible vs 16x im2col).
    xs_t = jnp.stack([xs[:, t * TR:t * TR + TR + 1] for t in range(HT)], axis=1)

    y, st = pl.pallas_call(
        _conv_stats_kernel,
        out_shape=(jax.ShapeDtypeStruct((B, Ho * Wo, cout_p), jnp.float32),
                   jax.ShapeDtypeStruct((B, HT, 2, cout_p), jnp.float32)),
        grid=(B, HT),
        in_specs=[
            pl.BlockSpec((None, None, TR + 1, Ws, K),
                         lambda b, t: (b, t, 0, 0, 0)),
            pl.BlockSpec((2, 2, K, cout_p), lambda b, t: (0, 0, 0, 0)),
            pl.BlockSpec((1, cout_p), lambda b, t: (0, 0)),
        ],
        out_specs=(
            pl.BlockSpec((None, TM, cout_p), lambda b, t: (b, t, 0)),
            pl.BlockSpec((None, None, 2, cout_p), lambda b, t: (b, t, 0, 0)),
        ),
        compiler_params=pltpu.CompilerParams(
            dimension_semantics=("parallel", "parallel"),
            vmem_limit_bytes=VMEM_LIMIT_BYTES),
    )(xs_t, w_s2d, b2)

    # Tiny per-(batch, channel) reduction of partial stats in plain JAX.
    s = jnp.sum(st, axis=1)                                     # [B, 2, C]
    inv_m = 1.0 / float(Ho * Wo)
    mean = s[:, 0:1, :] * inv_m
    var = jnp.maximum(s[:, 1:2, :] * inv_m - mean * mean, 0.0)
    mv = jnp.concatenate([mean, lax.rsqrt(var + IN_EPS)], axis=1)  # [B, 2, C]

    return pl.pallas_call(
        _in_lrelu_kernel,
        out_shape=jax.ShapeDtypeStruct((B, Ho * Wo, cout_p), ACT_DTYPE),
        grid=(B, HT),
        in_specs=[
            pl.BlockSpec((None, TM, cout_p), lambda b, t: (b, t, 0)),
            pl.BlockSpec((None, 2, cout_p), lambda b, t: (b, 0, 0)),
        ],
        out_specs=pl.BlockSpec((None, TM, cout_p), lambda b, t: (b, t, 0)),
        compiler_params=pltpu.CompilerParams(
            dimension_semantics=("parallel", "parallel"),
            vmem_limit_bytes=VMEM_LIMIT_BYTES),
    )(y, mv)


def _final_conv_matmul(pm, w2, b2):
    M, K = pm.shape
    C = w2.shape[1]
    return pl.pallas_call(
        _matmul_bias_kernel,
        out_shape=jax.ShapeDtypeStruct((M, C), jnp.float32),
        grid=(1,),
        in_specs=[
            pl.BlockSpec((M, K), lambda i: (0, 0)),
            pl.BlockSpec((K, C), lambda i: (0, 0)),
            pl.BlockSpec((1, C), lambda i: (0, 0)),
        ],
        out_specs=pl.BlockSpec((M, C), lambda i: (0, 0)),
        compiler_params=pltpu.CompilerParams(
            dimension_semantics=("arbitrary",),
            vmem_limit_bytes=VMEM_LIMIT_BYTES),
    )(pm, w2, b2)


# ---------------------------------- Glue ------------------------------------ #

def _choose_row_tile(Ho, Wo, K, cout_p, budget_bytes):
    """Largest power-of-two row tile whose pipelined footprint fits the budget.

    per_row ~ f32 conv-output row + bf16 s2d-input row (with halo column);
    factor 3 covers double buffering + the f32 accumulator.  TR divides Ho
    (both powers of two) and TR*Wo stays a multiple of 16 so bf16/f32 block
    sublane constraints are comfortably met.
    """
    per_row = Wo * cout_p * 4 + (Wo + 1) * K * 2
    min_tr = min(Ho, max(1, 16 // max(Wo, 1)))
    tr = Ho
    while tr > min_tr and 3 * per_row * tr > budget_bytes:
        tr //= 2
    if Ho % tr != 0:          # safety net for non-power-of-two spatial sizes
        return Ho, True
    return tr, tr == Ho


def _im2col_s1(x, k):
    """k x k, stride 1, no padding patch extraction (final conv only)."""
    B, H, W, C = x.shape
    Ho, Wo = H - k + 1, W - k + 1
    cols = []
    for kh in range(k):
        for kw in range(k):
            cols.append(x[:, kh:kh + Ho, kw:kw + Wo, :])
    patches = jnp.concatenate(cols, axis=-1)
    return patches.reshape(B, Ho * Wo, k * k * C), Ho, Wo


def build_arch(input_dim, input_channels, image_size,
               first_hidden_dim_, last_hidden_dim_, another_times):
    """Replicates the layer-dimension logic of the PyTorch __init__."""
    up_times = int(math.log(image_size, 2) - 3 - another_times)
    dims = [(input_channels, first_hidden_dim_)]
    hidden = first_hidden_dim_
    for _ in range(up_times):
        if hidden < last_hidden_dim_:
            dims.append((hidden, hidden * 2))
            hidden = hidden * 2
        else:
            dims.append((hidden, hidden))
    final = (hidden, input_dim)
    return dims, final


def init_params(key, layer_dims, final_dims, k=KSIZE):
    """Deterministic Conv2d-style init (uniform in +-1/sqrt(fan_in))."""
    params = []
    for (cin, cout) in list(layer_dims) + [final_dims]:
        key, wk, bk = jax.random.split(key, 3)
        bound = 1.0 / math.sqrt(cin * k * k)
        w = jax.random.uniform(wk, (cout, cin, k, k), jnp.float32, -bound, bound)
        b = jax.random.uniform(bk, (cout,), jnp.float32, -bound, bound)
        params.append((w, b))
    return params


def prepare_params(params, input_channels):
    """One-time weight relayout: s2d tap form, Cin/Cout padding, bf16 cast."""
    strided = []
    cin_p = input_channels
    for (w, b) in params[:-1]:
        cout, cin = w.shape[0], w.shape[1]
        cout_p = _round_up(cout, LANE)
        wp = jnp.zeros((cout, cin_p, KSIZE, KSIZE), jnp.float32).at[:, :cin].set(w)
        # (cout, cin, kh, kw) -> (cout, cin, sh, dh, sw, dw) -> (sh, sw, dh, dw, cin, cout)
        w_r = wp.reshape(cout, cin_p, 2, 2, 2, 2)
        w_s2d = jnp.transpose(w_r, (2, 4, 3, 5, 1, 0)).reshape(2, 2, 4 * cin_p, cout)
        w_s2d = jnp.pad(w_s2d, ((0, 0), (0, 0), (0, 0), (0, cout_p - cout)))
        b2 = jnp.pad(b, (0, cout_p - cout)).reshape(1, cout_p).astype(jnp.float32)
        strided.append((w_s2d.astype(ACT_DTYPE), b2, cout_p))
        cin_p = cout_p

    w, b = params[-1]
    cout, cin = w.shape[0], w.shape[1]
    cout_p = _round_up(cout, LANE)
    wp = jnp.zeros((cout, cin_p, KSIZE, KSIZE), jnp.float32).at[:, :cin].set(w)
    w2 = jnp.transpose(wp, (2, 3, 1, 0)).reshape(KSIZE * KSIZE * cin_p, cout)
    w2 = jnp.pad(w2, ((0, 0), (0, cout_p - cout))).astype(ACT_DTYPE)
    b2 = jnp.pad(b, (0, cout_p - cout)).reshape(1, cout_p).astype(jnp.float32)
    return {"strided": strided, "final": (w2, b2, cout, cout_p)}


def discriminator_forward(x_nchw, prepared,
                          row_tile_budget=DEFAULT_ROW_TILE_BUDGET):
    """Full forward pass. x_nchw: [B, C, H, W] -> [B, input_dim, Hf, Wf]."""
    x = jnp.transpose(x_nchw, (0, 2, 3, 1)).astype(ACT_DTYPE)    # NHWC bf16
    for (w_s2d, b2, cout_p) in prepared["strided"]:
        B, H, W, Cp = x.shape
        Ho, Wo = H // 2, W // 2
        Hs, Ws = Ho + 1, Wo + 1
        K = 4 * Cp
        # pad(1) + space-to-depth(2): k4/s2/p1 conv == 2x2/s1 conv on xs.
        xp = jnp.pad(x, ((0, 0), (1, 1), (1, 1), (0, 0)))
        xs = xp.reshape(B, Hs, 2, Ws, 2, Cp).transpose(0, 1, 3, 2, 4, 5)
        xs = xs.reshape(B, Hs, Ws, K)
        TR, fused = _choose_row_tile(Ho, Wo, K, cout_p, row_tile_budget)
        if fused:
            out = _conv_layer_fused(xs, w_s2d, b2, Ho, Wo, cout_p)
        else:
            out = _conv_layer_tiled(xs, w_s2d, b2, Ho, Wo, cout_p, TR)
        x = out.reshape(B, Ho, Wo, cout_p)

    w2, b2, cout, cout_p = prepared["final"]
    patches, Hof, Wof = _im2col_s1(x, KSIZE)      # final spatial is tiny; no dup for 4x4->1x1
    B, HWf, Kf = patches.shape
    y = _final_conv_matmul(patches.reshape(B * HWf, Kf), w2, b2)
    y = y.reshape(B, Hof, Wof, cout_p)[..., :cout]
    return jnp.transpose(y, (0, 3, 1, 2))


# ----------------------------- Pure-JAX reference ---------------------------- #

def reference_forward(x_nchw, params):
    """Matches the module semantics with the same bf16 quantization points."""
    x = jnp.transpose(x_nchw, (0, 2, 3, 1)).astype(jnp.bfloat16)
    n_layers = len(params)
    for idx, (w, b) in enumerate(params):
        is_final = idx == n_layers - 1
        stride, pad = (1, 0) if is_final else (2, 1)
        w_hwio = jnp.transpose(w, (2, 3, 1, 0)).astype(jnp.bfloat16)
        y = lax.conv_general_dilated(
            x, w_hwio, (stride, stride), [(pad, pad), (pad, pad)],
            dimension_numbers=("NHWC", "HWIO", "NHWC"),
            preferred_element_type=jnp.float32)
        y = y + b.reshape(1, 1, 1, -1)
        if not is_final:
            mean = jnp.mean(y, axis=(1, 2), keepdims=True)
            var = jnp.mean(jnp.square(y - mean), axis=(1, 2), keepdims=True)
            y = (y - mean) * lax.rsqrt(var + IN_EPS)
            y = jnp.where(y > 0, y, LRELU_SLOPE * y)
            x = y.astype(jnp.bfloat16)
        else:
            x = y
    return jnp.transpose(x, (0, 3, 1, 2))


# ------------------------------------ Main ----------------------------------- #

if __name__ == "__main__":
    # image_size=16 -> up_times = 1:
    #   Conv(4->8,s2)+IN+LReLU ; Conv(8->16,s2)+IN+LReLU ; Conv(16->32,k4,s1,p0)
    #   => output [B, 32, 1, 1]
    input_dim = 32
    input_channels = 4
    image_size = 16
    first_hidden = 8
    last_hidden = 16
    another_times = 0
    batch = 2

    layer_dims, final_dims = build_arch(
        input_dim, input_channels, image_size,
        first_hidden, last_hidden, another_times)

    key = jax.random.PRNGKey(0)
    key, xk = jax.random.split(key)
    x = jax.random.normal(
        xk, (batch, input_channels, image_size, image_size), jnp.float32)
    params = init_params(key, layer_dims, final_dims)
    prepared = prepare_params(params, input_channels)

    # Default path: fused conv+IN+LReLU kernel per layer (whole image fits VMEM).
    fwd = jax.jit(lambda inp: discriminator_forward(inp, prepared))
    y = jax.block_until_ready(fwd(x))
    assert y.shape == (batch, input_dim, 1, 1), y.shape

    # Force the H-tiled two-kernel path (tiny VMEM budget) to exercise it too.
    fwd_tiled = jax.jit(
        lambda inp: discriminator_forward(inp, prepared, row_tile_budget=20000))
    y_tiled = jax.block_until_ready(fwd_tiled(x))
    assert y_tiled.shape == (batch, input_dim, 1, 1), y_tiled.shape

    y_ref = reference_forward(x, params)
    err_fused = float(jnp.max(jnp.abs(y - y_ref)))
    err_tiled = float(jnp.max(jnp.abs(y_tiled - y_ref)))
    # bf16 MXU operands / bf16 inter-layer activations => looser tolerance than f32.
    assert jnp.allclose(y, y_ref, atol=1e-2, rtol=1e-2), err_fused
    assert jnp.allclose(y_tiled, y_ref, atol=1e-2, rtol=1e-2), err_tiled

    print("KERNEL_OK")
</pallas_src>

<mosaic_0001>
module attributes {stable_mosaic.version = 11 : i64} {
  func.func @_conv_in_lrelu_fused_kernel(%arg0: i32, %arg1: memref<1x9x9x16xbf16, #tpu.memory_space<vmem>>, %arg2: memref<2x2x16x128xbf16, #tpu.memory_space<vmem>>, %arg3: memref<1x128xf32, #tpu.memory_space<vmem>>, %arg4: memref<1x64x128xbf16, #tpu.memory_space<vmem>>) attributes {dimension_semantics = [#tpu.dimension_semantics<parallel>], iteration_bounds = array<i64: 2>, scalar_prefetch = 0 : i64, scratch_operands = 0 : i64, tpu.core_type = #tpu.core_type<tc>, window_params = [{transform_indices = @transform_0, window_bounds = array<i64: 1, 9, 9, 16>}, {pipeline_mode = #tpu.pipeline_mode<synchronous>, transform_indices = @transform_1, window_bounds = array<i64: 2, 2, 16, 128>}, {pipeline_mode = #tpu.pipeline_mode<synchronous>, transform_indices = @transform_2, window_bounds = array<i64: 1, 128>}, {transform_indices = @transform_3, window_bounds = array<i64: 1, 64, 128>}]} {
    %cst = arith.constant 0.000000e+00 : f32
    %0 = vector.broadcast %cst : f32 to vector<64x128xf32>
    %c0 = arith.constant 0 : index
    %c0_0 = arith.constant 0 : index
    %c0_1 = arith.constant 0 : index
    %c0_2 = arith.constant 0 : index
    %1 = vector.load %arg1[%c0, %c0_0, %c0_1, %c0_2] : memref<1x9x9x16xbf16, #tpu.memory_space<vmem>>, vector<1x8x8x16xbf16>
    %2 = vector.shape_cast %1 : vector<1x8x8x16xbf16> to vector<8x8x16xbf16>
    %3 = vector.shape_cast %2 : vector<8x8x16xbf16> to vector<64x16xbf16>
    %c0_3 = arith.constant 0 : index
    %c0_4 = arith.constant 0 : index
    %c0_5 = arith.constant 0 : index
    %c0_6 = arith.constant 0 : index
    %4 = vector.load %arg2[%c0_3, %c0_4, %c0_5, %c0_6] : memref<2x2x16x128xbf16, #tpu.memory_space<vmem>>, vector<1x1x16x128xbf16>
    %5 = vector.shape_cast %4 : vector<1x1x16x128xbf16> to vector<16x128xbf16>
    %cst_7 = arith.constant dense<0.000000e+00> : vector<64x128xf32>
    %6 = tpu.matmul %3, %5, %cst_7 {dimension_numbers = #tpu.dot_dimension_numbers<[1], [0], [0], [1], [0, 0, 1, 1], [], []>} : vector<64x16xbf16>, vector<16x128xbf16>, vector<64x128xf32> -> vector<64x128xf32>
    %7 = arith.addf %0, %6 : vector<64x128xf32>
    %c0_8 = arith.constant 0 : index
    %c0_9 = arith.constant 0 : index
    %c1 = arith.constant 1 : index
    %c0_10 = arith.constant 0 : index
    %8 = vector.load %arg1[%c0_8, %c0_9, %c1, %c0_10] : memref<1x9x9x16xbf16, #tpu.memory_space<vmem>>, vector<1x8x8x16xbf16>
    %9 = vector.shape_cast %8 : vector<1x8x8x16xbf16> to vector<8x8x16xbf16>
    %10 = vector.shape_cast %9 : vector<8x8x16xbf16> to vector<64x16xbf16>
    %c0_11 = arith.constant 0 : index
    %c1_12 = arith.constant 1 : index
    %c0_13 = arith.constant 0 : index
    %c0_14 = arith.constant 0 : index
    %11 = vector.load %arg2[%c0_11, %c1_12, %c0_13, %c0_14] : memref<2x2x16x128xbf16, #tpu.memory_space<vmem>>, vector<1x1x16x128xbf16>
    %12 = vector.shape_cast %11 : vector<1x1x16x128xbf16> to vector<16x128xbf16>
    %cst_15 = arith.constant dense<0.000000e+00> : vector<64x128xf32>
    %13 = tpu.matmul %10, %12, %cst_15 {dimension_numbers = #tpu.dot_dimension_numbers<[1], [0], [0], [1], [0, 0, 1, 1], [], []>} : vector<64x16xbf16>, vector<16x128xbf16>, vector<64x128xf32> -> vector<64x128xf32>
    %14 = arith.addf %7, %13 : vector<64x128xf32>
    %c0_16 = arith.constant 0 : index
    %c1_17 = arith.constant 1 : index
    %c0_18 = arith.constant 0 : index
    %c0_19 = arith.constant 0 : index
    %15 = vector.load %arg1[%c0_16, %c1_17, %c0_18, %c0_19] : memref<1x9x9x16xbf16, #tpu.memory_space<vmem>>, vector<1x8x8x16xbf16>
    %16 = vector.shape_cast %15 : vector<1x8x8x16xbf16> to vector<8x8x16xbf16>
    %17 = vector.shape_cast %16 : vector<8x8x16xbf16> to vector<64x16xbf16>
    %c1_20 = arith.constant 1 : index
    %c0_21 = arith.constant 0 : index
    %c0_22 = arith.constant 0 : index
    %c0_23 = arith.constant 0 : index
    %18 = vector.load %arg2[%c1_20, %c0_21, %c0_22, %c0_23] : memref<2x2x16x128xbf16, #tpu.memory_space<vmem>>, vector<1x1x16x128xbf16>
    %19 = vector.shape_cast %18 : vector<1x1x16x128xbf16> to vector<16x128xbf16>
    %cst_24 = arith.constant dense<0.000000e+00> : vector<64x128xf32>
    %20 = tpu.matmul %17, %19, %cst_24 {dimension_numbers = #tpu.dot_dimension_numbers<[1], [0], [0], [1], [0, 0, 1, 1], [], []>} : vector<64x16xbf16>, vector<16x128xbf16>, vector<64x128xf32> -> vector<64x128xf32>
    %21 = arith.addf %14, %20 : vector<64x128xf32>
    %c0_25 = arith.constant 0 : index
    %c1_26 = arith.constant 1 : index
    %c1_27 = arith.constant 1 : index
    %c0_28 = arith.constant 0 : index
    %22 = vector.load %arg1[%c0_25, %c1_26, %c1_27, %c0_28] : memref<1x9x9x16xbf16, #tpu.memory_space<vmem>>, vector<1x8x8x16xbf16>
    %23 = vector.shape_cast %22 : vector<1x8x8x16xbf16> to vector<8x8x16xbf16>
    %24 = vector.shape_cast %23 : vector<8x8x16xbf16> to vector<64x16xbf16>
    %c1_29 = arith.constant 1 : index
    %c1_30 = arith.constant 1 : index
    %c0_31 = arith.constant 0 : index
    %c0_32 = arith.constant 0 : index
    %25 = vector.load %arg2[%c1_29, %c1_30, %c0_31, %c0_32] : memref<2x2x16x128xbf16, #tpu.memory_space<vmem>>, vector<1x1x16x128xbf16>
    %26 = vector.shape_cast %25 : vector<1x1x16x128xbf16> to vector<16x128xbf16>
    %cst_33 = arith.constant dense<0.000000e+00> : vector<64x128xf32>
    %27 = tpu.matmul %24, %26, %cst_33 {dimension_numbers = #tpu.dot_dimension_numbers<[1], [0], [0], [1], [0, 0, 1, 1], [], []>} : vector<64x16xbf16>, vector<16x128xbf16>, vector<64x128xf32> -> vector<64x128xf32>
    %28 = arith.addf %21, %27 : vector<64x128xf32>
    %c0_34 = arith.constant 0 : index
    %c0_35 = arith.constant 0 : index
    %29 = vector.load %arg3[%c0_34, %c0_35] : memref<1x128xf32, #tpu.memory_space<vmem>>, vector<1x128xf32>
    %30 = vector.broadcast %29 : vector<1x128xf32> to vector<64x128xf32>
    %31 = arith.addf %28, %30 : vector<64x128xf32>
    %cst_36 = arith.constant dense<0.000000e+00> : vector<128xf32>
    %32 = vector.multi_reduction <add>, %31, %cst_36 [0] : vector<64x128xf32> to vector<128xf32>
    %33 = vector.shape_cast %32 : vector<128xf32> to vector<1x128xf32>
    %cst_37 = arith.constant 1.562500e-02 : f32
    %34 = vector.broadcast %cst_37 : f32 to vector<1x128xf32>
    %35 = arith.mulf %33, %34 : vector<1x128xf32>
    %36 = arith.mulf %31, %31 : vector<64x128xf32>
    %cst_38 = arith.constant dense<0.000000e+00> : vector<128xf32>
    %37 = vector.multi_reduction <add>, %36, %cst_38 [0] : vector<64x128xf32> to vector<128xf32>
    %38 = vector.shape_cast %37 : vector<128xf32> to vector<1x128xf32>
    %cst_39 = arith.constant 1.562500e-02 : f32
    %39 = vector.broadcast %cst_39 : f32 to vector<1x128xf32>
    %40 = arith.mulf %38, %39 : vector<1x128xf32>
    %41 = arith.mulf %35, %35 : vector<1x128xf32>
    %42 = arith.subf %40, %41 : vector<1x128xf32>
    %cst_40 = arith.constant 0.000000e+00 : f32
    %43 = vector.broadcast %cst_40 : f32 to vector<1x128xf32>
    %44 = arith.maximumf %42, %43 : vector<1x128xf32>
    %45 = vector.broadcast %35 : vector<1x128xf32> to vector<64x128xf32>
    %46 = arith.subf %31, %45 : vector<64x128xf32>
    %cst_41 = arith.constant 9.99999993E-9 : f32
    %47 = vector.broadcast %cst_41 : f32 to vector<1x128xf32>
    %48 = arith.addf %44, %47 : vector<1x128xf32>
    %49 = math.rsqrt %48 : vector<1x128xf32>
    %50 = vector.broadcast %49 : vector<1x128xf32> to vector<64x128xf32>
    %51 = arith.mulf %46, %50 : vector<64x128xf32>
    %cst_42 = arith.constant 0.000000e+00 : f32
    %52 = vector.broadcast %cst_42 : f32 to vector<64x128xf32>
    %53 = arith.cmpf ogt, %51, %52 : vector<64x128xf32>
    %cst_43 = arith.constant 2.000000e-01 : f32
    %54 = vector.broadcast %cst_43 : f32 to vector<64x128xf32>
    %55 = arith.mulf %54, %51 : vector<64x128xf32>
    %56 = arith.select %53, %51, %55 : vector<64x128xi1>, vector<64x128xf32>
    %57 = arith.truncf %56 : vector<64x128xf32> to vector<64x128xbf16>
    %c0_44 = arith.constant 0 : index
    %c0_45 = arith.constant 0 : index
    %c0_46 = arith.constant 0 : index
    %58 = vector.load %arg4[%c0_44, %c0_45, %c0_46] : memref<1x64x128xbf16, #tpu.memory_space<vmem>>, vector<1x64x128xbf16>
    %59 = vector.shape_cast %58 : vector<1x64x128xbf16> to vector<64x128xbf16>
    %60 = vector.shape_cast %57 : vector<64x128xbf16> to vector<1x64x128xbf16>
    tpu.vector_store %arg4[%c0_44, %c0_45, %c0_46], %60 {strides = array<i32>} : memref<1x64x128xbf16, #tpu.memory_space<vmem>>, vector<1x64x128xbf16>,
    return
  }
  func.func @transform_0(%arg0: i32) -> (i32, i32, i32, i32) {
    %c0_i32 = arith.constant 0 : i32
    %c0_i32_0 = arith.constant 0 : i32
    %c0_i32_1 = arith.constant 0 : i32
    %c0_i32_2 = arith.constant 0 : i32
    return %arg0, %c0_i32, %c0_i32_0, %c0_i32_1 : i32, i32, i32, i32
  }
  func.func @transform_1(%arg0: i32) -> (i32, i32, i32, i32) {
    %c0_i32 = arith.constant 0 : i32
    %c0_i32_0 = arith.constant 0 : i32
    %c0_i32_1 = arith.constant 0 : i32
    %c0_i32_2 = arith.constant 0 : i32
    %c0_i32_3 = arith.constant 0 : i32
    return %c0_i32, %c0_i32_0, %c0_i32_1, %c0_i32_2 : i32, i32, i32, i32
  }
  func.func @transform_2(%arg0: i32) -> (i32, i32) {
    %c0_i32 = arith.constant 0 : i32
    %c0_i32_0 = arith.constant 0 : i32
    %c0_i32_1 = arith.constant 0 : i32
    return %c0_i32, %c0_i32_0 : i32, i32
  }
  func.func @transform_3(%arg0: i32) -> (i32, i32, i32) {
    %c0_i32 = arith.constant 0 : i32
    %c0_i32_0 = arith.constant 0 : i32
    %c0_i32_1 = arith.constant 0 : i32
    return %arg0, %c0_i32, %c0_i32_0 : i32, i32, i32
  }
}

module attributes {stable_mosaic.version = 11 : i64} {
  func.func @_conv_in_lrelu_fused_kernel(%arg0: i32, %arg1: memref<1x5x5x512xbf16, #tpu.memory_space<vmem>>, %arg2: memref<2x2x512x128xbf16, #tpu.memory_space<vmem>>, %arg3: memref<1x128xf32, #tpu.memory_space<vmem>>, %arg4: memref<1x16x128xbf16, #tpu.memory_space<vmem>>) attributes {dimension_semantics = [#tpu.dimension_semantics<parallel>], iteration_bounds = array<i64: 2>, scalar_prefetch = 0 : i64, scratch_operands = 0 : i64, tpu.core_type = #tpu.core_type<tc>, window_params = [{transform_indices = @transform_0, window_bounds = array<i64: 1, 5, 5, 512>}, {pipeline_mode = #tpu.pipeline_mode<synchronous>, transform_indices = @transform_1, window_bounds = array<i64: 2, 2, 512, 128>}, {pipeline_mode = #tpu.pipeline_mode<synchronous>, transform_indices = @transform_2, window_bounds = array<i64: 1, 128>}, {transform_indices = @transform_3, window_bounds = array<i64: 1, 16, 128>}]} {
    %cst = arith.constant 0.000000e+00 : f32
    %0 = vector.broadcast %cst : f32 to vector<16x128xf32>
    %c0 = arith.constant 0 : index
    %c0_0 = arith.constant 0 : index
    %c0_1 = arith.constant 0 : index
    %c0_2 = arith.constant 0 : index
    %1 = vector.load %arg1[%c0, %c0_0, %c0_1, %c0_2] : memref<1x5x5x512xbf16, #tpu.memory_space<vmem>>, vector<1x4x4x512xbf16>
    %2 = vector.shape_cast %1 : vector<1x4x4x512xbf16> to vector<4x4x512xbf16>
    %3 = vector.shape_cast %2 : vector<4x4x512xbf16> to vector<16x512xbf16>
    %c0_3 = arith.constant 0 : index
    %c0_4 = arith.constant 0 : index
    %c0_5 = arith.constant 0 : index
    %c0_6 = arith.constant 0 : index
    %4 = vector.load %arg2[%c0_3, %c0_4, %c0_5, %c0_6] : memref<2x2x512x128xbf16, #tpu.memory_space<vmem>>, vector<1x1x512x128xbf16>
    %5 = vector.shape_cast %4 : vector<1x1x512x128xbf16> to vector<512x128xbf16>
    %cst_7 = arith.constant dense<0.000000e+00> : vector<16x128xf32>
    %6 = tpu.matmul %3, %5, %cst_7 {dimension_numbers = #tpu.dot_dimension_numbers<[1], [0], [0], [1], [0, 0, 1, 1], [], []>} : vector<16x512xbf16>, vector<512x128xbf16>, vector<16x128xf32> -> vector<16x128xf32>
    %7 = arith.addf %0, %6 : vector<16x128xf32>
    %c0_8 = arith.constant 0 : index
    %c0_9 = arith.constant 0 : index
    %c1 = arith.constant 1 : index
    %c0_10 = arith.constant 0 : index
    %8 = vector.load %arg1[%c0_8, %c0_9, %c1, %c0_10] : memref<1x5x5x512xbf16, #tpu.memory_space<vmem>>, vector<1x4x4x512xbf16>
    %9 = vector.shape_cast %8 : vector<1x4x4x512xbf16> to vector<4x4x512xbf16>
    %10 = vector.shape_cast %9 : vector<4x4x512xbf16> to vector<16x512xbf16>
    %c0_11 = arith.constant 0 : index
    %c1_12 = arith.constant 1 : index
    %c0_13 = arith.constant 0 : index
    %c0_14 = arith.constant 0 : index
    %11 = vector.load %arg2[%c0_11, %c1_12, %c0_13, %c0_14] : memref<2x2x512x128xbf16, #tpu.memory_space<vmem>>, vector<1x1x512x128xbf16>
    %12 = vector.shape_cast %11 : vector<1x1x512x128xbf16> to vector<512x128xbf16>
    %cst_15 = arith.constant dense<0.000000e+00> : vector<16x128xf32>
    %13 = tpu.matmul %10, %12, %cst_15 {dimension_numbers = #tpu.dot_dimension_numbers<[1], [0], [0], [1], [0, 0, 1, 1], [], []>} : vector<16x512xbf16>, vector<512x128xbf16>, vector<16x128xf32> -> vector<16x128xf32>
    %14 = arith.addf %7, %13 : vector<16x128xf32>
    %c0_16 = arith.constant 0 : index
    %c1_17 = arith.constant 1 : index
    %c0_18 = arith.constant 0 : index
    %c0_19 = arith.constant 0 : index
    %15 = vector.load %arg1[%c0_16, %c1_17, %c0_18, %c0_19] : memref<1x5x5x512xbf16, #tpu.memory_space<vmem>>, vector<1x4x4x512xbf16>
    %16 = vector.shape_cast %15 : vector<1x4x4x512xbf16> to vector<4x4x512xbf16>
    %17 = vector.shape_cast %16 : vector<4x4x512xbf16> to vector<16x512xbf16>
    %c1_20 = arith.constant 1 : index
    %c0_21 = arith.constant 0 : index
    %c0_22 = arith.constant 0 : index
    %c0_23 = arith.constant 0 : index
    %18 = vector.load %arg2[%c1_20, %c0_21, %c0_22, %c0_23] : memref<2x2x512x128xbf16, #tpu.memory_space<vmem>>, vector<1x1x512x128xbf16>
    %19 = vector.shape_cast %18 : vector<1x1x512x128xbf16> to vector<512x128xbf16>
    %cst_24 = arith.constant dense<0.000000e+00> : vector<16x128xf32>
    %20 = tpu.matmul %17, %19, %cst_24 {dimension_numbers = #tpu.dot_dimension_numbers<[1], [0], [0], [1], [0, 0, 1, 1], [], []>} : vector<16x512xbf16>, vector<512x128xbf16>, vector<16x128xf32> -> vector<16x128xf32>
    %21 = arith.addf %14, %20 : vector<16x128xf32>
    %c0_25 = arith.constant 0 : index
    %c1_26 = arith.constant 1 : index
    %c1_27 = arith.constant 1 : index
    %c0_28 = arith.constant 0 : index
    %22 = vector.load %arg1[%c0_25, %c1_26, %c1_27, %c0_28] : memref<1x5x5x512xbf16, #tpu.memory_space<vmem>>, vector<1x4x4x512xbf16>
    %23 = vector.shape_cast %22 : vector<1x4x4x512xbf16> to vector<4x4x512xbf16>
    %24 = vector.shape_cast %23 : vector<4x4x512xbf16> to vector<16x512xbf16>
    %c1_29 = arith.constant 1 : index
    %c1_30 = arith.constant 1 : index
    %c0_31 = arith.constant 0 : index
    %c0_32 = arith.constant 0 : index
    %25 = vector.load %arg2[%c1_29, %c1_30, %c0_31, %c0_32] : memref<2x2x512x128xbf16, #tpu.memory_space<vmem>>, vector<1x1x512x128xbf16>
    %26 = vector.shape_cast %25 : vector<1x1x512x128xbf16> to vector<512x128xbf16>
    %cst_33 = arith.constant dense<0.000000e+00> : vector<16x128xf32>
    %27 = tpu.matmul %24, %26, %cst_33 {dimension_numbers = #tpu.dot_dimension_numbers<[1], [0], [0], [1], [0, 0, 1, 1], [], []>} : vector<16x512xbf16>, vector<512x128xbf16>, vector<16x128xf32> -> vector<16x128xf32>
    %28 = arith.addf %21, %27 : vector<16x128xf32>
    %c0_34 = arith.constant 0 : index
    %c0_35 = arith.constant 0 : index
    %29 = vector.load %arg3[%c0_34, %c0_35] : memref<1x128xf32, #tpu.memory_space<vmem>>, vector<1x128xf32>
    %30 = vector.broadcast %29 : vector<1x128xf32> to vector<16x128xf32>
    %31 = arith.addf %28, %30 : vector<16x128xf32>
    %cst_36 = arith.constant dense<0.000000e+00> : vector<128xf32>
    %32 = vector.multi_reduction <add>, %31, %cst_36 [0] : vector<16x128xf32> to vector<128xf32>
    %33 = vector.shape_cast %32 : vector<128xf32> to vector<1x128xf32>
    %cst_37 = arith.constant 6.250000e-02 : f32
    %34 = vector.broadcast %cst_37 : f32 to vector<1x128xf32>
    %35 = arith.mulf %33, %34 : vector<1x128xf32>
    %36 = arith.mulf %31, %31 : vector<16x128xf32>
    %cst_38 = arith.constant dense<0.000000e+00> : vector<128xf32>
    %37 = vector.multi_reduction <add>, %36, %cst_38 [0] : vector<16x128xf32> to vector<128xf32>
    %38 = vector.shape_cast %37 : vector<128xf32> to vector<1x128xf32>
    %cst_39 = arith.constant 6.250000e-02 : f32
    %39 = vector.broadcast %cst_39 : f32 to vector<1x128xf32>
    %40 = arith.mulf %38, %39 : vector<1x128xf32>
    %41 = arith.mulf %35, %35 : vector<1x128xf32>
    %42 = arith.subf %40, %41 : vector<1x128xf32>
    %cst_40 = arith.constant 0.000000e+00 : f32
    %43 = vector.broadcast %cst_40 : f32 to vector<1x128xf32>
    %44 = arith.maximumf %42, %43 : vector<1x128xf32>
    %45 = vector.broadcast %35 : vector<1x128xf32> to vector<16x128xf32>
    %46 = arith.subf %31, %45 : vector<16x128xf32>
    %cst_41 = arith.constant 9.99999993E-9 : f32
    %47 = vector.broadcast %cst_41 : f32 to vector<1x128xf32>
    %48 = arith.addf %44, %47 : vector<1x128xf32>
    %49 = math.rsqrt %48 : vector<1x128xf32>
    %50 = vector.broadcast %49 : vector<1x128xf32> to vector<16x128xf32>
    %51 = arith.mulf %46, %50 : vector<16x128xf32>
    %cst_42 = arith.constant 0.000000e+00 : f32
    %52 = vector.broadcast %cst_42 : f32 to vector<16x128xf32>
    %53 = arith.cmpf ogt, %51, %52 : vector<16x128xf32>
    %cst_43 = arith.constant 2.000000e-01 : f32
    %54 = vector.broadcast %cst_43 : f32 to vector<16x128xf32>
    %55 = arith.mulf %54, %51 : vector<16x128xf32>
    %56 = arith.select %53, %51, %55 : vector<16x128xi1>, vector<16x128xf32>
    %57 = arith.truncf %56 : vector<16x128xf32> to vector<16x128xbf16>
    %c0_44 = arith.constant 0 : index
    %c0_45 = arith.constant 0 : index
    %c0_46 = arith.constant 0 : index
    %58 = vector.load %arg4[%c0_44, %c0_45, %c0_46] : memref<1x16x128xbf16, #tpu.memory_space<vmem>>, vector<1x16x128xbf16>
    %59 = vector.shape_cast %58 : vector<1x16x128xbf16> to vector<16x128xbf16>
    %60 = vector.shape_cast %57 : vector<16x128xbf16> to vector<1x16x128xbf16>
    tpu.vector_store %arg4[%c0_44, %c0_45, %c0_46], %60 {strides = array<i32>} : memref<1x16x128xbf16, #tpu.memory_space<vmem>>, vector<1x16x128xbf16>,
    return
  }
  func.func @transform_0(%arg0: i32) -> (i32, i32, i32, i32) {
    %c0_i32 = arith.constant 0 : i32
    %c0_i32_0 = arith.constant 0 : i32
    %c0_i32_1 = arith.constant 0 : i32
    %c0_i32_2 = arith.constant 0 : i32
    return %arg0, %c0_i32, %c0_i32_0, %c0_i32_1 : i32, i32, i32, i32
  }
  func.func @transform_1(%arg0: i32) -> (i32, i32, i32, i32) {
    %c0_i32 = arith.constant 0 : i32
    %c0_i32_0 = arith.constant 0 : i32
    %c0_i32_1 = arith.constant 0 : i32
    %c0_i32_2 = arith.constant 0 : i32
    %c0_i32_3 = arith.constant 0 : i32
    return %c0_i32, %c0_i32_0, %c0_i32_1, %c0_i32_2 : i32, i32, i32, i32
  }
  func.func @transform_2(%arg0: i32) -> (i32, i32) {
    %c0_i32 = arith.constant 0 : i32
    %c0_i32_0 = arith.constant 0 : i32
    %c0_i32_1 = arith.constant 0 : i32
    return %c0_i32, %c0_i32_0 : i32, i32
  }
  func.func @transform_3(%arg0: i32) -> (i32, i32, i32) {
    %c0_i32 = arith.constant 0 : i32
    %c0_i32_0 = arith.constant 0 : i32
    %c0_i32_1 = arith.constant 0 : i32
    return %arg0, %c0_i32, %c0_i32_0 : i32, i32, i32
  }
}

module attributes {stable_mosaic.version = 11 : i64} {
  func.func @_matmul_bias_kernel(%arg0: i32, %arg1: memref<2x2048xbf16, #tpu.memory_space<vmem>>, %arg2: memref<2048x128xbf16, #tpu.memory_space<vmem>>, %arg3: memref<1x128xf32, #tpu.memory_space<vmem>>, %arg4: memref<2x128xf32, #tpu.memory_space<vmem>>) attributes {dimension_semantics = [#tpu.dimension_semantics<arbitrary>], iteration_bounds = array<i64: 1>, scalar_prefetch = 0 : i64, scratch_operands = 0 : i64, tpu.core_type = #tpu.core_type<tc>, window_params = [{pipeline_mode = #tpu.pipeline_mode<synchronous>, transform_indices = @transform_0, window_bounds = array<i64: 2, 2048>}, {pipeline_mode = #tpu.pipeline_mode<synchronous>, transform_indices = @transform_1, window_bounds = array<i64: 2048, 128>}, {pipeline_mode = #tpu.pipeline_mode<synchronous>, transform_indices = @transform_2, window_bounds = array<i64: 1, 128>}, {pipeline_mode = #tpu.pipeline_mode<synchronous>, transform_indices = @transform_3, window_bounds = array<i64: 2, 128>}]} {
    %c0 = arith.constant 0 : index
    %c0_0 = arith.constant 0 : index
    %0 = vector.load %arg1[%c0, %c0_0] : memref<2x2048xbf16, #tpu.memory_space<vmem>>, vector<2x2048xbf16>
    %c0_1 = arith.constant 0 : index
    %c0_2 = arith.constant 0 : index
    %1 = vector.load %arg2[%c0_1, %c0_2] : memref<2048x128xbf16, #tpu.memory_space<vmem>>, vector<2048x128xbf16>
    %cst = arith.constant dense<0.000000e+00> : vector<2x128xf32>
    %2 = tpu.matmul %0, %1, %cst {dimension_numbers = #tpu.dot_dimension_numbers<[1], [0], [0], [1], [0, 0, 1, 1], [], []>} : vector<2x2048xbf16>, vector<2048x128xbf16>, vector<2x128xf32> -> vector<2x128xf32>
    %c0_3 = arith.constant 0 : index
    %c0_4 = arith.constant 0 : index
    %3 = vector.load %arg3[%c0_3, %c0_4] : memref<1x128xf32, #tpu.memory_space<vmem>>, vector<1x128xf32>
    %4 = vector.broadcast %3 : vector<1x128xf32> to vector<2x128xf32>
    %5 = arith.addf %2, %4 : vector<2x128xf32>
    %c0_5 = arith.constant 0 : index
    %c0_6 = arith.constant 0 : index
    %6 = vector.load %arg4[%c0_5, %c0_6] : memref<2x128xf32, #tpu.memory_space<vmem>>, vector<2x128xf32>
    tpu.vector_store %arg4[%c0_5, %c0_6], %5 {strides = array<i32>} : memref<2x128xf32, #tpu.memory_space<vmem>>, vector<2x128xf32>,
    return
  }
  func.func @transform_0(%arg0: i32) -> (i32, i32) {
    %c0_i32 = arith.constant 0 : i32
    %c0_i32_0 = arith.constant 0 : i32
    %c0_i32_1 = arith.constant 0 : i32
    return %c0_i32, %c0_i32_0 : i32, i32
  }
  func.func @transform_1(%arg0: i32) -> (i32, i32) {
    %c0_i32 = arith.constant 0 : i32
    %c0_i32_0 = arith.constant 0 : i32
    %c0_i32_1 = arith.constant 0 : i32
    return %c0_i32, %c0_i32_0 : i32, i32
  }
  func.func @transform_2(%arg0: i32) -> (i32, i32) {
    %c0_i32 = arith.constant 0 : i32
    %c0_i32_0 = arith.constant 0 : i32
    %c0_i32_1 = arith.constant 0 : i32
    return %c0_i32, %c0_i32_0 : i32, i32
  }
  func.func @transform_3(%arg0: i32) -> (i32, i32) {
    %c0_i32 = arith.constant 0 : i32
    %c0_i32_0 = arith.constant 0 : i32
    %c0_i32_1 = arith.constant 0 : i32
    return %c0_i32, %c0_i32_0 : i32, i32
  }
}

</mosaic_0001>

<llo_original>
// kernel: _lambda_.3
$region0: #{_lambda_.3}
  #allocation0 [shape = 'u32[]', space=smem, size = 0x4, offset = 0x4, fixed_abs, tag = 'smem constant byte address 0x4 - core index']
  #allocation1 [shape = 'u32[144,128]{1,0:T(1,128)}', space=vmem, size = 0x12000, scoped, tag = 'internal scratch']
  %s0 = inlined_call_operand.vmem [shape: bf16[2,9,9,16], index: 0, kind: input, shape index: {}]
  %s1 = inlined_call_operand.vmem [shape: bf16[2,2,16,128], index: 1, kind: input, shape index: {}]
  %s2 = inlined_call_operand.vmem [shape: f32[1,128], index: 2, kind: input, shape index: {}]
  %s3 = inlined_call_operand.vmem [shape: bf16[2,64,128], index: 3, kind: output, shape index: {}]
  %s4 = sld [smem:[#allocation0]]
  $region45: #{_lambda_.3} parent=0
    _
  %s6 = ssub.s32 1, %s4
  %s7 = scalar_select 0, %s6, %s4
  loop: start=0, step=1, limit=4
  $region2: #{_lambda_.3} parent=0 // loop_pre_header
    _
  $region3: #{_lambda_.3} parent=0 // loop_header
    %s9 = sphi 0, %s13
    %p10 = scmp.ge.s32.totalorder %s9, 4
    %s19 = sphi 0, %s21
    %s22 = sphi 0, %s19
    %s23 = sphi 0, %s22
    %s39 = sphi 0, %s23
    %s43 = sphi 0, %s43
    %s45 = sphi 0, %s43
    %s46 = sphi 0, %s45
    %s60 = sphi 0, %s46
    %s64 = sphi 0, %s64
    %s66 = sphi 0, %s64
    %s67 = sphi 0, %s66
    %s81 = sphi 0, %s67
    %s87 = sphi 0, %s89
    %s90 = sphi 0, %s87
    %s91 = sphi 0, %s90
    %s107 = sphi 0, %s91
  $region4: #{_lambda_.3} parent=0 // loop_header_branch
    %12 = sbr.rel (%p10) target = $region8
  $region5: #{_lambda_.3} parent=0 // loop_body
    %s14 = ssub.s32 %s9, 1
    %s15 = ssub.s32 %s9, 2
    %s16 = sadd.s32 %s9, 1
    %s17 = ssub.s32 %s9, %s16
    %p18 = scmp.eq.s32.totalorder %s17, 0
    %s20 = sadd.s32 %s19, 1
    %s21 = scalar_select %p18, %s19, %s20
    %p24 = pneg %p18
    %p25 = scmp.eq.s32.totalorder %s9, 1
    %p26 = por %p24, %p25
    %p27 = scmp.ne.s32.totalorder %s19, %s22
    %p28 = scmp.eq.s32.totalorder %s9, 0
    %p29 = por %p27, %p28
    %p30 = scmp.ne.s32.totalorder %s19, %s22
    %p31 = scmp.eq.s32.totalorder %s14, 1
    %p32 = por %p30, %p31
    %p33 = scmp.ne.s32.totalorder %s22, %s23
    %p34 = scmp.eq.s32.totalorder %s14, 0
    %p35 = por %p33, %p34
    %p36 = scmp.ne.s32.totalorder %s22, %s23
    %p37 = scmp.eq.s32.totalorder %s15, 1
    %p38 = por %p36, %p37
    %p40 = scmp.ne.s32.totalorder %s23, %s39
    %p41 = scmp.eq.s32.totalorder %s15, 0
    %p42 = por %p40, %p41
    %s44 = sadd.s32 %s43, 1
    %p47 = scmp.eq.s32.totalorder %s9, 1
    %p48 = scmp.ne.s32.totalorder %s43, %s45
    %p49 = scmp.eq.s32.totalorder %s9, 0
    %p50 = por %p48, %p49
    %p51 = scmp.ne.s32.totalorder %s43, %s45
    %p52 = scmp.eq.s32.totalorder %s14, 1
    %p53 = por %p51, %p52
    %p54 = scmp.ne.s32.totalorder %s45, %s46
    %p55 = scmp.eq.s32.totalorder %s14, 0
    %p56 = por %p54, %p55
    %p57 = scmp.ne.s32.totalorder %s45, %s46
    %p58 = scmp.eq.s32.totalorder %s15, 1
    %p59 = por %p57, %p58
    %p61 = scmp.ne.s32.totalorder %s46, %s60
    %p62 = scmp.eq.s32.totalorder %s15, 0
    %p63 = por %p61, %p62
    %s65 = sadd.s32 %s64, 1
    %p68 = scmp.eq.s32.totalorder %s9, 1
    %p69 = scmp.ne.s32.totalorder %s64, %s66
    %p70 = scmp.eq.s32.totalorder %s9, 0
    %p71 = por %p69, %p70
    %p72 = scmp.ne.s32.totalorder %s64, %s66
    %p73 = scmp.eq.s32.totalorder %s14, 1
    %p74 = por %p72, %p73
    %p75 = scmp.ne.s32.totalorder %s66, %s67
    %p76 = scmp.eq.s32.totalorder %s14, 0
    %p77 = por %p75, %p76
    %p78 = scmp.ne.s32.totalorder %s66, %s67
    %p79 = scmp.eq.s32.totalorder %s15, 1
    %p80 = por %p78, %p79
    %p82 = scmp.ne.s32.totalorder %s67, %s81
    %p83 = scmp.eq.s32.totalorder %s15, 0
    %p84 = por %p82, %p83
    %s85 = ssub.s32 %s9, %s16
    %p86 = scmp.eq.s32.totalorder %s85, 0
    %s88 = sadd.s32 %s87, 1
    %s89 = scalar_select %p86, %s87, %s88
    %p92 = pneg %p86
    %p93 = scmp.eq.s32.totalorder %s9, 1
    %p94 = por %p92, %p93
    %p95 = scmp.ne.s32.totalorder %s87, %s90
    %p96 = scmp.eq.s32.totalorder %s9, 0
    %p97 = por %p95, %p96
    %p98 = scmp.ne.s32.totalorder %s87, %s90
    %p99 = scmp.eq.s32.totalorder %s14, 1
    %p100 = por %p98, %p99
    %p101 = scmp.ne.s32.totalorder %s90, %s91
    %p102 = scmp.eq.s32.totalorder %s14, 0
    %p103 = por %p101, %p102
    %p104 = scmp.ne.s32.totalorder %s90, %s91
    %p105 = scmp.eq.s32.totalorder %s15, 1
    %p106 = por %p104, %p105
    %p108 = scmp.ne.s32.totalorder %s91, %s107
    %p109 = scmp.eq.s32.totalorder %s15, 0
    %p110 = por %p108, %p109
    %p111 = scmp.le.s32.totalorder 1, %s9
    %p112 = scmp.lt.s32.totalorder %s9, 3
    %p113 = pnand %p111, %p112
    %p114 = pneg %p113
    // Predicated region
    $region9: #{_lambda_.3} parent=5 // pred_check
      _
    $region10: #{_lambda_.3} parent=5 // pred_check_branch
      %116 = sbr.rel (%p113) target = $region12
    $region11: #{_lambda_.3} parent=5 // pred_region
      %s117 = ssub.s32 %s9, 1
      // Predicated region
      $region13: #{_lambda_.3} parent=11 // pred_check
        %p118 = pneg %p56
      $region14: #{_lambda_.3} parent=11 // pred_check_branch
        %120 = sbr.rel (%p118) target = $region16
      $region15: #{_lambda_.3} parent=11 // pred_region
        _
      $region16: #{_lambda_.3} parent=11 // pred_fallthru
        _
      // Predicated region
      $region17: #{_lambda_.3} parent=11 // pred_check
        %p121 = pneg %p77
      $region18: #{_lambda_.3} parent=11 // pred_check_branch
        %123 = sbr.rel (%p121) target = $region20
      $region19: #{_lambda_.3} parent=11 // pred_region
        _
      $region20: #{_lambda_.3} parent=11 // pred_fallthru
        _
    $region12: #{_lambda_.3} parent=5 // pred_fallthru
      _
    %p124 = scmp.lt.s32.totalorder %s9, 2
    // Predicated region
    $region21: #{_lambda_.3} parent=5 // pred_check
      %p125 = pneg %p124
    $region22: #{_lambda_.3} parent=5 // pred_check_branch
      %127 = sbr.rel (%p125) target = $region24
    $region23: #{_lambda_.3} parent=5 // pred_region
      // Predicated region
      $region25: #{_lambda_.3} parent=23 // pred_check
        %p128 = pneg %p29
      $region26: #{_lambda_.3} parent=23 // pred_check_branch
        %130 = sbr.rel (%p128) target = $region28
      $region27: #{_lambda_.3} parent=23 // pred_region
        %p131 = scmp.lt.s32.totalorder %s9, 1
        %s132 = scalar_select %p131, %s9, 1
        %s133 = smul.addr %s132, 18
        %s134 = smul.addr %s133, 4
        %s135 = scalar_lea.vmem %s0, %s134
      $region28: #{_lambda_.3} parent=23 // pred_fallthru
        _
    $region24: #{_lambda_.3} parent=5 // pred_fallthru
      _
    %p136 = scmp.le.s32.totalorder 1, %s9
    %p137 = scmp.lt.s32.totalorder %s9, 3
    %p138 = pnand %p136, %p137
    %p139 = pneg %p138
    // Predicated region
    $region29: #{_lambda_.3} parent=5 // pred_check
      _
    $region30: #{_lambda_.3} parent=5 // pred_check_branch
      %141 = sbr.rel (%p138) target = $region32
    $region31: #{_lambda_.3} parent=5 // pred_region
      %s142 = ssub.s32 %s9, 1
      %p143 = scmp.lt.s32.totalorder %s14, 1
      %s144 = scalar_select %p143, %s14, 1
      %s145 = smul.addr %s144, 18
      %s146 = smul.addr %s145, 4
      %s147 = scalar_lea.vmem %s0, %s146
      %p148 = pneg %p35
      %p149 = pneg %p32
      %p150 = pneg %p56
      %p151 = pneg %p53
      %p152 = pneg %p77
      %p153 = pneg %p74
      %p154 = pneg %p103
      %p155 = pneg %p100
      %p156 = scmp.lt.s32.totalorder %s14, 1
      %s157 = scalar_select %p156, %s14, 1
      %s158 = smul.addr %s157, 8
      %s159 = smul.addr %s158, 4
      %s160 = scalar_lea.vmem %s3, %s159
      %p161 = scmp.lt.s32.totalorder %s14, 1
      %s162 = scalar_select %p161, %s14, 1
      %s163 = smul.addr %s162, 18
      %s164 = smul.addr %s163, 4
      %s165 = scalar_lea.vmem %s0, %s164
      %p166 = scmp.lt.s32.totalorder %s14, 1
      %s167 = scalar_select %p166, %s14, 1
      %s168 = smul.addr %s167, 8
      %s169 = smul.addr %s168, 4
      %s170 = scalar_lea.vmem %s3, %s169
      %v172 = vld [vmem:[%s165] sm:$0xf]
      %v173 = vld [vmem:[%s165 + $0x8] sm:$0xf]
      %v174 = vld [vmem:[%s165 + $0x10] sm:$0xf]
      %v175 = vld [vmem:[%s165 + $0x18] sm:$0xf]
      %v176 = vld [vmem:[%s165 + $0x20] sm:$0xf]
      %v177 = vld [vmem:[%s165 + $0x28] sm:$0xf]
      %v178 = vld [vmem:[%s165 + $0x30] sm:$0xf]
      %v179 = vld [vmem:[%s165 + $0x38] sm:$0xf]
      %v180 = vld [vmem:[%s1] sm:$0xf]
      %v181 = vld [vmem:[%s1 + $0x4] sm:$0xf]
      %v182 = vld [vmem:[%s165 + $0x4] sm:$0x1]
      %v183 = vld [vmem:[%s165 + $0xc] sm:$0x1]
      %v184 = vld [vmem:[%s165 + $0x14] sm:$0x1]
      %v185 = vld [vmem:[%s165 + $0x1c] sm:$0x1]
      %v186 = vld [vmem:[%s165 + $0x24] sm:$0x1]
      %v187 = vld [vmem:[%s165 + $0x2c] sm:$0x1]
      %v188 = vld [vmem:[%s165 + $0x34] sm:$0x1]
      %v189 = vld [vmem:[%s165 + $0x3c] sm:$0x1]
      %vm190 = vsmask.f32 3328
      %vm191 = vsmask.f32 7440
      %vm192 = vmor %vm190, %vm191
      %v194 = vshrl.u32 %v172, 16
      %v196 = vrot.slane %v194, 4
      %v197 = vshll.u32 %v172, 16
      %v199 = vrot.slane %v197, 5
      %v200 = vor.u32 %v196, %v199
      %v201 = vrot.slane %v200, 4
      %v203 = vshll.u32 %v182, 16
      %v205 = vrot.slane %v203, 5
      %v206 = vsel %vm192, %v201, %v205
      %v208 = vshrl.u32 %v173, 16
      %v210 = vrot.slane %v208, 4
      %v211 = vshll.u32 %v173, 16
      %v213 = vrot.slane %v211, 5
      %v214 = vor.u32 %v210, %v213
      %v215 = vrot.slane %v214, 4
      %v217 = vshll.u32 %v183, 16
      %v219 = vrot.slane %v217, 5
      %v220 = vsel %vm192, %v215, %v219
      %v222 = vshrl.u32 %v174, 16
      %v224 = vrot.slane %v222, 4
      %v225 = vshll.u32 %v174, 16
      %v227 = vrot.slane %v225, 5
      %v228 = vor.u32 %v224, %v227
      %v229 = vrot.slane %v228, 4
      %v231 = vshll.u32 %v184, 16
      %v233 = vrot.slane %v231, 5
      %v234 = vsel %vm192, %v229, %v233
      %v236 = vshrl.u32 %v175, 16
      %v238 = vrot.slane %v236, 4
      %v239 = vshll.u32 %v175, 16
      %v241 = vrot.slane %v239, 5
      %v242 = vor.u32 %v238, %v241
      %v243 = vrot.slane %v242, 4
      %v245 = vshll.u32 %v185, 16
      %v247 = vrot.slane %v245, 5
      %v248 = vsel %vm192, %v243, %v247
      %v250 = vshrl.u32 %v176, 16
      %v252 = vrot.slane %v250, 4
      %v253 = vshll.u32 %v176, 16
      %v255 = vrot.slane %v253, 5
      %v256 = vor.u32 %v252, %v255
      %v257 = vrot.slane %v256, 4
      %v259 = vshll.u32 %v186, 16
      %v261 = vrot.slane %v259, 5
      %v262 = vsel %vm192, %v257, %v261
      %v264 = vshrl.u32 %v177, 16
      %v266 = vrot.slane %v264, 4
      %v267 = vshll.u32 %v177, 16
      %v269 = vrot.slane %v267, 5
      %v270 = vor.u32 %v266, %v269
      %v271 = vrot.slane %v270, 4
      %v273 = vshll.u32 %v187, 16
      %v275 = vrot.slane %v273, 5
      %v276 = vsel %vm192, %v271, %v275
      %v278 = vshrl.u32 %v178, 16
      %v280 = vrot.slane %v278, 4
      %v281 = vshll.u32 %v178, 16
      %v283 = vrot.slane %v281, 5
      %v284 = vor.u32 %v280, %v283
      %v285 = vrot.slane %v284, 4
      %v287 = vshll.u32 %v188, 16
      %v289 = vrot.slane %v287, 5
      %v290 = vsel %vm192, %v285, %v289
      %v292 = vshrl.u32 %v179, 16
      %v294 = vrot.slane %v292, 4
      %v295 = vshll.u32 %v179, 16
      %v297 = vrot.slane %v295, 5
      %v298 = vor.u32 %v294, %v297
      %v299 = vrot.slane %v298, 4
      %v301 = vshll.u32 %v189, 16
      %v303 = vrot.slane %v301, 5
      %v304 = vsel %vm192, %v299, %v303
      %s305 = scalar_lea.vmem %s1, 8
      %v306 = vld [vmem:[%s305] sm:$0xf]
      %v307 = vld [vmem:[%s305 + $0x4] sm:$0xf]
      %v308 = vunpack.c.l.b16 %v206
      %v309 = vunpack.c.l.b16 %v220
      %v310 = vunpack.c.l.b16 %v234
      %v311 = vunpack.c.l.b16 %v248
      %v312 = vunpack.c.l.b16 %v262
      %v313 = vunpack.c.l.b16 %v276
      %v314 = vunpack.c.l.b16 %v290
      %v315 = vunpack.c.l.b16 %v304
      %v316 = vpack.c.b16 %v309, %v308
      %v317 = vpack.c.b16 %v311, %v310
      %v318 = vpack.c.b16 %v313, %v312
      %v319 = vpack.c.b16 %v315, %v314
      %v322 = vunpack.c.l.b16 %v306
      %v323 = vunpack.c.l.b16 %v307
      %v324 = vpack.c.b16 %v323, %v322
      %vm326 = vcmask 130048
      %v328 = vsel %vm326, %v316, 0
      %v331 = vsel %vm326, %v317, 0
      %v334 = vsel %vm326, %v318, 0
      %v337 = vsel %vm326, %v319, 0
      %339 = vmatprep.subr.bf16.mxu0 0
      %340 = vmatpush1.bf16.msra.mxu0 %v324
      %341 = vmatprep.subr.bf16.mxu0 0
      %342 = vmatpush1.bf16.msra.mxu0 0
      %343 = vmatprep.subr.bf16.mxu0 0
      %344 = vmatpush1.bf16.msra.mxu0 0
      %345 = vmatprep.subr.bf16.mxu0 0
      %346 = vmatpush1.bf16.msra.mxu0 0
      %347 = vmatprep.subr.bf16.mxu0 0
      %348 = vmatpush1.bf16.msra.mxu0 0
      %349 = vmatprep.subr.bf16.mxu0 0
      %350 = vmatpush1.bf16.msra.mxu0 0
      %351 = vmatprep.subr.bf16.mxu0 0
      %352 = vmatpush1.bf16.msra.mxu0 0
      %353 = vmatprep.subr.bf16.mxu0 0
      %354 = vmatpush1.bf16.msra.mxu0 0
      %355 = vmatprep.subr.bf16.mxu0 0
      %356 = vmatpush1.bf16.msra.mxu0 0
      %357 = vmatprep.subr.bf16.mxu0 0
      %358 = vmatpush1.bf16.msra.mxu0 0
      %359 = vmatprep.subr.bf16.mxu0 0
      %360 = vmatpush1.bf16.msra.mxu0 0
      %361 = vmatprep.subr.bf16.mxu0 0
      %362 = vmatpush1.bf16.msra.mxu0 0
      %363 = vmatprep.subr.bf16.mxu0 0
      %364 = vmatpush1.bf16.msra.mxu0 0
      %365 = vmatprep.subr.bf16.mxu0 0
      %366 = vmatpush1.bf16.msra.mxu0 0
      %367 = vmatprep.subr.bf16.mxu0 0
      %368 = vmatpush1.bf16.msra.mxu0 0
      %369 = vmatprep.subr.bf16.mxu0 0
      %370 = vmatpush1.bf16.msra.mxu0 0
      %371 = vmatprep.mubr.bf16.mxu0 0
      %372 = vmatmul.mubr.bf16.gmra.mrb[0].mxu0 %v328
      %v373 = vpop.f32.mrb[0].mxu0
      %v374 = vadd.f32 0.0, %v373
      %v375 = vpop.f32.mrb[0].mxu0
      %v376 = vpop.f32.mrb[0].mxu0
      %v377 = vadd.f32 0.0, %v376
      %v378 = vpop.f32.mrb[0].mxu0
      %379 = vmatprep.mubr.bf16.mxu0 0
      %380 = vmatmul.mubr.bf16.gmra.mrb[0].mxu0 %v331
      %v381 = vpop.f32.mrb[0].mxu0
      %v382 = vadd.f32 0.0, %v381
      %v383 = vpop.f32.mrb[0].mxu0
      %v384 = vpop.f32.mrb[0].mxu0
      %v385 = vadd.f32 0.0, %v384
      %v386 = vpop.f32.mrb[0].mxu0
      %387 = vmatprep.mubr.bf16.mxu0 0
      %388 = vmatmul.mubr.bf16.gmra.mrb[0].mxu0 %v334
      %v389 = vpop.f32.mrb[0].mxu0
      %v390 = vadd.f32 0.0, %v389
      %v391 = vpop.f32.mrb[0].mxu0
      %v392 = vpop.f32.mrb[0].mxu0
      %v393 = vadd.f32 0.0, %v392
      %v394 = vpop.f32.mrb[0].mxu0
      %395 = vmatprep.mubr.bf16.mxu0 0
      %396 = vmatmul.mubr.bf16.gmra.mrb[0].mxu0 %v337
      %v397 = vpop.f32.mrb[0].mxu0
      %v398 = vadd.f32 0.0, %v397
      %v399 = vpop.f32.mrb[0].mxu0
      %v400 = vpop.f32.mrb[0].mxu0
      %v401 = vadd.f32 0.0, %v400
      %v402 = vpop.f32.mrb[0].mxu0
      %403 = vdwg.mxu0
      %v412 = vunpack.c.l.b16 %v172
      %v413 = vunpack.c.l.b16 %v173
      %v414 = vunpack.c.l.b16 %v174
      %v415 = vunpack.c.l.b16 %v175
      %v416 = vunpack.c.l.b16 %v176
      %v417 = vunpack.c.l.b16 %v177
      %v418 = vunpack.c.l.b16 %v178
      %v419 = vunpack.c.l.b16 %v179
      %v420 = vpack.c.b16 %v413, %v412
      %v421 = vpack.c.b16 %v415, %v414
      %v422 = vpack.c.b16 %v417, %v416
      %v423 = vpack.c.b16 %v419, %v418
      %v426 = vunpack.c.l.b16 %v180
      %v427 = vunpack.c.l.b16 %v181
      %v428 = vpack.c.b16 %v427, %v426
      %v431 = vsel %vm326, %v420, 0
      %v434 = vsel %vm326, %v421, 0
      %v437 = vsel %vm326, %v422, 0
      %v440 = vsel %vm326, %v423, 0
      %442 = vmatprep.subr.bf16.mxu0 0
      %443 = vmatpush1.bf16.msra.mxu0 %v428
      %444 = vmatprep.subr.bf16.mxu0 0
      %445 = vmatpush1.bf16.msra.mxu0 0
      %446 = vmatprep.subr.bf16.mxu0 0
      %447 = vmatpush1.bf16.msra.mxu0 0
      %448 = vmatprep.subr.bf16.mxu0 0
      %449 = vmatpush1.bf16.msra.mxu0 0
      %450 = vmatprep.subr.bf16.mxu0 0
      %451 = vmatpush1.bf16.msra.mxu0 0
      %452 = vmatprep.subr.bf16.mxu0 0
      %453 = vmatpush1.bf16.msra.mxu0 0
      %454 = vmatprep.subr.bf16.mxu0 0
      %455 = vmatpush1.bf16.msra.mxu0 0
      %456 = vmatprep.subr.bf16.mxu0 0
      %457 = vmatpush1.bf16.msra.mxu0 0
      %458 = vmatprep.subr.bf16.mxu0 0
      %459 = vmatpush1.bf16.msra.mxu0 0
      %460 = vmatprep.subr.bf16.mxu0 0
      %461 = vmatpush1.bf16.msra.mxu0 0
      %462 = vmatprep.subr.bf16.mxu0 0
      %463 = vmatpush1.bf16.msra.mxu0 0
      %464 = vmatprep.subr.bf16.mxu0 0
      %465 = vmatpush1.bf16.msra.mxu0 0
      %466 = vmatprep.subr.bf16.mxu0 0
      %467 = vmatpush1.bf16.msra.mxu0 0
      %468 = vmatprep.subr.bf16.mxu0 0
      %469 = vmatpush1.bf16.msra.mxu0 0
      %470 = vmatprep.subr.bf16.mxu0 0
      %471 = vmatpush1.bf16.msra.mxu0 0
      %472 = vmatprep.subr.bf16.mxu0 0
      %473 = vmatpush1.bf16.msra.mxu0 0
      %474 = vmatprep.mubr.bf16.mxu0 0
      %475 = vmatmul.mubr.bf16.gmra.mrb[0].mxu0 %v431
      %v476 = vpop.f32.mrb[0].mxu0
      %v477 = vadd.f32 %v374, %v476
      %v478 = vpop.f32.mrb[0].mxu0
      %v479 = vpop.f32.mrb[0].mxu0
      %v480 = vadd.f32 %v377, %v479
      %v481 = vpop.f32.mrb[0].mxu0
      %482 = vmatprep.mubr.bf16.mxu0 0
      %483 = vmatmul.mubr.bf16.gmra.mrb[0].mxu0 %v434
      %v484 = vpop.f32.mrb[0].mxu0
      %v485 = vadd.f32 %v382, %v484
      %v486 = vpop.f32.mrb[0].mxu0
      %v487 = vpop.f32.mrb[0].mxu0
      %v488 = vadd.f32 %v385, %v487
      %v489 = vpop.f32.mrb[0].mxu0
      %490 = vmatprep.mubr.bf16.mxu0 0
      %491 = vmatmul.mubr.bf16.gmra.mrb[0].mxu0 %v437
      %v492 = vpop.f32.mrb[0].mxu0
      %v493 = vadd.f32 %v390, %v492
      %v494 = vpop.f32.mrb[0].mxu0
      %v495 = vpop.f32.mrb[0].mxu0
      %v496 = vadd.f32 %v393, %v495
      %v497 = vpop.f32.mrb[0].mxu0
      %498 = vmatprep.mubr.bf16.mxu0 0
      %499 = vmatmul.mubr.bf16.gmra.mrb[0].mxu0 %v440
      %v500 = vpop.f32.mrb[0].mxu0
      %v501 = vadd.f32 %v398, %v500
      %v502 = vpop.f32.mrb[0].mxu0
      %v503 = vpop.f32.mrb[0].mxu0
      %v504 = vadd.f32 %v401, %v503
      %v505 = vpop.f32.mrb[0].mxu0
      %506 = vdwg.mxu0
      %s507 = scalar_lea.vmem %s165, 8
      %v508 = vld [vmem:[%s507] sm:$0xf]
      %v509 = vld [vmem:[%s507 + $0x8] sm:$0xf]
      %v510 = vld [vmem:[%s507 + $0x10] sm:$0xf]
      %v511 = vld [vmem:[%s507 + $0x18] sm:$0xf]
      %v512 = vld [vmem:[%s507 + $0x20] sm:$0xf]
      %v513 = vld [vmem:[%s507 + $0x28] sm:$0xf]
      %v514 = vld [vmem:[%s507 + $0x30] sm:$0xf]
      %v515 = vld [vmem:[%s507 + $0x38] sm:$0xf]
      %s516 = scalar_lea.vmem %s1, 16
      %v517 = vld [vmem:[%s516] sm:$0xf]
      %v518 = vld [vmem:[%s516 + $0x4] sm:$0xf]
      %v527 = vunpack.c.l.b16 %v508
      %v528 = vunpack.c.l.b16 %v509
      %v529 = vunpack.c.l.b16 %v510
      %v530 = vunpack.c.l.b16 %v511
      %v531 = vunpack.c.l.b16 %v512
      %v532 = vunpack.c.l.b16 %v513
      %v533 = vunpack.c.l.b16 %v514
      %v534 = vunpack.c.l.b16 %v515
      %v535 = vpack.c.b16 %v528, %v527
      %v536 = vpack.c.b16 %v530, %v529
      %v537 = vpack.c.b16 %v532, %v531
      %v538 = vpack.c.b16 %v534, %v533
      %v541 = vunpack.c.l.b16 %v517
      %v542 = vunpack.c.l.b16 %v518
      %v543 = vpack.c.b16 %v542, %v541
      %v546 = vsel %vm326, %v535, 0
      %v549 = vsel %vm326, %v536, 0
      %v552 = vsel %vm326, %v537, 0
      %v555 = vsel %vm326, %v538, 0
      %557 = vmatprep.subr.bf16.mxu0 0
      %558 = vmatpush1.bf16.msra.mxu0 %v543
      %559 = vmatprep.subr.bf16.mxu0 0
      %560 = vmatpush1.bf16.msra.mxu0 0
      %561 = vmatprep.subr.bf16.mxu0 0
      %562 = vmatpush1.bf16.msra.mxu0 0
      %563 = vmatprep.subr.bf16.mxu0 0
      %564 = vmatpush1.bf16.msra.mxu0 0
      %565 = vmatprep.subr.bf16.mxu0 0
      %566 = vmatpush1.bf16.msra.mxu0 0
      %567 = vmatprep.subr.bf16.mxu0 0
      %568 = vmatpush1.bf16.msra.mxu0 0
      %569 = vmatprep.subr.bf16.mxu0 0
      %570 = vmatpush1.bf16.msra.mxu0 0
      %571 = vmatprep.subr.bf16.mxu0 0
      %572 = vmatpush1.bf16.msra.mxu0 0
      %573 = vmatprep.subr.bf16.mxu0 0
      %574 = vmatpush1.bf16.msra.mxu0 0
      %575 = vmatprep.subr.bf16.mxu0 0
      %576 = vmatpush1.bf16.msra.mxu0 0
      %577 = vmatprep.subr.bf16.mxu0 0
      %578 = vmatpush1.bf16.msra.mxu0 0
      %579 = vmatprep.subr.bf16.mxu0 0
      %580 = vmatpush1.bf16.msra.mxu0 0
      %581 = vmatprep.subr.bf16.mxu0 0
      %582 = vmatpush1.bf16.msra.mxu0 0
      %583 = vmatprep.subr.bf16.mxu0 0
      %584 = vmatpush1.bf16.msra.mxu0 0
      %585 = vmatprep.subr.bf16.mxu0 0
      %586 = vmatpush1.bf16.msra.mxu0 0
      %587 = vmatprep.subr.bf16.mxu0 0
      %588 = vmatpush1.bf16.msra.mxu0 0
      %589 = vmatprep.mubr.bf16.mxu0 0
      %590 = vmatmul.mubr.bf16.gmra.mrb[0].mxu0 %v546
      %v591 = vpop.f32.mrb[0].mxu0
      %v592 = vadd.f32 0.0, %v591
      %v593 = vpop.f32.mrb[0].mxu0
      %v594 = vpop.f32.mrb[0].mxu0
      %v595 = vadd.f32 0.0, %v594
      %v596 = vpop.f32.mrb[0].mxu0
      %597 = vmatprep.mubr.bf16.mxu0 0
      %598 = vmatmul.mubr.bf16.gmra.mrb[0].mxu0 %v549
      %v599 = vpop.f32.mrb[0].mxu0
      %v600 = vadd.f32 0.0, %v599
      %v601 = vpop.f32.mrb[0].mxu0
      %v602 = vpop.f32.mrb[0].mxu0
      %v603 = vadd.f32 0.0, %v602
      %v604 = vpop.f32.mrb[0].mxu0
      %605 = vmatprep.mubr.bf16.mxu0 0
      %606 = vmatmul.mubr.bf16.gmra.mrb[0].mxu0 %v552
      %v607 = vpop.f32.mrb[0].mxu0
      %v608 = vadd.f32 0.0, %v607
      %v609 = vpop.f32.mrb[0].mxu0
      %v610 = vpop.f32.mrb[0].mxu0
      %v611 = vadd.f32 0.0, %v610
      %v612 = vpop.f32.mrb[0].mxu0
      %613 = vmatprep.mubr.bf16.mxu0 0
      %614 = vmatmul.mubr.bf16.gmra.mrb[0].mxu0 %v555
      %v615 = vpop.f32.mrb[0].mxu0
      %v616 = vadd.f32 0.0, %v615
      %v617 = vpop.f32.mrb[0].mxu0
      %v618 = vpop.f32.mrb[0].mxu0
      %v619 = vadd.f32 0.0, %v618
      %v620 = vpop.f32.mrb[0].mxu0
      %621 = vdwg.mxu0
      %v622 = vadd.f32 %v477, %v592
      %v623 = vadd.f32 %v480, %v595
      %v624 = vadd.f32 %v485, %v600
      %v625 = vadd.f32 %v488, %v603
      %v626 = vadd.f32 %v493, %v608
      %v627 = vadd.f32 %v496, %v611
      %v628 = vadd.f32 %v501, %v616
      %v629 = vadd.f32 %v504, %v619
      %v630 = vld [vmem:[%s507] sm:$0xf]
      %v631 = vld [vmem:[%s507 + $0x4] sm:$0x1]
      %v632 = vld [vmem:[%s507 + $0x8] sm:$0xf]
      %v633 = vld [vmem:[%s507 + $0xc] sm:$0x1]
      %v634 = vld [vmem:[%s507 + $0x10] sm:$0xf]
      %v635 = vld [vmem:[%s507 + $0x14] sm:$0x1]
      %v636 = vld [vmem:[%s507 + $0x18] sm:$0xf]
      %v637 = vld [vmem:[%s507 + $0x1c] sm:$0x1]
      %v638 = vld [vmem:[%s507 + $0x20] sm:$0xf]
      %v639 = vld [vmem:[%s507 + $0x24] sm:$0x1]
      %v640 = vld [vmem:[%s507 + $0x28] sm:$0xf]
      %v641 = vld [vmem:[%s507 + $0x2c] sm:$0x1]
      %v642 = vld [vmem:[%s507 + $0x30] sm:$0xf]
      %v643 = vld [vmem:[%s507 + $0x34] sm:$0x1]
      %v644 = vld [vmem:[%s507 + $0x38] sm:$0xf]
      %v645 = vld [vmem:[%s507 + $0x3c] sm:$0x1]
      %v647 = vshrl.u32 %v630, 16
      %v649 = vrot.slane %v647, 4
      %v650 = vshll.u32 %v630, 16
      %v652 = vrot.slane %v650, 5
      %v653 = vor.u32 %v649, %v652
      %v654 = vrot.slane %v653, 4
      %v656 = vshll.u32 %v631, 16
      %v658 = vrot.slane %v656, 5
      %v659 = vsel %vm192, %v654, %v658
      %v661 = vshrl.u32 %v632, 16
      %v663 = vrot.slane %v661, 4
      %v664 = vshll.u32 %v632, 16
      %v666 = vrot.slane %v664, 5
      %v667 = vor.u32 %v663, %v666
      %v668 = vrot.slane %v667, 4
      %v670 = vshll.u32 %v633, 16
      %v672 = vrot.slane %v670, 5
      %v673 = vsel %vm192, %v668, %v672
      %v675 = vshrl.u32 %v634, 16
      %v677 = vrot.slane %v675, 4
      %v678 = vshll.u32 %v634, 16
      %v680 = vrot.slane %v678, 5
      %v681 = vor.u32 %v677, %v680
      %v682 = vrot.slane %v681, 4
      %v684 = vshll.u32 %v635, 16
      %v686 = vrot.slane %v684, 5
      %v687 = vsel %vm192, %v682, %v686
      %v689 = vshrl.u32 %v636, 16
      %v691 = vrot.slane %v689, 4
      %v692 = vshll.u32 %v636, 16
      %v694 = vrot.slane %v692, 5
      %v695 = vor.u32 %v691, %v694
      %v696 = vrot.slane %v695, 4
      %v698 = vshll.u32 %v637, 16
      %v700 = vrot.slane %v698, 5
      %v701 = vsel %vm192, %v696, %v700
      %v703 = vshrl.u32 %v638, 16
      %v705 = vrot.slane %v703, 4
      %v706 = vshll.u32 %v638, 16
      %v708 = vrot.slane %v706, 5
      %v709 = vor.u32 %v705, %v708
      %v710 = vrot.slane %v709, 4
      %v712 = vshll.u32 %v639, 16
      %v714 = vrot.slane %v712, 5
      %v715 = vsel %vm192, %v710, %v714
      %v717 = vshrl.u32 %v640, 16
      %v719 = vrot.slane %v717, 4
      %v720 = vshll.u32 %v640, 16
      %v722 = vrot.slane %v720, 5
      %v723 = vor.u32 %v719, %v722
      %v724 = vrot.slane %v723, 4
      %v726 = vshll.u32 %v641, 16
      %v728 = vrot.slane %v726, 5
      %v729 = vsel %vm192, %v724, %v728
      %v731 = vshrl.u32 %v642, 16
      %v733 = vrot.slane %v731, 4
      %v734 = vshll.u32 %v642, 16
      %v736 = vrot.slane %v734, 5
      %v737 = vor.u32 %v733, %v736
      %v738 = vrot.slane %v737, 4
      %v740 = vshll.u32 %v643, 16
      %v742 = vrot.slane %v740, 5
      %v743 = vsel %vm192, %v738, %v742
      %v745 = vshrl.u32 %v644, 16
      %v747 = vrot.slane %v745, 4
      %v748 = vshll.u32 %v644, 16
      %v750 = vrot.slane %v748, 5
      %v751 = vor.u32 %v747, %v750
      %v752 = vrot.slane %v751, 4
      %v754 = vshll.u32 %v645, 16
      %v756 = vrot.slane %v754, 5
      %v757 = vsel %vm192, %v752, %v756
      %s758 = scalar_lea.vmem %s1, 24
      %v759 = vld [vmem:[%s758] sm:$0xf]
      %v760 = vld [vmem:[%s758 + $0x4] sm:$0xf]
      %v761 = vunpack.c.l.b16 %v659
      %v762 = vunpack.c.l.b16 %v673
      %v763 = vunpack.c.l.b16 %v687
      %v764 = vunpack.c.l.b16 %v701
      %v765 = vunpack.c.l.b16 %v715
      %v766 = vunpack.c.l.b16 %v729
      %v767 = vunpack.c.l.b16 %v743
      %v768 = vunpack.c.l.b16 %v757
      %v769 = vpack.c.b16 %v762, %v761
      %v770 = vpack.c.b16 %v764, %v763
      %v771 = vpack.c.b16 %v766, %v765
      %v772 = vpack.c.b16 %v768, %v767
      %v775 = vunpack.c.l.b16 %v759
      %v776 = vunpack.c.l.b16 %v760
      %v777 = vpack.c.b16 %v776, %v775
      %v780 = vsel %vm326, %v769, 0
      %v783 = vsel %vm326, %v770, 0
      %v786 = vsel %vm326, %v771, 0
      %v789 = vsel %vm326, %v772, 0
      %791 = vmatprep.subr.bf16.mxu0 0
      %792 = vmatpush1.bf16.msra.mxu0 %v777
      %793 = vmatprep.subr.bf16.mxu0 0
      %794 = vmatpush1.bf16.msra.mxu0 0
      %795 = vmatprep.subr.bf16.mxu0 0
      %796 = vmatpush1.bf16.msra.mxu0 0
      %797 = vmatprep.subr.bf16.mxu0 0
      %798 = vmatpush1.bf16.msra.mxu0 0
      %799 = vmatprep.subr.bf16.mxu0 0
      %800 = vmatpush1.bf16.msra.mxu0 0
      %801 = vmatprep.subr.bf16.mxu0 0
      %802 = vmatpush1.bf16.msra.mxu0 0
      %803 = vmatprep.subr.bf16.mxu0 0
      %804 = vmatpush1.bf16.msra.mxu0 0
      %805 = vmatprep.subr.bf16.mxu0 0
      %806 = vmatpush1.bf16.msra.mxu0 0
      %807 = vmatprep.subr.bf16.mxu0 0
      %808 = vmatpush1.bf16.msra.mxu0 0
      %809 = vmatprep.subr.bf16.mxu0 0
      %810 = vmatpush1.bf16.msra.mxu0 0
      %811 = vmatprep.subr.bf16.mxu0 0
      %812 = vmatpush1.bf16.msra.mxu0 0
      %813 = vmatprep.subr.bf16.mxu0 0
      %814 = vmatpush1.bf16.msra.mxu0 0
      %815 = vmatprep.subr.bf16.mxu0 0
      %816 = vmatpush1.bf16.msra.mxu0 0
      %817 = vmatprep.subr.bf16.mxu0 0
      %818 = vmatpush1.bf16.msra.mxu0 0
      %819 = vmatprep.subr.bf16.mxu0 0
      %820 = vmatpush1.bf16.msra.mxu0 0
      %821 = vmatprep.subr.bf16.mxu0 0
      %822 = vmatpush1.bf16.msra.mxu0 0
      %823 = vmatprep.mubr.bf16.mxu0 0
      %824 = vmatmul.mubr.bf16.gmra.mrb[0].mxu0 %v780
      %v825 = vpop.f32.mrb[0].mxu0
      %v826 = vadd.f32 0.0, %v825
      %v827 = vpop.f32.mrb[0].mxu0
      %v828 = vpop.f32.mrb[0].mxu0
      %v829 = vadd.f32 0.0, %v828
      %v830 = vpop.f32.mrb[0].mxu0
      %831 = vmatprep.mubr.bf16.mxu0 0
      %832 = vmatmul.mubr.bf16.gmra.mrb[0].mxu0 %v783
      %v833 = vpop.f32.mrb[0].mxu0
      %v834 = vadd.f32 0.0, %v833
      %v835 = vpop.f32.mrb[0].mxu0
      %v836 = vpop.f32.mrb[0].mxu0
      %v837 = vadd.f32 0.0, %v836
      %v838 = vpop.f32.mrb[0].mxu0
      %839 = vmatprep.mubr.bf16.mxu0 0
      %840 = vmatmul.mubr.bf16.gmra.mrb[0].mxu0 %v786
      %v841 = vpop.f32.mrb[0].mxu0
      %v842 = vadd.f32 0.0, %v841
      %v843 = vpop.f32.mrb[0].mxu0
      %v844 = vpop.f32.mrb[0].mxu0
      %v845 = vadd.f32 0.0, %v844
      %v846 = vpop.f32.mrb[0].mxu0
      %847 = vmatprep.mubr.bf16.mxu0 0
      %848 = vmatmul.mubr.bf16.gmra.mrb[0].mxu0 %v789
      %v849 = vpop.f32.mrb[0].mxu0
      %v850 = vadd.f32 0.0, %v849
      %v851 = vpop.f32.mrb[0].mxu0
      %v852 = vpop.f32.mrb[0].mxu0
      %v853 = vadd.f32 0.0, %v852
      %v854 = vpop.f32.mrb[0].mxu0
      %855 = vdwg.mxu0
      %v856 = vadd.f32 %v622, %v826
      %v857 = vadd.f32 %v623, %v829
      %v858 = vadd.f32 %v624, %v834
      %v859 = vadd.f32 %v625, %v837
      %v860 = vadd.f32 %v626, %v842
      %v861 = vadd.f32 %v627, %v845
      %v862 = vadd.f32 %v628, %v850
      %v863 = vadd.f32 %v629, %v853
      %v864 = vld [vmem:[%s2] sm:$0x1]
      %v866 = vlaneseq
      %v867 = vshrl.u32 %v866, 7
      %v868 = vsub.s32 0, %v867
      %v869 = vrot.slane %v864, %v868
      %v871 = vadd.f32 %v856, %v869
      %v872 = vadd.f32 %v857, %v869
      %v873 = vadd.f32 %v858, %v869
      %v874 = vadd.f32 %v859, %v869
      %v875 = vadd.f32 %v860, %v869
      %v876 = vadd.f32 %v861, %v869
      %v877 = vadd.f32 %v862, %v869
      %v878 = vadd.f32 %v863, %v869
      %v879 = vadd.f32 %v871, %v872
      %v880 = vadd.f32 %v879, %v873
      %v881 = vadd.f32 %v880, %v874
      %v882 = vadd.f32 %v881, %v875
      %v883 = vadd.f32 %v882, %v876
      %v884 = vadd.f32 %v883, %v877
      %v885 = vadd.f32 %v884, %v878
      %v886 = vrot.slane %v885, 4
      %v887 = vadd.f32 %v885, %v886
      %v888 = vrot.slane %v887, 2
      %v889 = vadd.f32 %v887, %v888
      %v890 = vrot.slane %v889, 1
      %v891 = vadd.f32 %v889, %v890
      %v892 = vmul.f32 %v891, 0.015625
      %v893 = vmul.f32 %v871, %v871
      %v894 = vmul.f32 %v872, %v872
      %v895 = vmul.f32 %v873, %v873
      %v896 = vmul.f32 %v874, %v874
      %v897 = vmul.f32 %v875, %v875
      %v898 = vmul.f32 %v876, %v876
      %v899 = vmul.f32 %v877, %v877
      %v900 = vmul.f32 %v878, %v878
      %v901 = vadd.f32 %v893, %v894
      %v902 = vadd.f32 %v901, %v895
      %v903 = vadd.f32 %v902, %v896
      %v904 = vadd.f32 %v903, %v897
      %v905 = vadd.f32 %v904, %v898
      %v906 = vadd.f32 %v905, %v899
      %v907 = vadd.f32 %v906, %v900
      %v908 = vrot.slane %v907, 4
      %v909 = vadd.f32 %v907, %v908
      %v910 = vrot.slane %v909, 2
      %v911 = vadd.f32 %v909, %v910
      %v912 = vrot.slane %v911, 1
      %v913 = vadd.f32 %v911, %v912
      %v914 = vmul.f32 %v913, 0.015625
      %v915 = vmul.f32 %v892, %v892
      %v916 = vsub.f32 %v914, %v915
      %v917 = vmax.f32 %v916, 0.0
      %v918 = vsub.f32 %v871, %v892
      %v919 = vsub.f32 %v872, %v892
      %v920 = vsub.f32 %v873, %v892
      %v921 = vsub.f32 %v874, %v892
      %v922 = vsub.f32 %v875, %v892
      %v923 = vsub.f32 %v876, %v892
      %v924 = vsub.f32 %v877, %v892
      %v925 = vsub.f32 %v878, %v892
      %v926 = vadd.f32 %v917, 1e-08
      %v927 = vrsqrt.pop %v926
      %v928 = vmul.f32 %v918, %v927
      %v929 = vmul.f32 %v919, %v927
      %v930 = vmul.f32 %v920, %v927
      %v931 = vmul.f32 %v921, %v927
      %v932 = vmul.f32 %v922, %v927
      %v933 = vmul.f32 %v923, %v927
      %v934 = vmul.f32 %v924, %v927
      %v935 = vmul.f32 %v925, %v927
      %vm936 = vcmp.gt.f32.partialorder %v928, 0.0
      %vm937 = vcmp.gt.f32.partialorder %v929, 0.0
      %vm938 = vcmp.gt.f32.partialorder %v930, 0.0
      %vm939 = vcmp.gt.f32.partialorder %v931, 0.0
      %vm940 = vcmp.gt.f32.partialorder %v932, 0.0
      %vm941 = vcmp.gt.f32.partialorder %v933, 0.0
      %vm942 = vcmp.gt.f32.partialorder %v934, 0.0
      %vm943 = vcmp.gt.f32.partialorder %v935, 0.0
      %v944 = vmul.f32 %v928, 0.2
      %v945 = vmul.f32 %v929, 0.2
      %v946 = vmul.f32 %v930, 0.2
      %v947 = vmul.f32 %v931, 0.2
      %v948 = vmul.f32 %v932, 0.2
      %v949 = vmul.f32 %v933, 0.2
      %v950 = vmul.f32 %v934, 0.2
      %v951 = vmul.f32 %v935, 0.2
      %v952 = vsel %vm936, %v928, %v944
      %v953 = vsel %vm937, %v929, %v945
      %v954 = vsel %vm938, %v930, %v946
      %v955 = vsel %vm939, %v931, %v947
      %v956 = vsel %vm940, %v932, %v948
      %v957 = vsel %vm941, %v933, %v949
      %v958 = vsel %vm942, %v934, %v950
      %v959 = vsel %vm943, %v935, %v951
      %v960 = vpack.c.bf16 %v953, %v952
      %v961 = vpack.c.bf16 %v955, %v954
      %v962 = vpack.c.bf16 %v957, %v956
      %v963 = vpack.c.bf16 %v959, %v958
      %v968 = vunpack.c.l.b16 %v960
      %v969 = vunpack.c.h.b16 %v960
      %v970 = vunpack.c.l.b16 %v961
      %v971 = vunpack.c.h.b16 %v961
      %v972 = vunpack.c.l.b16 %v962
      %v973 = vunpack.c.h.b16 %v962
      %v974 = vunpack.c.l.b16 %v963
      %v975 = vunpack.c.h.b16 %v963
      %v976 = vpack.c.b16 %v968, %v968
      %v977 = vpack.c.b16 %v969, %v969
      %v978 = vpack.c.b16 %v970, %v970
      %v979 = vpack.c.b16 %v971, %v971
      %v980 = vpack.c.b16 %v972, %v972
      %v981 = vpack.c.b16 %v973, %v973
      %v982 = vpack.c.b16 %v974, %v974
      %v983 = vpack.c.b16 %v975, %v975
      %992 = vst [vmem:[%s170] sm:$0xf] %v976
      %993 = vst [vmem:[%s170 + $0x4] sm:$0xf] %v977
      %994 = vst [vmem:[%s170 + $0x8] sm:$0xf] %v978
      %995 = vst [vmem:[%s170 + $0xc] sm:$0xf] %v979
      %996 = vst [vmem:[%s170 + $0x10] sm:$0xf] %v980
      %997 = vst [vmem:[%s170 + $0x14] sm:$0xf] %v981
      %998 = vst [vmem:[%s170 + $0x18] sm:$0xf] %v982
      %999 = vst [vmem:[%s170 + $0x1c] sm:$0xf] %v983
      %p1000 = scmp.lt.s32.totalorder %s14, 1
      %s1001 = scalar_select %p1000, %s14, 1
      %s1002 = smul.addr %s1001, 8
      %s1003 = smul.addr %s1002, 4
      %s1004 = scalar_lea.vmem %s3, %s1003
      // Predicated region
      $region33: #{_lambda_.3} parent=31 // pred_check
        %p1005 = pneg %p100
      $region34: #{_lambda_.3} parent=31 // pred_check_branch
        %1007 = sbr.rel (%p1005) target = $region36
      $region35: #{_lambda_.3} parent=31 // pred_region
        _
      $region36: #{_lambda_.3} parent=31 // pred_fallthru
        _
    $region32: #{_lambda_.3} parent=5 // pred_fallthru
      _
    %p1008 = scmp.le.s32.totalorder 2, %s9
    // Predicated region
    $region37: #{_lambda_.3} parent=5 // pred_check
      %p1009 = pneg %p1008
    $region38: #{_lambda_.3} parent=5 // pred_check_branch
      %1011 = sbr.rel (%p1009) target = $region40
    $region39: #{_lambda_.3} parent=5 // pred_region
      %s1012 = ssub.s32 %s9, 2
      // Predicated region
      $region41: #{_lambda_.3} parent=39 // pred_check
        %p1013 = pneg %p106
      $region42: #{_lambda_.3} parent=39 // pred_check_branch
        %1015 = sbr.rel (%p1013) target = $region44
      $region43: #{_lambda_.3} parent=39 // pred_region
        %p1016 = scmp.lt.s32.totalorder %s15, 1
        %s1017 = scalar_select %p1016, %s15, 1
        %s1018 = smul.addr %s1017, 8
        %s1019 = smul.addr %s1018, 4
        %s1020 = scalar_lea.vmem %s3, %s1019
      $region44: #{_lambda_.3} parent=39 // pred_fallthru
        _
    $region40: #{_lambda_.3} parent=5 // pred_fallthru
      _
  $region6: #{_lambda_.3} parent=0 // loop_footer
    %s13 = sadd.s32 1, %s9
  $region7: #{_lambda_.3} parent=0 // loop_footer_branch
    %8 = sbr.rel target = $region3
  $region8: #{_lambda_.3} parent=0 // loop_exit
    _

// kernel: _lambda_.4
$region0: #{_lambda_.4}
  #allocation0 [shape = 'u32[]', space=smem, size = 0x4, offset = 0x4, fixed_abs, tag = 'smem constant byte address 0x4 - core index']
  #allocation1 [shape = 'u32[144,128]{1,0:T(1,128)}', space=vmem, size = 0x12000, scoped, tag = 'internal scratch']
  %s0 = inlined_call_operand.vmem [shape: bf16[2,5,5,512], index: 0, kind: input, shape index: {}]
  %s1 = inlined_call_operand.vmem [shape: bf16[2,2,512,128], index: 1, kind: input, shape index: {}]
  %s2 = inlined_call_operand.vmem [shape: f32[1,128], index: 2, kind: input, shape index: {}]
  %s3 = inlined_call_operand.vmem [shape: bf16[2,16,128], index: 3, kind: output, shape index: {}]
  %s4 = sld [smem:[#allocation0]]
  $region45: #{_lambda_.4} parent=0
    _
  %s6 = ssub.s32 1, %s4
  %s7 = scalar_select 0, %s6, %s4
  loop: start=0, step=1, limit=4
  $region2: #{_lambda_.4} parent=0 // loop_pre_header
    _
  $region3: #{_lambda_.4} parent=0 // loop_header
    %s9 = sphi 0, %s13
    %p10 = scmp.ge.s32.totalorder %s9, 4
    %s19 = sphi 0, %s21
    %s22 = sphi 0, %s19
    %s23 = sphi 0, %s22
    %s39 = sphi 0, %s23
    %s43 = sphi 0, %s43
    %s45 = sphi 0, %s43
    %s46 = sphi 0, %s45
    %s60 = sphi 0, %s46
    %s64 = sphi 0, %s64
    %s66 = sphi 0, %s64
    %s67 = sphi 0, %s66
    %s81 = sphi 0, %s67
    %s87 = sphi 0, %s89
    %s90 = sphi 0, %s87
    %s91 = sphi 0, %s90
    %s107 = sphi 0, %s91
  $region4: #{_lambda_.4} parent=0 // loop_header_branch
    %12 = sbr.rel (%p10) target = $region8
  $region5: #{_lambda_.4} parent=0 // loop_body
    %s14 = ssub.s32 %s9, 1
    %s15 = ssub.s32 %s9, 2
    %s16 = sadd.s32 %s9, 1
    %s17 = ssub.s32 %s9, %s16
    %p18 = scmp.eq.s32.totalorder %s17, 0
    %s20 = sadd.s32 %s19, 1
    %s21 = scalar_select %p18, %s19, %s20
    %p24 = pneg %p18
    %p25 = scmp.eq.s32.totalorder %s9, 1
    %p26 = por %p24, %p25
    %p27 = scmp.ne.s32.totalorder %s19, %s22
    %p28 = scmp.eq.s32.totalorder %s9, 0
    %p29 = por %p27, %p28
    %p30 = scmp.ne.s32.totalorder %s19, %s22
    %p31 = scmp.eq.s32.totalorder %s14, 1
    %p32 = por %p30, %p31
    %p33 = scmp.ne.s32.totalorder %s22, %s23
    %p34 = scmp.eq.s32.totalorder %s14, 0
    %p35 = por %p33, %p34
    %p36 = scmp.ne.s32.totalorder %s22, %s23
    %p37 = scmp.eq.s32.totalorder %s15, 1
    %p38 = por %p36, %p37
    %p40 = scmp.ne.s32.totalorder %s23, %s39
    %p41 = scmp.eq.s32.totalorder %s15, 0
    %p42 = por %p40, %p41
    %s44 = sadd.s32 %s43, 1
    %p47 = scmp.eq.s32.totalorder %s9, 1
    %p48 = scmp.ne.s32.totalorder %s43, %s45
    %p49 = scmp.eq.s32.totalorder %s9, 0
    %p50 = por %p48, %p49
    %p51 = scmp.ne.s32.totalorder %s43, %s45
    %p52 = scmp.eq.s32.totalorder %s14, 1
    %p53 = por %p51, %p52
    %p54 = scmp.ne.s32.totalorder %s45, %s46
    %p55 = scmp.eq.s32.totalorder %s14, 0
    %p56 = por %p54, %p55
    %p57 = scmp.ne.s32.totalorder %s45, %s46
    %p58 = scmp.eq.s32.totalorder %s15, 1
    %p59 = por %p57, %p58
    %p61 = scmp.ne.s32.totalorder %s46, %s60
    %p62 = scmp.eq.s32.totalorder %s15, 0
    %p63 = por %p61, %p62
    %s65 = sadd.s32 %s64, 1
    %p68 = scmp.eq.s32.totalorder %s9, 1
    %p69 = scmp.ne.s32.totalorder %s64, %s66
    %p70 = scmp.eq.s32.totalorder %s9, 0
    %p71 = por %p69, %p70
    %p72 = scmp.ne.s32.totalorder %s64, %s66
    %p73 = scmp.eq.s32.totalorder %s14, 1
    %p74 = por %p72, %p73
    %p75 = scmp.ne.s32.totalorder %s66, %s67
    %p76 = scmp.eq.s32.totalorder %s14, 0
    %p77 = por %p75, %p76
    %p78 = scmp.ne.s32.totalorder %s66, %s67
    %p79 = scmp.eq.s32.totalorder %s15, 1
    %p80 = por %p78, %p79
    %p82 = scmp.ne.s32.totalorder %s67, %s81
    %p83 = scmp.eq.s32.totalorder %s15, 0
    %p84 = por %p82, %p83
    %s85 = ssub.s32 %s9, %s16
    %p86 = scmp.eq.s32.totalorder %s85, 0
    %s88 = sadd.s32 %s87, 1
    %s89 = scalar_select %p86, %s87, %s88
    %p92 = pneg %p86
    %p93 = scmp.eq.s32.totalorder %s9, 1
    %p94 = por %p92, %p93
    %p95 = scmp.ne.s32.totalorder %s87, %s90
    %p96 = scmp.eq.s32.totalorder %s9, 0
    %p97 = por %p95, %p96
    %p98 = scmp.ne.s32.totalorder %s87, %s90
    %p99 = scmp.eq.s32.totalorder %s14, 1
    %p100 = por %p98, %p99
    %p101 = scmp.ne.s32.totalorder %s90, %s91
    %p102 = scmp.eq.s32.totalorder %s14, 0
    %p103 = por %p101, %p102
    %p104 = scmp.ne.s32.totalorder %s90, %s91
    %p105 = scmp.eq.s32.totalorder %s15, 1
    %p106 = por %p104, %p105
    %p108 = scmp.ne.s32.totalorder %s91, %s107
    %p109 = scmp.eq.s32.totalorder %s15, 0
    %p110 = por %p108, %p109
    %p111 = scmp.le.s32.totalorder 1, %s9
    %p112 = scmp.lt.s32.totalorder %s9, 3
    %p113 = pnand %p111, %p112
    %p114 = pneg %p113
    // Predicated region
    $region9: #{_lambda_.4} parent=5 // pred_check
      _
    $region10: #{_lambda_.4} parent=5 // pred_check_branch
      %116 = sbr.rel (%p113) target = $region12
    $region11: #{_lambda_.4} parent=5 // pred_region
      %s117 = ssub.s32 %s9, 1
      // Predicated region
      $region13: #{_lambda_.4} parent=11 // pred_check
        %p118 = pneg %p56
      $region14: #{_lambda_.4} parent=11 // pred_check_branch
        %120 = sbr.rel (%p118) target = $region16
      $region15: #{_lambda_.4} parent=11 // pred_region
        _
      $region16: #{_lambda_.4} parent=11 // pred_fallthru
        _
      // Predicated region
      $region17: #{_lambda_.4} parent=11 // pred_check
        %p121 = pneg %p77
      $region18: #{_lambda_.4} parent=11 // pred_check_branch
        %123 = sbr.rel (%p121) target = $region20
      $region19: #{_lambda_.4} parent=11 // pred_region
        _
      $region20: #{_lambda_.4} parent=11 // pred_fallthru
        _
    $region12: #{_lambda_.4} parent=5 // pred_fallthru
      _
    %p124 = scmp.lt.s32.totalorder %s9, 2
    // Predicated region
    $region21: #{_lambda_.4} parent=5 // pred_check
      %p125 = pneg %p124
    $region22: #{_lambda_.4} parent=5 // pred_check_branch
      %127 = sbr.rel (%p125) target = $region24
    $region23: #{_lambda_.4} parent=5 // pred_region
      // Predicated region
      $region25: #{_lambda_.4} parent=23 // pred_check
        %p128 = pneg %p29
      $region26: #{_lambda_.4} parent=23 // pred_check_branch
        %130 = sbr.rel (%p128) target = $region28
      $region27: #{_lambda_.4} parent=23 // pred_region
        %p131 = scmp.lt.s32.totalorder %s9, 1
        %s132 = scalar_select %p131, %s9, 1
        %s133 = smul.addr %s132, 20
        %s134 = smul.addr %s133, 4
        %s135 = scalar_lea.vmem %s0, %s134
      $region28: #{_lambda_.4} parent=23 // pred_fallthru
        _
    $region24: #{_lambda_.4} parent=5 // pred_fallthru
      _
    %p136 = scmp.le.s32.totalorder 1, %s9
    %p137 = scmp.lt.s32.totalorder %s9, 3
    %p138 = pnand %p136, %p137
    %p139 = pneg %p138
    // Predicated region
    $region29: #{_lambda_.4} parent=5 // pred_check
      _
    $region30: #{_lambda_.4} parent=5 // pred_check_branch
      %141 = sbr.rel (%p138) target = $region32
    $region31: #{_lambda_.4} parent=5 // pred_region
      %s142 = ssub.s32 %s9, 1
      %p143 = scmp.lt.s32.totalorder %s14, 1
      %s144 = scalar_select %p143, %s14, 1
      %s145 = smul.addr %s144, 20
      %s146 = smul.addr %s145, 4
      %s147 = scalar_lea.vmem %s0, %s146
      %p148 = pneg %p35
      %p149 = pneg %p32
      %p150 = pneg %p56
      %p151 = pneg %p53
      %p152 = pneg %p77
      %p153 = pneg %p74
      %p154 = pneg %p103
      %p155 = pneg %p100
      %p156 = scmp.lt.s32.totalorder %s14, 1
      %s157 = scalar_select %p156, %s14, 1
      %s158 = smul.addr %s157, 2
      %s159 = smul.addr %s158, 4
      %s160 = scalar_lea.vmem %s3, %s159
      %p161 = scmp.lt.s32.totalorder %s14, 1
      %s162 = scalar_select %p161, %s14, 1
      %s163 = smul.addr %s162, 20
      %s164 = smul.addr %s163, 4
      %s165 = scalar_lea.vmem %s0, %s164
      %p166 = scmp.lt.s32.totalorder %s14, 1
      %s167 = scalar_select %p166, %s14, 1
      %s168 = smul.addr %s167, 2
      %s169 = smul.addr %s168, 4
      %s170 = scalar_lea.vmem %s3, %s169
      %v172 = vld [vmem:[%s165] sm:$0x33]
      %v173 = vld [vmem:[%s165 + $0x8] sm:$0x33]
      %v174 = vld [vmem:[%s165 + $0x10] sm:$0x33]
      %v175 = vld [vmem:[%s165 + $0x18] sm:$0x33]
      %v176 = vld [vmem:[%s165 + $0x20] sm:$0x33]
      %v177 = vld [vmem:[%s165 + $0x28] sm:$0x33]
      %v178 = vld [vmem:[%s165 + $0x30] sm:$0x33]
      %v179 = vld [vmem:[%s165 + $0x38] sm:$0x33]
      %v189 = vunpack.c.l.s4 1983009808
      %v190 = vunpack.c.0.s8 %v189
      %v191 = vlaneseq
      %v192 = vshrl.u32 %v191, 7
      %v193 = vsub.s32 %v190, %v192
      %v194 = vrot.slane %v172, %v193
      %v196 = vunpack.c.l.s4 1983009808
      %v197 = vunpack.c.0.s8 %v196
      %v198 = vlaneseq
      %v199 = vshrl.u32 %v198, 7
      %v200 = vsub.s32 %v197, %v199
      %v201 = vrot.slane %v173, %v200
      %v202 = vcombine.low %v194, %v201
      %v204 = vunpack.c.l.s4 1983009808
      %v205 = vunpack.c.0.s8 %v204
      %v206 = vlaneseq
      %v207 = vshrl.u32 %v206, 7
      %v208 = vsub.s32 %v205, %v207
      %v209 = vrot.slane %v174, %v208
      %v211 = vunpack.c.l.s4 1983009808
      %v212 = vunpack.c.0.s8 %v211
      %v213 = vlaneseq
      %v214 = vshrl.u32 %v213, 7
      %v215 = vsub.s32 %v212, %v214
      %v216 = vrot.slane %v175, %v215
      %v217 = vcombine.low %v209, %v216
      %v219 = vunpack.c.l.s4 1983009808
      %v220 = vunpack.c.0.s8 %v219
      %v221 = vlaneseq
      %v222 = vshrl.u32 %v221, 7
      %v223 = vsub.s32 %v220, %v222
      %v224 = vrot.slane %v176, %v223
      %v226 = vunpack.c.l.s4 1983009808
      %v227 = vunpack.c.0.s8 %v226
      %v228 = vlaneseq
      %v229 = vshrl.u32 %v228, 7
      %v230 = vsub.s32 %v227, %v229
      %v231 = vrot.slane %v177, %v230
      %v232 = vcombine.low %v224, %v231
      %v234 = vunpack.c.l.s4 1983009808
      %v235 = vunpack.c.0.s8 %v234
      %v236 = vlaneseq
      %v237 = vshrl.u32 %v236, 7
      %v238 = vsub.s32 %v235, %v237
      %v239 = vrot.slane %v178, %v238
      %v241 = vunpack.c.l.s4 1983009808
      %v242 = vunpack.c.0.s8 %v241
      %v243 = vlaneseq
      %v244 = vshrl.u32 %v243, 7
      %v245 = vsub.s32 %v242, %v244
      %v246 = vrot.slane %v179, %v245
      %v247 = vcombine.low %v239, %v246
      %v248 = vld [vmem:[%s1] sm:$0xf]
      %v249 = vld [vmem:[%s1 + $0x4] sm:$0xf]
      %v250 = vld [vmem:[%s1 + $0x8] sm:$0xf]
      %v251 = vld [vmem:[%s1 + $0xc] sm:$0xf]
      %v252 = vld [vmem:[%s1 + $0x10] sm:$0xf]
      %v253 = vld [vmem:[%s1 + $0x14] sm:$0xf]
      %v254 = vld [vmem:[%s1 + $0x18] sm:$0xf]
      %v255 = vld [vmem:[%s1 + $0x1c] sm:$0xf]
      %v256 = vld [vmem:[%s1 + $0x20] sm:$0xf]
      %v257 = vld [vmem:[%s1 + $0x24] sm:$0xf]
      %v258 = vld [vmem:[%s1 + $0x28] sm:$0xf]
      %v259 = vld [vmem:[%s1 + $0x2c] sm:$0xf]
      %v260 = vld [vmem:[%s1 + $0x30] sm:$0xf]
      %v261 = vld [vmem:[%s1 + $0x34] sm:$0xf]
      %v262 = vld [vmem:[%s1 + $0x38] sm:$0xf]
      %v263 = vld [vmem:[%s1 + $0x3c] sm:$0xf]
      %v264 = vld [vmem:[%s1 + $0x40] sm:$0xf]
      %v265 = vld [vmem:[%s1 + $0x44] sm:$0xf]
      %v266 = vld [vmem:[%s1 + $0x48] sm:$0xf]
      %v267 = vld [vmem:[%s1 + $0x4c] sm:$0xf]
      %v268 = vld [vmem:[%s1 + $0x50] sm:$0xf]
      %v269 = vld [vmem:[%s1 + $0x54] sm:$0xf]
      %v270 = vld [vmem:[%s1 + $0x58] sm:$0xf]
      %v271 = vld [vmem:[%s1 + $0x5c] sm:$0xf]
      %v272 = vld [vmem:[%s1 + $0x60] sm:$0xf]
      %v273 = vld [vmem:[%s1 + $0x64] sm:$0xf]
      %v274 = vld [vmem:[%s1 + $0x68] sm:$0xf]
      %v275 = vld [vmem:[%s1 + $0x6c] sm:$0xf]
      %v276 = vld [vmem:[%s1 + $0x70] sm:$0xf]
      %v277 = vld [vmem:[%s1 + $0x74] sm:$0xf]
      %v278 = vld [vmem:[%s1 + $0x78] sm:$0xf]
      %v279 = vld [vmem:[%s1 + $0x7c] sm:$0xf]
      %v280 = vld [vmem:[%s1 + $0x80] sm:$0xf]
      %v281 = vld [vmem:[%s1 + $0x84] sm:$0xf]
      %v282 = vld [vmem:[%s1 + $0x88] sm:$0xf]
      %v283 = vld [vmem:[%s1 + $0x8c] sm:$0xf]
      %v284 = vld [vmem:[%s1 + $0x90] sm:$0xf]
      %v285 = vld [vmem:[%s1 + $0x94] sm:$0xf]
      %v286 = vld [vmem:[%s1 + $0x98] sm:$0xf]
      %v287 = vld [vmem:[%s1 + $0x9c] sm:$0xf]
      %v288 = vld [vmem:[%s1 + $0xa0] sm:$0xf]
      %v289 = vld [vmem:[%s1 + $0xa4] sm:$0xf]
      %v290 = vld [vmem:[%s1 + $0xa8] sm:$0xf]
      %v291 = vld [vmem:[%s1 + $0xac] sm:$0xf]
      %v292 = vld [vmem:[%s1 + $0xb0] sm:$0xf]
      %v293 = vld [vmem:[%s1 + $0xb4] sm:$0xf]
      %v294 = vld [vmem:[%s1 + $0xb8] sm:$0xf]
      %v295 = vld [vmem:[%s1 + $0xbc] sm:$0xf]
      %v296 = vld [vmem:[%s1 + $0xc0] sm:$0xf]
      %v297 = vld [vmem:[%s1 + $0xc4] sm:$0xf]
      %v298 = vld [vmem:[%s1 + $0xc8] sm:$0xf]
      %v299 = vld [vmem:[%s1 + $0xcc] sm:$0xf]
      %v300 = vld [vmem:[%s1 + $0xd0] sm:$0xf]
      %v301 = vld [vmem:[%s1 + $0xd4] sm:$0xf]
      %v302 = vld [vmem:[%s1 + $0xd8] sm:$0xf]
      %v303 = vld [vmem:[%s1 + $0xdc] sm:$0xf]
      %v304 = vld [vmem:[%s1 + $0xe0] sm:$0xf]
      %v305 = vld [vmem:[%s1 + $0xe4] sm:$0xf]
      %v306 = vld [vmem:[%s1 + $0xe8] sm:$0xf]
      %v307 = vld [vmem:[%s1 + $0xec] sm:$0xf]
      %v308 = vld [vmem:[%s1 + $0xf0] sm:$0xf]
      %v309 = vld [vmem:[%s1 + $0xf4] sm:$0xf]
      %v310 = vld [vmem:[%s1 + $0xf8] sm:$0xf]
      %v311 = vld [vmem:[%s1 + $0xfc] sm:$0xf]
      %v312 = vld [vmem:[%s165] sm:$0x77]
      %v313 = vld [vmem:[%s165 + $0x8] sm:$0x77]
      %v314 = vld [vmem:[%s165 + $0x10] sm:$0x77]
      %v315 = vld [vmem:[%s165 + $0x18] sm:$0x77]
      %v316 = vld [vmem:[%s165 + $0x20] sm:$0x77]
      %v317 = vld [vmem:[%s165 + $0x28] sm:$0x77]
      %v318 = vld [vmem:[%s165 + $0x30] sm:$0x77]
      %v319 = vld [vmem:[%s165 + $0x38] sm:$0x77]
      %v329 = vunpack.c.l.s4 1983009808
      %v330 = vunpack.c.0.s8 %v329
      %v331 = vlaneseq
      %v332 = vshrl.u32 %v331, 7
      %v333 = vsub.s32 %v330, %v332
      %v334 = vrot.slane %v312, %v333
      %v336 = vunpack.c.l.s4 1983009808
      %v337 = vunpack.c.0.s8 %v336
      %v338 = vlaneseq
      %v339 = vshrl.u32 %v338, 7
      %v340 = vsub.s32 %v337, %v339
      %v341 = vrot.slane %v313, %v340
      %v342 = vcombine.low %v334, %v341
      %v343 = vcombine.high %v334, %v341
      %v345 = vunpack.c.l.s4 1983009808
      %v346 = vunpack.c.0.s8 %v345
      %v347 = vlaneseq
      %v348 = vshrl.u32 %v347, 7
      %v349 = vsub.s32 %v346, %v348
      %v350 = vrot.slane %v314, %v349
      %v352 = vunpack.c.l.s4 1983009808
      %v353 = vunpack.c.0.s8 %v352
      %v354 = vlaneseq
      %v355 = vshrl.u32 %v354, 7
      %v356 = vsub.s32 %v353, %v355
      %v357 = vrot.slane %v315, %v356
      %v358 = vcombine.low %v350, %v357
      %v359 = vcombine.high %v350, %v357
      %v361 = vunpack.c.l.s4 1983009808
      %v362 = vunpack.c.0.s8 %v361
      %v363 = vlaneseq
      %v364 = vshrl.u32 %v363, 7
      %v365 = vsub.s32 %v362, %v364
      %v366 = vrot.slane %v316, %v365
      %v368 = vunpack.c.l.s4 1983009808
      %v369 = vunpack.c.0.s8 %v368
      %v370 = vlaneseq
      %v371 = vshrl.u32 %v370, 7
      %v372 = vsub.s32 %v369, %v371
      %v373 = vrot.slane %v317, %v372
      %v374 = vcombine.low %v366, %v373
      %v375 = vcombine.high %v366, %v373
      %v377 = vunpack.c.l.s4 1983009808
      %v378 = vunpack.c.0.s8 %v377
      %v379 = vlaneseq
      %v380 = vshrl.u32 %v379, 7
      %v381 = vsub.s32 %v378, %v380
      %v382 = vrot.slane %v318, %v381
      %v384 = vunpack.c.l.s4 1983009808
      %v385 = vunpack.c.0.s8 %v384
      %v386 = vlaneseq
      %v387 = vshrl.u32 %v386, 7
      %v388 = vsub.s32 %v385, %v387
      %v389 = vrot.slane %v319, %v388
      %v390 = vcombine.low %v382, %v389
      %v391 = vcombine.high %v382, %v389
      %vm392 = vsmask.f32 1280
      %vm393 = vsmask.f32 3336
      %vm394 = vmor %vm392, %vm393
      %vm395 = vsmask.f32 5392
      %vm396 = vmor %vm394, %vm395
      %vm397 = vsmask.f32 7448
      %vm398 = vmor %vm396, %vm397
      %v400 = vshrl.u32 %v342, 16
      %v402 = vrot.slane %v400, 6
      %v403 = vshll.u32 %v342, 16
      %v405 = vrot.slane %v403, 7
      %v406 = vor.u32 %v402, %v405
      %v407 = vrot.slane %v406, 2
      %v409 = vshll.u32 %v343, 16
      %v411 = vrot.slane %v409, 7
      %v412 = vsel %vm398, %v407, %v411
      %v414 = vshrl.u32 %v358, 16
      %v416 = vrot.slane %v414, 6
      %v417 = vshll.u32 %v358, 16
      %v419 = vrot.slane %v417, 7
      %v420 = vor.u32 %v416, %v419
      %v421 = vrot.slane %v420, 2
      %v423 = vshll.u32 %v359, 16
      %v425 = vrot.slane %v423, 7
      %v426 = vsel %vm398, %v421, %v425
      %v428 = vshrl.u32 %v374, 16
      %v430 = vrot.slane %v428, 6
      %v431 = vshll.u32 %v374, 16
      %v433 = vrot.slane %v431, 7
      %v434 = vor.u32 %v430, %v433
      %v435 = vrot.slane %v434, 2
      %v437 = vshll.u32 %v375, 16
      %v439 = vrot.slane %v437, 7
      %v440 = vsel %vm398, %v435, %v439
      %v442 = vshrl.u32 %v390, 16
      %v444 = vrot.slane %v442, 6
      %v445 = vshll.u32 %v390, 16
      %v447 = vrot.slane %v445, 7
      %v448 = vor.u32 %v444, %v447
      %v449 = vrot.slane %v448, 2
      %v451 = vshll.u32 %v391, 16
      %v453 = vrot.slane %v451, 7
      %v454 = vsel %vm398, %v449, %v453
      %s455 = scalar_lea.vmem %s1, 256
      %v456 = vld [vmem:[%s455] sm:$0xf]
      %v457 = vld [vmem:[%s455 + $0x4] sm:$0xf]
      %v458 = vld [vmem:[%s455 + $0x8] sm:$0xf]
      %v459 = vld [vmem:[%s455 + $0xc] sm:$0xf]
      %v460 = vld [vmem:[%s455 + $0x10] sm:$0xf]
      %v461 = vld [vmem:[%s455 + $0x14] sm:$0xf]
      %v462 = vld [vmem:[%s455 + $0x18] sm:$0xf]
      %v463 = vld [vmem:[%s455 + $0x1c] sm:$0xf]
      %v464 = vld [vmem:[%s455 + $0x20] sm:$0xf]
      %v465 = vld [vmem:[%s455 + $0x24] sm:$0xf]
      %v466 = vld [vmem:[%s455 + $0x28] sm:$0xf]
      %v467 = vld [vmem:[%s455 + $0x2c] sm:$0xf]
      %v468 = vld [vmem:[%s455 + $0x30] sm:$0xf]
      %v469 = vld [vmem:[%s455 + $0x34] sm:$0xf]
      %v470 = vld [vmem:[%s455 + $0x38] sm:$0xf]
      %v471 = vld [vmem:[%s455 + $0x3c] sm:$0xf]
      %v472 = vld [vmem:[%s455 + $0x40] sm:$0xf]
      %v473 = vld [vmem:[%s455 + $0x44] sm:$0xf]
      %v474 = vld [vmem:[%s455 + $0x48] sm:$0xf]
      %v475 = vld [vmem:[%s455 + $0x4c] sm:$0xf]
      %v476 = vld [vmem:[%s455 + $0x50] sm:$0xf]
      %v477 = vld [vmem:[%s455 + $0x54] sm:$0xf]
      %v478 = vld [vmem:[%s455 + $0x58] sm:$0xf]
      %v479 = vld [vmem:[%s455 + $0x5c] sm:$0xf]
      %v480 = vld [vmem:[%s455 + $0x60] sm:$0xf]
      %v481 = vld [vmem:[%s455 + $0x64] sm:$0xf]
      %v482 = vld [vmem:[%s455 + $0x68] sm:$0xf]
      %v483 = vld [vmem:[%s455 + $0x6c] sm:$0xf]
      %v484 = vld [vmem:[%s455 + $0x70] sm:$0xf]
      %v485 = vld [vmem:[%s455 + $0x74] sm:$0xf]
      %v486 = vld [vmem:[%s455 + $0x78] sm:$0xf]
      %v487 = vld [vmem:[%s455 + $0x7c] sm:$0xf]
      %v488 = vld [vmem:[%s455 + $0x80] sm:$0xf]
      %v489 = vld [vmem:[%s455 + $0x84] sm:$0xf]
      %v490 = vld [vmem:[%s455 + $0x88] sm:$0xf]
      %v491 = vld [vmem:[%s455 + $0x8c] sm:$0xf]
      %v492 = vld [vmem:[%s455 + $0x90] sm:$0xf]
      %v493 = vld [vmem:[%s455 + $0x94] sm:$0xf]
      %v494 = vld [vmem:[%s455 + $0x98] sm:$0xf]
      %v495 = vld [vmem:[%s455 + $0x9c] sm:$0xf]
      %v496 = vld [vmem:[%s455 + $0xa0] sm:$0xf]
      %v497 = vld [vmem:[%s455 + $0xa4] sm:$0xf]
      %v498 = vld [vmem:[%s455 + $0xa8] sm:$0xf]
      %v499 = vld [vmem:[%s455 + $0xac] sm:$0xf]
      %v500 = vld [vmem:[%s455 + $0xb0] sm:$0xf]
      %v501 = vld [vmem:[%s455 + $0xb4] sm:$0xf]
      %v502 = vld [vmem:[%s455 + $0xb8] sm:$0xf]
      %v503 = vld [vmem:[%s455 + $0xbc] sm:$0xf]
      %v504 = vld [vmem:[%s455 + $0xc0] sm:$0xf]
      %v505 = vld [vmem:[%s455 + $0xc4] sm:$0xf]
      %v506 = vld [vmem:[%s455 + $0xc8] sm:$0xf]
      %v507 = vld [vmem:[%s455 + $0xcc] sm:$0xf]
      %v508 = vld [vmem:[%s455 + $0xd0] sm:$0xf]
      %v509 = vld [vmem:[%s455 + $0xd4] sm:$0xf]
      %v510 = vld [vmem:[%s455 + $0xd8] sm:$0xf]
      %v511 = vld [vmem:[%s455 + $0xdc] sm:$0xf]
      %v512 = vld [vmem:[%s455 + $0xe0] sm:$0xf]
      %v513 = vld [vmem:[%s455 + $0xe4] sm:$0xf]
      %v514 = vld [vmem:[%s455 + $0xe8] sm:$0xf]
      %v515 = vld [vmem:[%s455 + $0xec] sm:$0xf]
      %v516 = vld [vmem:[%s455 + $0xf0] sm:$0xf]
      %v517 = vld [vmem:[%s455 + $0xf4] sm:$0xf]
      %v518 = vld [vmem:[%s455 + $0xf8] sm:$0xf]
      %v519 = vld [vmem:[%s455 + $0xfc] sm:$0xf]
      %v520 = vcombine.low %v412, %v426
      %v521 = vcombine.high %v412, %v426
      %v522 = vcombine.low %v440, %v454
      %v523 = vcombine.high %v440, %v454
      %v525 = vunpack.c.l.s4 1983009808
      %v526 = vunpack.c.0.s8 %v525
      %v527 = vlaneseq
      %v528 = vshrl.u32 %v527, 7
      %v529 = vsub.s32 %v526, %v528
      %v530 = vrot.slane %v520, %v529
      %v532 = vunpack.c.l.s4 1983009808
      %v533 = vunpack.c.0.s8 %v532
      %v534 = vlaneseq
      %v535 = vshrl.u32 %v534, 7
      %v536 = vsub.s32 %v533, %v535
      %v537 = vrot.slane %v521, %v536
      %v539 = vunpack.c.l.s4 1983009808
      %v540 = vunpack.c.0.s8 %v539
      %v541 = vlaneseq
      %v542 = vshrl.u32 %v541, 7
      %v543 = vsub.s32 %v540, %v542
      %v544 = vrot.slane %v522, %v543
      %v546 = vunpack.c.l.s4 1983009808
      %v547 = vunpack.c.0.s8 %v546
      %v548 = vlaneseq
      %v549 = vshrl.u32 %v548, 7
      %v550 = vsub.s32 %v547, %v549
      %v551 = vrot.slane %v523, %v550
      %v552 = vcombine.low %v530, %v544
      %v553 = vcombine.high %v530, %v544
      %v554 = vcombine.low %v537, %v551
      %v555 = vcombine.high %v537, %v551
      %v624 = vunpack.c.l.b16 %v456
      %v625 = vunpack.c.l.b16 %v457
      %v626 = vunpack.c.l.b16 %v458
      %v627 = vunpack.c.l.b16 %v459
      %v628 = vunpack.c.l.b16 %v460
      %v629 = vunpack.c.l.b16 %v461
      %v630 = vunpack.c.l.b16 %v462
      %v631 = vunpack.c.l.b16 %v463
      %v632 = vunpack.c.l.b16 %v464
      %v633 = vunpack.c.l.b16 %v465
      %v634 = vunpack.c.l.b16 %v466
      %v635 = vunpack.c.l.b16 %v467
      %v636 = vunpack.c.l.b16 %v468
      %v637 = vunpack.c.l.b16 %v469
      %v638 = vunpack.c.l.b16 %v470
      %v639 = vunpack.c.l.b16 %v471
      %v640 = vunpack.c.l.b16 %v472
      %v641 = vunpack.c.l.b16 %v473
      %v642 = vunpack.c.l.b16 %v474
      %v643 = vunpack.c.l.b16 %v475
      %v644 = vunpack.c.l.b16 %v476
      %v645 = vunpack.c.l.b16 %v477
      %v646 = vunpack.c.l.b16 %v478
      %v647 = vunpack.c.l.b16 %v479
      %v648 = vunpack.c.l.b16 %v480
      %v649 = vunpack.c.l.b16 %v481
      %v650 = vunpack.c.l.b16 %v482
      %v651 = vunpack.c.l.b16 %v483
      %v652 = vunpack.c.l.b16 %v484
      %v653 = vunpack.c.l.b16 %v485
      %v654 = vunpack.c.l.b16 %v486
      %v655 = vunpack.c.l.b16 %v487
      %v656 = vunpack.c.l.b16 %v488
      %v657 = vunpack.c.l.b16 %v489
      %v658 = vunpack.c.l.b16 %v490
      %v659 = vunpack.c.l.b16 %v491
      %v660 = vunpack.c.l.b16 %v492
      %v661 = vunpack.c.l.b16 %v493
      %v662 = vunpack.c.l.b16 %v494
      %v663 = vunpack.c.l.b16 %v495
      %v664 = vunpack.c.l.b16 %v496
      %v665 = vunpack.c.l.b16 %v497
      %v666 = vunpack.c.l.b16 %v498
      %v667 = vunpack.c.l.b16 %v499
      %v668 = vunpack.c.l.b16 %v500
      %v669 = vunpack.c.l.b16 %v501
      %v670 = vunpack.c.l.b16 %v502
      %v671 = vunpack.c.l.b16 %v503
      %v672 = vunpack.c.l.b16 %v504
      %v673 = vunpack.c.l.b16 %v505
      %v674 = vunpack.c.l.b16 %v506
      %v675 = vunpack.c.l.b16 %v507
      %v676 = vunpack.c.l.b16 %v508
      %v677 = vunpack.c.l.b16 %v509
      %v678 = vunpack.c.l.b16 %v510
      %v679 = vunpack.c.l.b16 %v511
      %v680 = vunpack.c.l.b16 %v512
      %v681 = vunpack.c.l.b16 %v513
      %v682 = vunpack.c.l.b16 %v514
      %v683 = vunpack.c.l.b16 %v515
      %v684 = vunpack.c.l.b16 %v516
      %v685 = vunpack.c.l.b16 %v517
      %v686 = vunpack.c.l.b16 %v518
      %v687 = vunpack.c.l.b16 %v519
      %v688 = vpack.c.b16 %v625, %v624
      %v689 = vpack.c.b16 %v627, %v626
      %v690 = vpack.c.b16 %v629, %v628
      %v691 = vpack.c.b16 %v631, %v630
      %v692 = vpack.c.b16 %v633, %v632
      %v693 = vpack.c.b16 %v635, %v634
      %v694 = vpack.c.b16 %v637, %v636
      %v695 = vpack.c.b16 %v639, %v638
      %v696 = vpack.c.b16 %v641, %v640
      %v697 = vpack.c.b16 %v643, %v642
      %v698 = vpack.c.b16 %v645, %v644
      %v699 = vpack.c.b16 %v647, %v646
      %v700 = vpack.c.b16 %v649, %v648
      %v701 = vpack.c.b16 %v651, %v650
      %v702 = vpack.c.b16 %v653, %v652
      %v703 = vpack.c.b16 %v655, %v654
      %v704 = vpack.c.b16 %v657, %v656
      %v705 = vpack.c.b16 %v659, %v658
      %v706 = vpack.c.b16 %v661, %v660
      %v707 = vpack.c.b16 %v663, %v662
      %v708 = vpack.c.b16 %v665, %v664
      %v709 = vpack.c.b16 %v667, %v666
      %v710 = vpack.c.b16 %v669, %v668
      %v711 = vpack.c.b16 %v671, %v670
      %v712 = vpack.c.b16 %v673, %v672
      %v713 = vpack.c.b16 %v675, %v674
      %v714 = vpack.c.b16 %v677, %v676
      %v715 = vpack.c.b16 %v679, %v678
      %v716 = vpack.c.b16 %v681, %v680
      %v717 = vpack.c.b16 %v683, %v682
      %v718 = vpack.c.b16 %v685, %v684
      %v719 = vpack.c.b16 %v687, %v686
      %752 = vmatprep.subr.bf16.mxu0 0
      %753 = vmatpush1.bf16.msra.mxu0 %v688
      %754 = vmatprep.subr.bf16.mxu0 0
      %755 = vmatpush1.bf16.msra.mxu0 %v689
      %756 = vmatprep.subr.bf16.mxu0 0
      %757 = vmatpush1.bf16.msra.mxu0 %v690
      %758 = vmatprep.subr.bf16.mxu0 0
      %759 = vmatpush1.bf16.msra.mxu0 %v691
      %760 = vmatprep.subr.bf16.mxu0 0
      %761 = vmatpush1.bf16.msra.mxu0 %v692
      %762 = vmatprep.subr.bf16.mxu0 0
      %763 = vmatpush1.bf16.msra.mxu0 %v693
      %764 = vmatprep.subr.bf16.mxu0 0
      %765 = vmatpush1.bf16.msra.mxu0 %v694
      %766 = vmatprep.subr.bf16.mxu0 0
      %767 = vmatpush1.bf16.msra.mxu0 %v695
      %768 = vmatprep.subr.bf16.mxu0 0
      %769 = vmatpush1.bf16.msra.mxu0 %v696
      %770 = vmatprep.subr.bf16.mxu0 0
      %771 = vmatpush1.bf16.msra.mxu0 %v697
      %772 = vmatprep.subr.bf16.mxu0 0
      %773 = vmatpush1.bf16.msra.mxu0 %v698
      %774 = vmatprep.subr.bf16.mxu0 0
      %775 = vmatpush1.bf16.msra.mxu0 %v699
      %776 = vmatprep.subr.bf16.mxu0 0
      %777 = vmatpush1.bf16.msra.mxu0 %v700
      %778 = vmatprep.subr.bf16.mxu0 0
      %779 = vmatpush1.bf16.msra.mxu0 %v701
      %780 = vmatprep.subr.bf16.mxu0 0
      %781 = vmatpush1.bf16.msra.mxu0 %v702
      %782 = vmatprep.subr.bf16.mxu0 0
      %783 = vmatpush1.bf16.msra.mxu0 %v703
      %784 = vmatprep.mubr.bf16.mxu0 %v553
      %785 = vmatmul.mubr.bf16.gmra.mrb[0].mxu0 %v552
      %v786 = vpop.f32.mrb[0].mxu0
      %v787 = vadd.f32 0.0, %v786
      %v788 = vpop.f32.mrb[0].mxu0
      %v789 = vpop.f32.mrb[0].mxu0
      %v790 = vadd.f32 0.0, %v789
      %v791 = vpop.f32.mrb[0].mxu0
      %792 = vdwg.mxu0
      %793 = vmatprep.subr.bf16.mxu0 0
      %794 = vmatpush1.bf16.msra.mxu0 %v704
      %795 = vmatprep.subr.bf16.mxu0 0
      %796 = vmatpush1.bf16.msra.mxu0 %v705
      %797 = vmatprep.subr.bf16.mxu0 0
      %798 = vmatpush1.bf16.msra.mxu0 %v706
      %799 = vmatprep.subr.bf16.mxu0 0
      %800 = vmatpush1.bf16.msra.mxu0 %v707
      %801 = vmatprep.subr.bf16.mxu0 0
      %802 = vmatpush1.bf16.msra.mxu0 %v708
      %803 = vmatprep.subr.bf16.mxu0 0
      %804 = vmatpush1.bf16.msra.mxu0 %v709
      %805 = vmatprep.subr.bf16.mxu0 0
      %806 = vmatpush1.bf16.msra.mxu0 %v710
      %807 = vmatprep.subr.bf16.mxu0 0
      %808 = vmatpush1.bf16.msra.mxu0 %v711
      %809 = vmatprep.subr.bf16.mxu0 0
      %810 = vmatpush1.bf16.msra.mxu0 %v712
      %811 = vmatprep.subr.bf16.mxu0 0
      %812 = vmatpush1.bf16.msra.mxu0 %v713
      %813 = vmatprep.subr.bf16.mxu0 0
      %814 = vmatpush1.bf16.msra.mxu0 %v714
      %815 = vmatprep.subr.bf16.mxu0 0
      %816 = vmatpush1.bf16.msra.mxu0 %v715
      %817 = vmatprep.subr.bf16.mxu0 0
      %818 = vmatpush1.bf16.msra.mxu0 %v716
      %819 = vmatprep.subr.bf16.mxu0 0
      %820 = vmatpush1.bf16.msra.mxu0 %v717
      %821 = vmatprep.subr.bf16.mxu0 0
      %822 = vmatpush1.bf16.msra.mxu0 %v718
      %823 = vmatprep.subr.bf16.mxu0 0
      %824 = vmatpush1.bf16.msra.mxu0 %v719
      %825 = vmatprep.mubr.bf16.mxu0 %v555
      %826 = vmatmul.mubr.bf16.gmra.mrb[0].mxu0 %v554
      %v827 = vpop.f32.mrb[0].mxu0
      %v828 = vadd.f32 %v787, %v827
      %v829 = vpop.f32.mrb[0].mxu0
      %v830 = vpop.f32.mrb[0].mxu0
      %v831 = vadd.f32 %v790, %v830
      %v832 = vpop.f32.mrb[0].mxu0
      %833 = vdwg.mxu0
      %v834 = vcombine.low %v202, %v217
      %v835 = vcombine.high %v202, %v217
      %v836 = vcombine.low %v232, %v247
      %v837 = vcombine.high %v232, %v247
      %v839 = vunpack.c.l.s4 1983009808
      %v840 = vunpack.c.0.s8 %v839
      %v841 = vlaneseq
      %v842 = vshrl.u32 %v841, 7
      %v843 = vsub.s32 %v840, %v842
      %v844 = vrot.slane %v834, %v843
      %v846 = vunpack.c.l.s4 1983009808
      %v847 = vunpack.c.0.s8 %v846
      %v848 = vlaneseq
      %v849 = vshrl.u32 %v848, 7
      %v850 = vsub.s32 %v847, %v849
      %v851 = vrot.slane %v835, %v850
      %v853 = vunpack.c.l.s4 1983009808
      %v854 = vunpack.c.0.s8 %v853
      %v855 = vlaneseq
      %v856 = vshrl.u32 %v855, 7
      %v857 = vsub.s32 %v854, %v856
      %v858 = vrot.slane %v836, %v857
      %v860 = vunpack.c.l.s4 1983009808
      %v861 = vunpack.c.0.s8 %v860
      %v862 = vlaneseq
      %v863 = vshrl.u32 %v862, 7
      %v864 = vsub.s32 %v861, %v863
      %v865 = vrot.slane %v837, %v864
      %v866 = vcombine.low %v844, %v858
      %v867 = vcombine.high %v844, %v858
      %v868 = vcombine.low %v851, %v865
      %v869 = vcombine.high %v851, %v865
      %v938 = vunpack.c.l.b16 %v248
      %v939 = vunpack.c.l.b16 %v249
      %v940 = vunpack.c.l.b16 %v250
      %v941 = vunpack.c.l.b16 %v251
      %v942 = vunpack.c.l.b16 %v252
      %v943 = vunpack.c.l.b16 %v253
      %v944 = vunpack.c.l.b16 %v254
      %v945 = vunpack.c.l.b16 %v255
      %v946 = vunpack.c.l.b16 %v256
      %v947 = vunpack.c.l.b16 %v257
      %v948 = vunpack.c.l.b16 %v258
      %v949 = vunpack.c.l.b16 %v259
      %v950 = vunpack.c.l.b16 %v260
      %v951 = vunpack.c.l.b16 %v261
      %v952 = vunpack.c.l.b16 %v262
      %v953 = vunpack.c.l.b16 %v263
      %v954 = vunpack.c.l.b16 %v264
      %v955 = vunpack.c.l.b16 %v265
      %v956 = vunpack.c.l.b16 %v266
      %v957 = vunpack.c.l.b16 %v267
      %v958 = vunpack.c.l.b16 %v268
      %v959 = vunpack.c.l.b16 %v269
      %v960 = vunpack.c.l.b16 %v270
      %v961 = vunpack.c.l.b16 %v271
      %v962 = vunpack.c.l.b16 %v272
      %v963 = vunpack.c.l.b16 %v273
      %v964 = vunpack.c.l.b16 %v274
      %v965 = vunpack.c.l.b16 %v275
      %v966 = vunpack.c.l.b16 %v276
      %v967 = vunpack.c.l.b16 %v277
      %v968 = vunpack.c.l.b16 %v278
      %v969 = vunpack.c.l.b16 %v279
      %v970 = vunpack.c.l.b16 %v280
      %v971 = vunpack.c.l.b16 %v281
      %v972 = vunpack.c.l.b16 %v282
      %v973 = vunpack.c.l.b16 %v283
      %v974 = vunpack.c.l.b16 %v284
      %v975 = vunpack.c.l.b16 %v285
      %v976 = vunpack.c.l.b16 %v286
      %v977 = vunpack.c.l.b16 %v287
      %v978 = vunpack.c.l.b16 %v288
      %v979 = vunpack.c.l.b16 %v289
      %v980 = vunpack.c.l.b16 %v290
      %v981 = vunpack.c.l.b16 %v291
      %v982 = vunpack.c.l.b16 %v292
      %v983 = vunpack.c.l.b16 %v293
      %v984 = vunpack.c.l.b16 %v294
      %v985 = vunpack.c.l.b16 %v295
      %v986 = vunpack.c.l.b16 %v296
      %v987 = vunpack.c.l.b16 %v297
      %v988 = vunpack.c.l.b16 %v298
      %v989 = vunpack.c.l.b16 %v299
      %v990 = vunpack.c.l.b16 %v300
      %v991 = vunpack.c.l.b16 %v301
      %v992 = vunpack.c.l.b16 %v302
      %v993 = vunpack.c.l.b16 %v303
      %v994 = vunpack.c.l.b16 %v304
      %v995 = vunpack.c.l.b16 %v305
      %v996 = vunpack.c.l.b16 %v306
      %v997 = vunpack.c.l.b16 %v307
      %v998 = vunpack.c.l.b16 %v308
      %v999 = vunpack.c.l.b16 %v309
      %v1000 = vunpack.c.l.b16 %v310
      %v1001 = vunpack.c.l.b16 %v311
      %v1002 = vpack.c.b16 %v939, %v938
      %v1003 = vpack.c.b16 %v941, %v940
      %v1004 = vpack.c.b16 %v943, %v942
      %v1005 = vpack.c.b16 %v945, %v944
      %v1006 = vpack.c.b16 %v947, %v946
      %v1007 = vpack.c.b16 %v949, %v948
      %v1008 = vpack.c.b16 %v951, %v950
      %v1009 = vpack.c.b16 %v953, %v952
      %v1010 = vpack.c.b16 %v955, %v954
      %v1011 = vpack.c.b16 %v957, %v956
      %v1012 = vpack.c.b16 %v959, %v958
      %v1013 = vpack.c.b16 %v961, %v960
      %v1014 = vpack.c.b16 %v963, %v962
      %v1015 = vpack.c.b16 %v965, %v964
      %v1016 = vpack.c.b16 %v967, %v966
      %v1017 = vpack.c.b16 %v969, %v968
      %v1018 = vpack.c.b16 %v971, %v970
      %v1019 = vpack.c.b16 %v973, %v972
      %v1020 = vpack.c.b16 %v975, %v974
      %v1021 = vpack.c.b16 %v977, %v976
      %v1022 = vpack.c.b16 %v979, %v978
      %v1023 = vpack.c.b16 %v981, %v980
      %v1024 = vpack.c.b16 %v983, %v982
      %v1025 = vpack.c.b16 %v985, %v984
      %v1026 = vpack.c.b16 %v987, %v986
      %v1027 = vpack.c.b16 %v989, %v988
      %v1028 = vpack.c.b16 %v991, %v990
      %v1029 = vpack.c.b16 %v993, %v992
      %v1030 = vpack.c.b16 %v995, %v994
      %v1031 = vpack.c.b16 %v997, %v996
      %v1032 = vpack.c.b16 %v999, %v998
      %v1033 = vpack.c.b16 %v1001, %v1000
      %1066 = vmatprep.subr.bf16.mxu0 0
      %1067 = vmatpush1.bf16.msra.mxu0 %v1002
      %1068 = vmatprep.subr.bf16.mxu0 0
      %1069 = vmatpush1.bf16.msra.mxu0 %v1003
      %1070 = vmatprep.subr.bf16.mxu0 0
      %1071 = vmatpush1.bf16.msra.mxu0 %v1004
      %1072 = vmatprep.subr.bf16.mxu0 0
      %1073 = vmatpush1.bf16.msra.mxu0 %v1005
      %1074 = vmatprep.subr.bf16.mxu0 0
      %1075 = vmatpush1.bf16.msra.mxu0 %v1006
      %1076 = vmatprep.subr.bf16.mxu0 0
      %1077 = vmatpush1.bf16.msra.mxu0 %v1007
      %1078 = vmatprep.subr.bf16.mxu0 0
      %1079 = vmatpush1.bf16.msra.mxu0 %v1008
      %1080 = vmatprep.subr.bf16.mxu0 0
      %1081 = vmatpush1.bf16.msra.mxu0 %v1009
      %1082 = vmatprep.subr.bf16.mxu0 0
      %1083 = vmatpush1.bf16.msra.mxu0 %v1010
      %1084 = vmatprep.subr.bf16.mxu0 0
      %1085 = vmatpush1.bf16.msra.mxu0 %v1011
      %1086 = vmatprep.subr.bf16.mxu0 0
      %1087 = vmatpush1.bf16.msra.mxu0 %v1012
      %1088 = vmatprep.subr.bf16.mxu0 0
      %1089 = vmatpush1.bf16.msra.mxu0 %v1013
      %1090 = vmatprep.subr.bf16.mxu0 0
      %1091 = vmatpush1.bf16.msra.mxu0 %v1014
      %1092 = vmatprep.subr.bf16.mxu0 0
      %1093 = vmatpush1.bf16.msra.mxu0 %v1015
      %1094 = vmatprep.subr.bf16.mxu0 0
      %1095 = vmatpush1.bf16.msra.mxu0 %v1016
      %1096 = vmatprep.subr.bf16.mxu0 0
      %1097 = vmatpush1.bf16.msra.mxu0 %v1017
      %1098 = vmatprep.mubr.bf16.mxu0 %v867
      %1099 = vmatmul.mubr.bf16.gmra.mrb[0].mxu0 %v866
      %v1100 = vpop.f32.mrb[0].mxu0
      %v1101 = vadd.f32 %v828, %v1100
      %v1102 = vpop.f32.mrb[0].mxu0
      %v1103 = vpop.f32.mrb[0].mxu0
      %v1104 = vadd.f32 %v831, %v1103
      %v1105 = vpop.f32.mrb[0].mxu0
      %1106 = vdwg.mxu0
      %1107 = vmatprep.subr.bf16.mxu0 0
      %1108 = vmatpush1.bf16.msra.mxu0 %v1018
      %1109 = vmatprep.subr.bf16.mxu0 0
      %1110 = vmatpush1.bf16.msra.mxu0 %v1019
      %1111 = vmatprep.subr.bf16.mxu0 0
      %1112 = vmatpush1.bf16.msra.mxu0 %v1020
      %1113 = vmatprep.subr.bf16.mxu0 0
      %1114 = vmatpush1.bf16.msra.mxu0 %v1021
      %1115 = vmatprep.subr.bf16.mxu0 0
      %1116 = vmatpush1.bf16.msra.mxu0 %v1022
      %1117 = vmatprep.subr.bf16.mxu0 0
      %1118 = vmatpush1.bf16.msra.mxu0 %v1023
      %1119 = vmatprep.subr.bf16.mxu0 0
      %1120 = vmatpush1.bf16.msra.mxu0 %v1024
      %1121 = vmatprep.subr.bf16.mxu0 0
      %1122 = vmatpush1.bf16.msra.mxu0 %v1025
      %1123 = vmatprep.subr.bf16.mxu0 0
      %1124 = vmatpush1.bf16.msra.mxu0 %v1026
      %1125 = vmatprep.subr.bf16.mxu0 0
      %1126 = vmatpush1.bf16.msra.mxu0 %v1027
      %1127 = vmatprep.subr.bf16.mxu0 0
      %1128 = vmatpush1.bf16.msra.mxu0 %v1028
      %1129 = vmatprep.subr.bf16.mxu0 0
      %1130 = vmatpush1.bf16.msra.mxu0 %v1029
      %1131 = vmatprep.subr.bf16.mxu0 0
      %1132 = vmatpush1.bf16.msra.mxu0 %v1030
      %1133 = vmatprep.subr.bf16.mxu0 0
      %1134 = vmatpush1.bf16.msra.mxu0 %v1031
      %1135 = vmatprep.subr.bf16.mxu0 0
      %1136 = vmatpush1.bf16.msra.mxu0 %v1032
      %1137 = vmatprep.subr.bf16.mxu0 0
      %1138 = vmatpush1.bf16.msra.mxu0 %v1033
      %1139 = vmatprep.mubr.bf16.mxu0 %v869
      %1140 = vmatmul.mubr.bf16.gmra.mrb[0].mxu0 %v868
      %v1141 = vpop.f32.mrb[0].mxu0
      %v1142 = vadd.f32 %v1101, %v1141
      %v1143 = vpop.f32.mrb[0].mxu0
      %v1144 = vpop.f32.mrb[0].mxu0
      %v1145 = vadd.f32 %v1104, %v1144
      %v1146 = vpop.f32.mrb[0].mxu0
      %1147 = vdwg.mxu0
      %s1148 = scalar_lea.vmem %s165, 16
      %v1149 = vld [vmem:[%s1148] sm:$0x33]
      %v1150 = vld [vmem:[%s1148 + $0x8] sm:$0x33]
      %v1151 = vld [vmem:[%s1148 + $0x10] sm:$0x33]
      %v1152 = vld [vmem:[%s1148 + $0x18] sm:$0x33]
      %v1153 = vld [vmem:[%s1148 + $0x20] sm:$0x33]
      %v1154 = vld [vmem:[%s1148 + $0x28] sm:$0x33]
      %v1155 = vld [vmem:[%s1148 + $0x30] sm:$0x33]
      %v1156 = vld [vmem:[%s1148 + $0x38] sm:$0x33]
      %v1166 = vunpack.c.l.s4 1983009808
      %v1167 = vunpack.c.0.s8 %v1166
      %v1168 = vlaneseq
      %v1169 = vshrl.u32 %v1168, 7
      %v1170 = vsub.s32 %v1167, %v1169
      %v1171 = vrot.slane %v1149, %v1170
      %v1173 = vunpack.c.l.s4 1983009808
      %v1174 = vunpack.c.0.s8 %v1173
      %v1175 = vlaneseq
      %v1176 = vshrl.u32 %v1175, 7
      %v1177 = vsub.s32 %v1174, %v1176
      %v1178 = vrot.slane %v1150, %v1177
      %v1179 = vcombine.low %v1171, %v1178
      %v1181 = vunpack.c.l.s4 1983009808
      %v1182 = vunpack.c.0.s8 %v1181
      %v1183 = vlaneseq
      %v1184 = vshrl.u32 %v1183, 7
      %v1185 = vsub.s32 %v1182, %v1184
      %v1186 = vrot.slane %v1151, %v1185
      %v1188 = vunpack.c.l.s4 1983009808
      %v1189 = vunpack.c.0.s8 %v1188
      %v1190 = vlaneseq
      %v1191 = vshrl.u32 %v1190, 7
      %v1192 = vsub.s32 %v1189, %v1191
      %v1193 = vrot.slane %v1152, %v1192
      %v1194 = vcombine.low %v1186, %v1193
      %v1196 = vunpack.c.l.s4 1983009808
      %v1197 = vunpack.c.0.s8 %v1196
      %v1198 = vlaneseq
      %v1199 = vshrl.u32 %v1198, 7
      %v1200 = vsub.s32 %v1197, %v1199
      %v1201 = vrot.slane %v1153, %v1200
      %v1203 = vunpack.c.l.s4 1983009808
      %v1204 = vunpack.c.0.s8 %v1203
      %v1205 = vlaneseq
      %v1206 = vshrl.u32 %v1205, 7
      %v1207 = vsub.s32 %v1204, %v1206
      %v1208 = vrot.slane %v1154, %v1207
      %v1209 = vcombine.low %v1201, %v1208
      %v1211 = vunpack.c.l.s4 1983009808
      %v1212 = vunpack.c.0.s8 %v1211
      %v1213 = vlaneseq
      %v1214 = vshrl.u32 %v1213, 7
      %v1215 = vsub.s32 %v1212, %v1214
      %v1216 = vrot.slane %v1155, %v1215
      %v1218 = vunpack.c.l.s4 1983009808
      %v1219 = vunpack.c.0.s8 %v1218
      %v1220 = vlaneseq
      %v1221 = vshrl.u32 %v1220, 7
      %v1222 = vsub.s32 %v1219, %v1221
      %v1223 = vrot.slane %v1156, %v1222
      %v1224 = vcombine.low %v1216, %v1223
      %s1225 = scalar_lea.vmem %s1, 512
      %v1226 = vld [vmem:[%s1225] sm:$0xf]
      %v1227 = vld [vmem:[%s1225 + $0x4] sm:$0xf]
      %v1228 = vld [vmem:[%s1225 + $0x8] sm:$0xf]
      %v1229 = vld [vmem:[%s1225 + $0xc] sm:$0xf]
      %v1230 = vld [vmem:[%s1225 + $0x10] sm:$0xf]
      %v1231 = vld [vmem:[%s1225 + $0x14] sm:$0xf]
      %v1232 = vld [vmem:[%s1225 + $0x18] sm:$0xf]
      %v1233 = vld [vmem:[%s1225 + $0x1c] sm:$0xf]
      %v1234 = vld [vmem:[%s1225 + $0x20] sm:$0xf]
      %v1235 = vld [vmem:[%s1225 + $0x24] sm:$0xf]
      %v1236 = vld [vmem:[%s1225 + $0x28] sm:$0xf]
      %v1237 = vld [vmem:[%s1225 + $0x2c] sm:$0xf]
      %v1238 = vld [vmem:[%s1225 + $0x30] sm:$0xf]
      %v1239 = vld [vmem:[%s1225 + $0x34] sm:$0xf]
      %v1240 = vld [vmem:[%s1225 + $0x38] sm:$0xf]
      %v1241 = vld [vmem:[%s1225 + $0x3c] sm:$0xf]
      %v1242 = vld [vmem:[%s1225 + $0x40] sm:$0xf]
      %v1243 = vld [vmem:[%s1225 + $0x44] sm:$0xf]
      %v1244 = vld [vmem:[%s1225 + $0x48] sm:$0xf]
      %v1245 = vld [vmem:[%s1225 + $0x4c] sm:$0xf]
      %v1246 = vld [vmem:[%s1225 + $0x50] sm:$0xf]
      %v1247 = vld [vmem:[%s1225 + $0x54] sm:$0xf]
      %v1248 = vld [vmem:[%s1225 + $0x58] sm:$0xf]
      %v1249 = vld [vmem:[%s1225 + $0x5c] sm:$0xf]
      %v1250 = vld [vmem:[%s1225 + $0x60] sm:$0xf]
      %v1251 = vld [vmem:[%s1225 + $0x64] sm:$0xf]
      %v1252 = vld [vmem:[%s1225 + $0x68] sm:$0xf]
      %v1253 = vld [vmem:[%s1225 + $0x6c] sm:$0xf]
      %v1254 = vld [vmem:[%s1225 + $0x70] sm:$0xf]
      %v1255 = vld [vmem:[%s1225 + $0x74] sm:$0xf]
      %v1256 = vld [vmem:[%s1225 + $0x78] sm:$0xf]
      %v1257 = vld [vmem:[%s1225 + $0x7c] sm:$0xf]
      %v1258 = vld [vmem:[%s1225 + $0x80] sm:$0xf]
      %v1259 = vld [vmem:[%s1225 + $0x84] sm:$0xf]
      %v1260 = vld [vmem:[%s1225 + $0x88] sm:$0xf]
      %v1261 = vld [vmem:[%s1225 + $0x8c] sm:$0xf]
      %v1262 = vld [vmem:[%s1225 + $0x90] sm:$0xf]
      %v1263 = vld [vmem:[%s1225 + $0x94] sm:$0xf]
      %v1264 = vld [vmem:[%s1225 + $0x98] sm:$0xf]
      %v1265 = vld [vmem:[%s1225 + $0x9c] sm:$0xf]
      %v1266 = vld [vmem:[%s1225 + $0xa0] sm:$0xf]
      %v1267 = vld [vmem:[%s1225 + $0xa4] sm:$0xf]
      %v1268 = vld [vmem:[%s1225 + $0xa8] sm:$0xf]
      %v1269 = vld [vmem:[%s1225 + $0xac] sm:$0xf]
      %v1270 = vld [vmem:[%s1225 + $0xb0] sm:$0xf]
      %v1271 = vld [vmem:[%s1225 + $0xb4] sm:$0xf]
      %v1272 = vld [vmem:[%s1225 + $0xb8] sm:$0xf]
      %v1273 = vld [vmem:[%s1225 + $0xbc] sm:$0xf]
      %v1274 = vld [vmem:[%s1225 + $0xc0] sm:$0xf]
      %v1275 = vld [vmem:[%s1225 + $0xc4] sm:$0xf]
      %v1276 = vld [vmem:[%s1225 + $0xc8] sm:$0xf]
      %v1277 = vld [vmem:[%s1225 + $0xcc] sm:$0xf]
      %v1278 = vld [vmem:[%s1225 + $0xd0] sm:$0xf]
      %v1279 = vld [vmem:[%s1225 + $0xd4] sm:$0xf]
      %v1280 = vld [vmem:[%s1225 + $0xd8] sm:$0xf]
      %v1281 = vld [vmem:[%s1225 + $0xdc] sm:$0xf]
      %v1282 = vld [vmem:[%s1225 + $0xe0] sm:$0xf]
      %v1283 = vld [vmem:[%s1225 + $0xe4] sm:$0xf]
      %v1284 = vld [vmem:[%s1225 + $0xe8] sm:$0xf]
      %v1285 = vld [vmem:[%s1225 + $0xec] sm:$0xf]
      %v1286 = vld [vmem:[%s1225 + $0xf0] sm:$0xf]
      %v1287 = vld [vmem:[%s1225 + $0xf4] sm:$0xf]
      %v1288 = vld [vmem:[%s1225 + $0xf8] sm:$0xf]
      %v1289 = vld [vmem:[%s1225 + $0xfc] sm:$0xf]
      %v1290 = vcombine.low %v1179, %v1194
      %v1291 = vcombine.high %v1179, %v1194
      %v1292 = vcombine.low %v1209, %v1224
      %v1293 = vcombine.high %v1209, %v1224
      %v1295 = vunpack.c.l.s4 1983009808
      %v1296 = vunpack.c.0.s8 %v1295
      %v1297 = vlaneseq
      %v1298 = vshrl.u32 %v1297, 7
      %v1299 = vsub.s32 %v1296, %v1298
      %v1300 = vrot.slane %v1290, %v1299
      %v1302 = vunpack.c.l.s4 1983009808
      %v1303 = vunpack.c.0.s8 %v1302
      %v1304 = vlaneseq
      %v1305 = vshrl.u32 %v1304, 7
      %v1306 = vsub.s32 %v1303, %v1305
      %v1307 = vrot.slane %v1291, %v1306
      %v1309 = vunpack.c.l.s4 1983009808
      %v1310 = vunpack.c.0.s8 %v1309
      %v1311 = vlaneseq
      %v1312 = vshrl.u32 %v1311, 7
      %v1313 = vsub.s32 %v1310, %v1312
      %v1314 = vrot.slane %v1292, %v1313
      %v1316 = vunpack.c.l.s4 1983009808
      %v1317 = vunpack.c.0.s8 %v1316
      %v1318 = vlaneseq
      %v1319 = vshrl.u32 %v1318, 7
      %v1320 = vsub.s32 %v1317, %v1319
      %v1321 = vrot.slane %v1293, %v1320
      %v1322 = vcombine.low %v1300, %v1314
      %v1323 = vcombine.high %v1300, %v1314
      %v1324 = vcombine.low %v1307, %v1321
      %v1325 = vcombine.high %v1307, %v1321
      %v1394 = vunpack.c.l.b16 %v1226
      %v1395 = vunpack.c.l.b16 %v1227
      %v1396 = vunpack.c.l.b16 %v1228
      %v1397 = vunpack.c.l.b16 %v1229
      %v1398 = vunpack.c.l.b16 %v1230
      %v1399 = vunpack.c.l.b16 %v1231
      %v1400 = vunpack.c.l.b16 %v1232
      %v1401 = vunpack.c.l.b16 %v1233
      %v1402 = vunpack.c.l.b16 %v1234
      %v1403 = vunpack.c.l.b16 %v1235
      %v1404 = vunpack.c.l.b16 %v1236
      %v1405 = vunpack.c.l.b16 %v1237
      %v1406 = vunpack.c.l.b16 %v1238
      %v1407 = vunpack.c.l.b16 %v1239
      %v1408 = vunpack.c.l.b16 %v1240
      %v1409 = vunpack.c.l.b16 %v1241
      %v1410 = vunpack.c.l.b16 %v1242
      %v1411 = vunpack.c.l.b16 %v1243
      %v1412 = vunpack.c.l.b16 %v1244
      %v1413 = vunpack.c.l.b16 %v1245
      %v1414 = vunpack.c.l.b16 %v1246
      %v1415 = vunpack.c.l.b16 %v1247
      %v1416 = vunpack.c.l.b16 %v1248
      %v1417 = vunpack.c.l.b16 %v1249
      %v1418 = vunpack.c.l.b16 %v1250
      %v1419 = vunpack.c.l.b16 %v1251
      %v1420 = vunpack.c.l.b16 %v1252
      %v1421 = vunpack.c.l.b16 %v1253
      %v1422 = vunpack.c.l.b16 %v1254
      %v1423 = vunpack.c.l.b16 %v1255
      %v1424 = vunpack.c.l.b16 %v1256
      %v1425 = vunpack.c.l.b16 %v1257
      %v1426 = vunpack.c.l.b16 %v1258
      %v1427 = vunpack.c.l.b16 %v1259
      %v1428 = vunpack.c.l.b16 %v1260
      %v1429 = vunpack.c.l.b16 %v1261
      %v1430 = vunpack.c.l.b16 %v1262
      %v1431 = vunpack.c.l.b16 %v1263
      %v1432 = vunpack.c.l.b16 %v1264
      %v1433 = vunpack.c.l.b16 %v1265
      %v1434 = vunpack.c.l.b16 %v1266
      %v1435 = vunpack.c.l.b16 %v1267
      %v1436 = vunpack.c.l.b16 %v1268
      %v1437 = vunpack.c.l.b16 %v1269
      %v1438 = vunpack.c.l.b16 %v1270
      %v1439 = vunpack.c.l.b16 %v1271
      %v1440 = vunpack.c.l.b16 %v1272
      %v1441 = vunpack.c.l.b16 %v1273
      %v1442 = vunpack.c.l.b16 %v1274
      %v1443 = vunpack.c.l.b16 %v1275
      %v1444 = vunpack.c.l.b16 %v1276
      %v1445 = vunpack.c.l.b16 %v1277
      %v1446 = vunpack.c.l.b16 %v1278
      %v1447 = vunpack.c.l.b16 %v1279
      %v1448 = vunpack.c.l.b16 %v1280
      %v1449 = vunpack.c.l.b16 %v1281
      %v1450 = vunpack.c.l.b16 %v1282
      %v1451 = vunpack.c.l.b16 %v1283
      %v1452 = vunpack.c.l.b16 %v1284
      %v1453 = vunpack.c.l.b16 %v1285
      %v1454 = vunpack.c.l.b16 %v1286
      %v1455 = vunpack.c.l.b16 %v1287
      %v1456 = vunpack.c.l.b16 %v1288
      %v1457 = vunpack.c.l.b16 %v1289
      %v1458 = vpack.c.b16 %v1395, %v1394
      %v1459 = vpack.c.b16 %v1397, %v1396
      %v1460 = vpack.c.b16 %v1399, %v1398
      %v1461 = vpack.c.b16 %v1401, %v1400
      %v1462 = vpack.c.b16 %v1403, %v1402
      %v1463 = vpack.c.b16 %v1405, %v1404
      %v1464 = vpack.c.b16 %v1407, %v1406
      %v1465 = vpack.c.b16 %v1409, %v1408
      %v1466 = vpack.c.b16 %v1411, %v1410
      %v1467 = vpack.c.b16 %v1413, %v1412
      %v1468 = vpack.c.b16 %v1415, %v1414
      %v1469 = vpack.c.b16 %v1417, %v1416
      %v1470 = vpack.c.b16 %v1419, %v1418
      %v1471 = vpack.c.b16 %v1421, %v1420
      %v1472 = vpack.c.b16 %v1423, %v1422
      %v1473 = vpack.c.b16 %v1425, %v1424
      %v1474 = vpack.c.b16 %v1427, %v1426
      %v1475 = vpack.c.b16 %v1429, %v1428
      %v1476 = vpack.c.b16 %v1431, %v1430
      %v1477 = vpack.c.b16 %v1433, %v1432
      %v1478 = vpack.c.b16 %v1435, %v1434
      %v1479 = vpack.c.b16 %v1437, %v1436
      %v1480 = vpack.c.b16 %v1439, %v1438
      %v1481 = vpack.c.b16 %v1441, %v1440
      %v1482 = vpack.c.b16 %v1443, %v1442
      %v1483 = vpack.c.b16 %v1445, %v1444
      %v1484 = vpack.c.b16 %v1447, %v1446
      %v1485 = vpack.c.b16 %v1449, %v1448
      %v1486 = vpack.c.b16 %v1451, %v1450
      %v1487 = vpack.c.b16 %v1453, %v1452
      %v1488 = vpack.c.b16 %v1455, %v1454
      %v1489 = vpack.c.b16 %v1457, %v1456
      %1522 = vmatprep.subr.bf16.mxu0 0
      %1523 = vmatpush1.bf16.msra.mxu0 %v1458
      %1524 = vmatprep.subr.bf16.mxu0 0
      %1525 = vmatpush1.bf16.msra.mxu0 %v1459
      %1526 = vmatprep.subr.bf16.mxu0 0
      %1527 = vmatpush1.bf16.msra.mxu0 %v1460
      %1528 = vmatprep.subr.bf16.mxu0 0
      %1529 = vmatpush1.bf16.msra.mxu0 %v1461
      %1530 = vmatprep.subr.bf16.mxu0 0
      %1531 = vmatpush1.bf16.msra.mxu0 %v1462
      %1532 = vmatprep.subr.bf16.mxu0 0
      %1533 = vmatpush1.bf16.msra.mxu0 %v1463
      %1534 = vmatprep.subr.bf16.mxu0 0
      %1535 = vmatpush1.bf16.msra.mxu0 %v1464
      %1536 = vmatprep.subr.bf16.mxu0 0
      %1537 = vmatpush1.bf16.msra.mxu0 %v1465
      %1538 = vmatprep.subr.bf16.mxu0 0
      %1539 = vmatpush1.bf16.msra.mxu0 %v1466
      %1540 = vmatprep.subr.bf16.mxu0 0
      %1541 = vmatpush1.bf16.msra.mxu0 %v1467
      %1542 = vmatprep.subr.bf16.mxu0 0
      %1543 = vmatpush1.bf16.msra.mxu0 %v1468
      %1544 = vmatprep.subr.bf16.mxu0 0
      %1545 = vmatpush1.bf16.msra.mxu0 %v1469
      %1546 = vmatprep.subr.bf16.mxu0 0
      %1547 = vmatpush1.bf16.msra.mxu0 %v1470
      %1548 = vmatprep.subr.bf16.mxu0 0
      %1549 = vmatpush1.bf16.msra.mxu0 %v1471
      %1550 = vmatprep.subr.bf16.mxu0 0
      %1551 = vmatpush1.bf16.msra.mxu0 %v1472
      %1552 = vmatprep.subr.bf16.mxu0 0
      %1553 = vmatpush1.bf16.msra.mxu0 %v1473
      %1554 = vmatprep.mubr.bf16.mxu0 %v1323
      %1555 = vmatmul.mubr.bf16.gmra.mrb[0].mxu0 %v1322
      %v1556 = vpop.f32.mrb[0].mxu0
      %v1557 = vadd.f32 0.0, %v1556
      %v1558 = vpop.f32.mrb[0].mxu0
      %v1559 = vpop.f32.mrb[0].mxu0
      %v1560 = vadd.f32 0.0, %v1559
      %v1561 = vpop.f32.mrb[0].mxu0
      %1562 = vdwg.mxu0
      %1563 = vmatprep.subr.bf16.mxu0 0
      %1564 = vmatpush1.bf16.msra.mxu0 %v1474
      %1565 = vmatprep.subr.bf16.mxu0 0
      %1566 = vmatpush1.bf16.msra.mxu0 %v1475
      %1567 = vmatprep.subr.bf16.mxu0 0
      %1568 = vmatpush1.bf16.msra.mxu0 %v1476
      %1569 = vmatprep.subr.bf16.mxu0 0
      %1570 = vmatpush1.bf16.msra.mxu0 %v1477
      %1571 = vmatprep.subr.bf16.mxu0 0
      %1572 = vmatpush1.bf16.msra.mxu0 %v1478
      %1573 = vmatprep.subr.bf16.mxu0 0
      %1574 = vmatpush1.bf16.msra.mxu0 %v1479
      %1575 = vmatprep.subr.bf16.mxu0 0
      %1576 = vmatpush1.bf16.msra.mxu0 %v1480
      %1577 = vmatprep.subr.bf16.mxu0 0
      %1578 = vmatpush1.bf16.msra.mxu0 %v1481
      %1579 = vmatprep.subr.bf16.mxu0 0
      %1580 = vmatpush1.bf16.msra.mxu0 %v1482
      %1581 = vmatprep.subr.bf16.mxu0 0
      %1582 = vmatpush1.bf16.msra.mxu0 %v1483
      %1583 = vmatprep.subr.bf16.mxu0 0
      %1584 = vmatpush1.bf16.msra.mxu0 %v1484
      %1585 = vmatprep.subr.bf16.mxu0 0
      %1586 = vmatpush1.bf16.msra.mxu0 %v1485
      %1587 = vmatprep.subr.bf16.mxu0 0
      %1588 = vmatpush1.bf16.msra.mxu0 %v1486
      %1589 = vmatprep.subr.bf16.mxu0 0
      %1590 = vmatpush1.bf16.msra.mxu0 %v1487
      %1591 = vmatprep.subr.bf16.mxu0 0
      %1592 = vmatpush1.bf16.msra.mxu0 %v1488
      %1593 = vmatprep.subr.bf16.mxu0 0
      %1594 = vmatpush1.bf16.msra.mxu0 %v1489
      %1595 = vmatprep.mubr.bf16.mxu0 %v1325
      %1596 = vmatmul.mubr.bf16.gmra.mrb[0].mxu0 %v1324
      %v1597 = vpop.f32.mrb[0].mxu0
      %v1598 = vadd.f32 %v1557, %v1597
      %v1599 = vpop.f32.mrb[0].mxu0
      %v1600 = vpop.f32.mrb[0].mxu0
      %v1601 = vadd.f32 %v1560, %v1600
      %v1602 = vpop.f32.mrb[0].mxu0
      %1603 = vdwg.mxu0
      %v1604 = vadd.f32 %v1142, %v1598
      %v1605 = vadd.f32 %v1145, %v1601
      %v1606 = vld [vmem:[%s1148] sm:$0x77]
      %v1607 = vld [vmem:[%s1148 + $0x8] sm:$0x77]
      %v1608 = vld [vmem:[%s1148 + $0x10] sm:$0x77]
      %v1609 = vld [vmem:[%s1148 + $0x18] sm:$0x77]
      %v1610 = vld [vmem:[%s1148 + $0x20] sm:$0x77]
      %v1611 = vld [vmem:[%s1148 + $0x28] sm:$0x77]
      %v1612 = vld [vmem:[%s1148 + $0x30] sm:$0x77]
      %v1613 = vld [vmem:[%s1148 + $0x38] sm:$0x77]
      %v1623 = vunpack.c.l.s4 1983009808
      %v1624 = vunpack.c.0.s8 %v1623
      %v1625 = vlaneseq
      %v1626 = vshrl.u32 %v1625, 7
      %v1627 = vsub.s32 %v1624, %v1626
      %v1628 = vrot.slane %v1606, %v1627
      %v1630 = vunpack.c.l.s4 1983009808
      %v1631 = vunpack.c.0.s8 %v1630
      %v1632 = vlaneseq
      %v1633 = vshrl.u32 %v1632, 7
      %v1634 = vsub.s32 %v1631, %v1633
      %v1635 = vrot.slane %v1607, %v1634
      %v1636 = vcombine.low %v1628, %v1635
      %v1637 = vcombine.high %v1628, %v1635
      %v1639 = vunpack.c.l.s4 1983009808
      %v1640 = vunpack.c.0.s8 %v1639
      %v1641 = vlaneseq
      %v1642 = vshrl.u32 %v1641, 7
      %v1643 = vsub.s32 %v1640, %v1642
      %v1644 = vrot.slane %v1608, %v1643
      %v1646 = vunpack.c.l.s4 1983009808
      %v1647 = vunpack.c.0.s8 %v1646
      %v1648 = vlaneseq
      %v1649 = vshrl.u32 %v1648, 7
      %v1650 = vsub.s32 %v1647, %v1649
      %v1651 = vrot.slane %v1609, %v1650
      %v1652 = vcombine.low %v1644, %v1651
      %v1653 = vcombine.high %v1644, %v1651
      %v1655 = vunpack.c.l.s4 1983009808
      %v1656 = vunpack.c.0.s8 %v1655
      %v1657 = vlaneseq
      %v1658 = vshrl.u32 %v1657, 7
      %v1659 = vsub.s32 %v1656, %v1658
      %v1660 = vrot.slane %v1610, %v1659
      %v1662 = vunpack.c.l.s4 1983009808
      %v1663 = vunpack.c.0.s8 %v1662
      %v1664 = vlaneseq
      %v1665 = vshrl.u32 %v1664, 7
      %v1666 = vsub.s32 %v1663, %v1665
      %v1667 = vrot.slane %v1611, %v1666
      %v1668 = vcombine.low %v1660, %v1667
      %v1669 = vcombine.high %v1660, %v1667
      %v1671 = vunpack.c.l.s4 1983009808
      %v1672 = vunpack.c.0.s8 %v1671
      %v1673 = vlaneseq
      %v1674 = vshrl.u32 %v1673, 7
      %v1675 = vsub.s32 %v1672, %v1674
      %v1676 = vrot.slane %v1612, %v1675
      %v1678 = vunpack.c.l.s4 1983009808
      %v1679 = vunpack.c.0.s8 %v1678
      %v1680 = vlaneseq
      %v1681 = vshrl.u32 %v1680, 7
      %v1682 = vsub.s32 %v1679, %v1681
      %v1683 = vrot.slane %v1613, %v1682
      %v1684 = vcombine.low %v1676, %v1683
      %v1685 = vcombine.high %v1676, %v1683
      %v1687 = vshrl.u32 %v1636, 16
      %v1689 = vrot.slane %v1687, 6
      %v1690 = vshll.u32 %v1636, 16
      %v1692 = vrot.slane %v1690, 7
      %v1693 = vor.u32 %v1689, %v1692
      %v1694 = vrot.slane %v1693, 2
      %v1696 = vshll.u32 %v1637, 16
      %v1698 = vrot.slane %v1696, 7
      %v1699 = vsel %vm398, %v1694, %v1698
      %v1701 = vshrl.u32 %v1652, 16
      %v1703 = vrot.slane %v1701, 6
      %v1704 = vshll.u32 %v1652, 16
      %v1706 = vrot.slane %v1704, 7
      %v1707 = vor.u32 %v1703, %v1706
      %v1708 = vrot.slane %v1707, 2
      %v1710 = vshll.u32 %v1653, 16
      %v1712 = vrot.slane %v1710, 7
      %v1713 = vsel %vm398, %v1708, %v1712
      %v1715 = vshrl.u32 %v1668, 16
      %v1717 = vrot.slane %v1715, 6
      %v1718 = vshll.u32 %v1668, 16
      %v1720 = vrot.slane %v1718, 7
      %v1721 = vor.u32 %v1717, %v1720
      %v1722 = vrot.slane %v1721, 2
      %v1724 = vshll.u32 %v1669, 16
      %v1726 = vrot.slane %v1724, 7
      %v1727 = vsel %vm398, %v1722, %v1726
      %v1729 = vshrl.u32 %v1684, 16
      %v1731 = vrot.slane %v1729, 6
      %v1732 = vshll.u32 %v1684, 16
      %v1734 = vrot.slane %v1732, 7
      %v1735 = vor.u32 %v1731, %v1734
      %v1736 = vrot.slane %v1735, 2
      %v1738 = vshll.u32 %v1685, 16
      %v1740 = vrot.slane %v1738, 7
      %v1741 = vsel %vm398, %v1736, %v1740
      %s1742 = scalar_lea.vmem %s1, 768
      %v1743 = vld [vmem:[%s1742] sm:$0xf]
      %v1744 = vld [vmem:[%s1742 + $0x4] sm:$0xf]
      %v1745 = vld [vmem:[%s1742 + $0x8] sm:$0xf]
      %v1746 = vld [vmem:[%s1742 + $0xc] sm:$0xf]
      %v1747 = vld [vmem:[%s1742 + $0x10] sm:$0xf]
      %v1748 = vld [vmem:[%s1742 + $0x14] sm:$0xf]
      %v1749 = vld [vmem:[%s1742 + $0x18] sm:$0xf]
      %v1750 = vld [vmem:[%s1742 + $0x1c] sm:$0xf]
      %v1751 = vld [vmem:[%s1742 + $0x20] sm:$0xf]
      %v1752 = vld [vmem:[%s1742 + $0x24] sm:$0xf]
      %v1753 = vld [vmem:[%s1742 + $0x28] sm:$0xf]
      %v1754 = vld [vmem:[%s1742 + $0x2c] sm:$0xf]
      %v1755 = vld [vmem:[%s1742 + $0x30] sm:$0xf]
      %v1756 = vld [vmem:[%s1742 + $0x34] sm:$0xf]
      %v1757 = vld [vmem:[%s1742 + $0x38] sm:$0xf]
      %v1758 = vld [vmem:[%s1742 + $0x3c] sm:$0xf]
      %v1759 = vld [vmem:[%s1742 + $0x40] sm:$0xf]
      %v1760 = vld [vmem:[%s1742 + $0x44] sm:$0xf]
      %v1761 = vld [vmem:[%s1742 + $0x48] sm:$0xf]
      %v1762 = vld [vmem:[%s1742 + $0x4c] sm:$0xf]
      %v1763 = vld [vmem:[%s1742 + $0x50] sm:$0xf]
      %v1764 = vld [vmem:[%s1742 + $0x54] sm:$0xf]
      %v1765 = vld [vmem:[%s1742 + $0x58] sm:$0xf]
      %v1766 = vld [vmem:[%s1742 + $0x5c] sm:$0xf]
      %v1767 = vld [vmem:[%s1742 + $0x60] sm:$0xf]
      %v1768 = vld [vmem:[%s1742 + $0x64] sm:$0xf]
      %v1769 = vld [vmem:[%s1742 + $0x68] sm:$0xf]
      %v1770 = vld [vmem:[%s1742 + $0x6c] sm:$0xf]
      %v1771 = vld [vmem:[%s1742 + $0x70] sm:$0xf]
      %v1772 = vld [vmem:[%s1742 + $0x74] sm:$0xf]
      %v1773 = vld [vmem:[%s1742 + $0x78] sm:$0xf]
      %v1774 = vld [vmem:[%s1742 + $0x7c] sm:$0xf]
      %v1775 = vld [vmem:[%s1742 + $0x80] sm:$0xf]
      %v1776 = vld [vmem:[%s1742 + $0x84] sm:$0xf]
      %v1777 = vld [vmem:[%s1742 + $0x88] sm:$0xf]
      %v1778 = vld [vmem:[%s1742 + $0x8c] sm:$0xf]
      %v1779 = vld [vmem:[%s1742 + $0x90] sm:$0xf]
      %v1780 = vld [vmem:[%s1742 + $0x94] sm:$0xf]
      %v1781 = vld [vmem:[%s1742 + $0x98] sm:$0xf]
      %v1782 = vld [vmem:[%s1742 + $0x9c] sm:$0xf]
      %v1783 = vld [vmem:[%s1742 + $0xa0] sm:$0xf]
      %v1784 = vld [vmem:[%s1742 + $0xa4] sm:$0xf]
      %v1785 = vld [vmem:[%s1742 + $0xa8] sm:$0xf]
      %v1786 = vld [vmem:[%s1742 + $0xac] sm:$0xf]
      %v1787 = vld [vmem:[%s1742 + $0xb0] sm:$0xf]
      %v1788 = vld [vmem:[%s1742 + $0xb4] sm:$0xf]
      %v1789 = vld [vmem:[%s1742 + $0xb8] sm:$0xf]
      %v1790 = vld [vmem:[%s1742 + $0xbc] sm:$0xf]
      %v1791 = vld [vmem:[%s1742 + $0xc0] sm:$0xf]
      %v1792 = vld [vmem:[%s1742 + $0xc4] sm:$0xf]
      %v1793 = vld [vmem:[%s1742 + $0xc8] sm:$0xf]
      %v1794 = vld [vmem:[%s1742 + $0xcc] sm:$0xf]
      %v1795 = vld [vmem:[%s1742 + $0xd0] sm:$0xf]
      %v1796 = vld [vmem:[%s1742 + $0xd4] sm:$0xf]
      %v1797 = vld [vmem:[%s1742 + $0xd8] sm:$0xf]
      %v1798 = vld [vmem:[%s1742 + $0xdc] sm:$0xf]
      %v1799 = vld [vmem:[%s1742 + $0xe0] sm:$0xf]
      %v1800 = vld [vmem:[%s1742 + $0xe4] sm:$0xf]
      %v1801 = vld [vmem:[%s1742 + $0xe8] sm:$0xf]
      %v1802 = vld [vmem:[%s1742 + $0xec] sm:$0xf]
      %v1803 = vld [vmem:[%s1742 + $0xf0] sm:$0xf]
      %v1804 = vld [vmem:[%s1742 + $0xf4] sm:$0xf]
      %v1805 = vld [vmem:[%s1742 + $0xf8] sm:$0xf]
      %v1806 = vld [vmem:[%s1742 + $0xfc] sm:$0xf]
      %v1807 = vcombine.low %v1699, %v1713
      %v1808 = vcombine.high %v1699, %v1713
      %v1809 = vcombine.low %v1727, %v1741
      %v1810 = vcombine.high %v1727, %v1741
      %v1812 = vunpack.c.l.s4 1983009808
      %v1813 = vunpack.c.0.s8 %v1812
      %v1814 = vlaneseq
      %v1815 = vshrl.u32 %v1814, 7
      %v1816 = vsub.s32 %v1813, %v1815
      %v1817 = vrot.slane %v1807, %v1816
      %v1819 = vunpack.c.l.s4 1983009808
      %v1820 = vunpack.c.0.s8 %v1819
      %v1821 = vlaneseq
      %v1822 = vshrl.u32 %v1821, 7
      %v1823 = vsub.s32 %v1820, %v1822
      %v1824 = vrot.slane %v1808, %v1823
      %v1826 = vunpack.c.l.s4 1983009808
      %v1827 = vunpack.c.0.s8 %v1826
      %v1828 = vlaneseq
      %v1829 = vshrl.u32 %v1828, 7
      %v1830 = vsub.s32 %v1827, %v1829
      %v1831 = vrot.slane %v1809, %v1830
      %v1833 = vunpack.c.l.s4 1983009808
      %v1834 = vunpack.c.0.s8 %v1833
      %v1835 = vlaneseq
      %v1836 = vshrl.u32 %v1835, 7
      %v1837 = vsub.s32 %v1834, %v1836
      %v1838 = vrot.slane %v1810, %v1837
      %v1839 = vcombine.low %v1817, %v1831
      %v1840 = vcombine.high %v1817, %v1831
      %v1841 = vcombine.low %v1824, %v1838
      %v1842 = vcombine.high %v1824, %v1838
      %v1911 = vunpack.c.l.b16 %v1743
      %v1912 = vunpack.c.l.b16 %v1744
      %v1913 = vunpack.c.l.b16 %v1745
      %v1914 = vunpack.c.l.b16 %v1746
      %v1915 = vunpack.c.l.b16 %v1747
      %v1916 = vunpack.c.l.b16 %v1748
      %v1917 = vunpack.c.l.b16 %v1749
      %v1918 = vunpack.c.l.b16 %v1750
      %v1919 = vunpack.c.l.b16 %v1751
      %v1920 = vunpack.c.l.b16 %v1752
      %v1921 = vunpack.c.l.b16 %v1753
      %v1922 = vunpack.c.l.b16 %v1754
      %v1923 = vunpack.c.l.b16 %v1755
      %v1924 = vunpack.c.l.b16 %v1756
      %v1925 = vunpack.c.l.b16 %v1757
      %v1926 = vunpack.c.l.b16 %v1758
      %v1927 = vunpack.c.l.b16 %v1759
      %v1928 = vunpack.c.l.b16 %v1760
      %v1929 = vunpack.c.l.b16 %v1761
      %v1930 = vunpack.c.l.b16 %v1762
      %v1931 = vunpack.c.l.b16 %v1763
      %v1932 = vunpack.c.l.b16 %v1764
      %v1933 = vunpack.c.l.b16 %v1765
      %v1934 = vunpack.c.l.b16 %v1766
      %v1935 = vunpack.c.l.b16 %v1767
      %v1936 = vunpack.c.l.b16 %v1768
      %v1937 = vunpack.c.l.b16 %v1769
      %v1938 = vunpack.c.l.b16 %v1770
      %v1939 = vunpack.c.l.b16 %v1771
      %v1940 = vunpack.c.l.b16 %v1772
      %v1941 = vunpack.c.l.b16 %v1773
      %v1942 = vunpack.c.l.b16 %v1774
      %v1943 = vunpack.c.l.b16 %v1775
      %v1944 = vunpack.c.l.b16 %v1776
      %v1945 = vunpack.c.l.b16 %v1777
      %v1946 = vunpack.c.l.b16 %v1778
      %v1947 = vunpack.c.l.b16 %v1779
      %v1948 = vunpack.c.l.b16 %v1780
      %v1949 = vunpack.c.l.b16 %v1781
      %v1950 = vunpack.c.l.b16 %v1782
      %v1951 = vunpack.c.l.b16 %v1783
      %v1952 = vunpack.c.l.b16 %v1784
      %v1953 = vunpack.c.l.b16 %v1785
      %v1954 = vunpack.c.l.b16 %v1786
      %v1955 = vunpack.c.l.b16 %v1787
      %v1956 = vunpack.c.l.b16 %v1788
      %v1957 = vunpack.c.l.b16 %v1789
      %v1958 = vunpack.c.l.b16 %v1790
      %v1959 = vunpack.c.l.b16 %v1791
      %v1960 = vunpack.c.l.b16 %v1792
      %v1961 = vunpack.c.l.b16 %v1793
      %v1962 = vunpack.c.l.b16 %v1794
      %v1963 = vunpack.c.l.b16 %v1795
      %v1964 = vunpack.c.l.b16 %v1796
      %v1965 = vunpack.c.l.b16 %v1797
      %v1966 = vunpack.c.l.b16 %v1798
      %v1967 = vunpack.c.l.b16 %v1799
      %v1968 = vunpack.c.l.b16 %v1800
      %v1969 = vunpack.c.l.b16 %v1801
      %v1970 = vunpack.c.l.b16 %v1802
      %v1971 = vunpack.c.l.b16 %v1803
      %v1972 = vunpack.c.l.b16 %v1804
      %v1973 = vunpack.c.l.b16 %v1805
      %v1974 = vunpack.c.l.b16 %v1806
      %v1975 = vpack.c.b16 %v1912, %v1911
      %v1976 = vpack.c.b16 %v1914, %v1913
      %v1977 = vpack.c.b16 %v1916, %v1915
      %v1978 = vpack.c.b16 %v1918, %v1917
      %v1979 = vpack.c.b16 %v1920, %v1919
      %v1980 = vpack.c.b16 %v1922, %v1921
      %v1981 = vpack.c.b16 %v1924, %v1923
      %v1982 = vpack.c.b16 %v1926, %v1925
      %v1983 = vpack.c.b16 %v1928, %v1927
      %v1984 = vpack.c.b16 %v1930, %v1929
      %v1985 = vpack.c.b16 %v1932, %v1931
      %v1986 = vpack.c.b16 %v1934, %v1933
      %v1987 = vpack.c.b16 %v1936, %v1935
      %v1988 = vpack.c.b16 %v1938, %v1937
      %v1989 = vpack.c.b16 %v1940, %v1939
      %v1990 = vpack.c.b16 %v1942, %v1941
      %v1991 = vpack.c.b16 %v1944, %v1943
      %v1992 = vpack.c.b16 %v1946, %v1945
      %v1993 = vpack.c.b16 %v1948, %v1947
      %v1994 = vpack.c.b16 %v1950, %v1949
      %v1995 = vpack.c.b16 %v1952, %v1951
      %v1996 = vpack.c.b16 %v1954, %v1953
      %v1997 = vpack.c.b16 %v1956, %v1955
      %v1998 = vpack.c.b16 %v1958, %v1957
      %v1999 = vpack.c.b16 %v1960, %v1959
      %v2000 = vpack.c.b16 %v1962, %v1961
      %v2001 = vpack.c.b16 %v1964, %v1963
      %v2002 = vpack.c.b16 %v1966, %v1965
      %v2003 = vpack.c.b16 %v1968, %v1967
      %v2004 = vpack.c.b16 %v1970, %v1969
      %v2005 = vpack.c.b16 %v1972, %v1971
      %v2006 = vpack.c.b16 %v1974, %v1973
      %2039 = vmatprep.subr.bf16.mxu0 0
      %2040 = vmatpush1.bf16.msra.mxu0 %v1975
      %2041 = vmatprep.subr.bf16.mxu0 0
      %2042 = vmatpush1.bf16.msra.mxu0 %v1976
      %2043 = vmatprep.subr.bf16.mxu0 0
      %2044 = vmatpush1.bf16.msra.mxu0 %v1977
      %2045 = vmatprep.subr.bf16.mxu0 0
      %2046 = vmatpush1.bf16.msra.mxu0 %v1978
      %2047 = vmatprep.subr.bf16.mxu0 0
      %2048 = vmatpush1.bf16.msra.mxu0 %v1979
      %2049 = vmatprep.subr.bf16.mxu0 0
      %2050 = vmatpush1.bf16.msra.mxu0 %v1980
      %2051 = vmatprep.subr.bf16.mxu0 0
      %2052 = vmatpush1.bf16.msra.mxu0 %v1981
      %2053 = vmatprep.subr.bf16.mxu0 0
      %2054 = vmatpush1.bf16.msra.mxu0 %v1982
      %2055 = vmatprep.subr.bf16.mxu0 0
      %2056 = vmatpush1.bf16.msra.mxu0 %v1983
      %2057 = vmatprep.subr.bf16.mxu0 0
      %2058 = vmatpush1.bf16.msra.mxu0 %v1984
      %2059 = vmatprep.subr.bf16.mxu0 0
      %2060 = vmatpush1.bf16.msra.mxu0 %v1985
      %2061 = vmatprep.subr.bf16.mxu0 0
      %2062 = vmatpush1.bf16.msra.mxu0 %v1986
      %2063 = vmatprep.subr.bf16.mxu0 0
      %2064 = vmatpush1.bf16.msra.mxu0 %v1987
      %2065 = vmatprep.subr.bf16.mxu0 0
      %2066 = vmatpush1.bf16.msra.mxu0 %v1988
      %2067 = vmatprep.subr.bf16.mxu0 0
      %2068 = vmatpush1.bf16.msra.mxu0 %v1989
      %2069 = vmatprep.subr.bf16.mxu0 0
      %2070 = vmatpush1.bf16.msra.mxu0 %v1990
      %2071 = vmatprep.mubr.bf16.mxu0 %v1840
      %2072 = vmatmul.mubr.bf16.gmra.mrb[0].mxu0 %v1839
      %v2073 = vpop.f32.mrb[0].mxu0
      %v2074 = vadd.f32 0.0, %v2073
      %v2075 = vpop.f32.mrb[0].mxu0
      %v2076 = vpop.f32.mrb[0].mxu0
      %v2077 = vadd.f32 0.0, %v2076
      %v2078 = vpop.f32.mrb[0].mxu0
      %2079 = vdwg.mxu0
      %2080 = vmatprep.subr.bf16.mxu0 0
      %2081 = vmatpush1.bf16.msra.mxu0 %v1991
      %2082 = vmatprep.subr.bf16.mxu0 0
      %2083 = vmatpush1.bf16.msra.mxu0 %v1992
      %2084 = vmatprep.subr.bf16.mxu0 0
      %2085 = vmatpush1.bf16.msra.mxu0 %v1993
      %2086 = vmatprep.subr.bf16.mxu0 0
      %2087 = vmatpush1.bf16.msra.mxu0 %v1994
      %2088 = vmatprep.subr.bf16.mxu0 0
      %2089 = vmatpush1.bf16.msra.mxu0 %v1995
      %2090 = vmatprep.subr.bf16.mxu0 0
      %2091 = vmatpush1.bf16.msra.mxu0 %v1996
      %2092 = vmatprep.subr.bf16.mxu0 0
      %2093 = vmatpush1.bf16.msra.mxu0 %v1997
      %2094 = vmatprep.subr.bf16.mxu0 0
      %2095 = vmatpush1.bf16.msra.mxu0 %v1998
      %2096 = vmatprep.subr.bf16.mxu0 0
      %2097 = vmatpush1.bf16.msra.mxu0 %v1999
      %2098 = vmatprep.subr.bf16.mxu0 0
      %2099 = vmatpush1.bf16.msra.mxu0 %v2000
      %2100 = vmatprep.subr.bf16.mxu0 0
      %2101 = vmatpush1.bf16.msra.mxu0 %v2001
      %2102 = vmatprep.subr.bf16.mxu0 0
      %2103 = vmatpush1.bf16.msra.mxu0 %v2002
      %2104 = vmatprep.subr.bf16.mxu0 0
      %2105 = vmatpush1.bf16.msra.mxu0 %v2003
      %2106 = vmatprep.subr.bf16.mxu0 0
      %2107 = vmatpush1.bf16.msra.mxu0 %v2004
      %2108 = vmatprep.subr.bf16.mxu0 0
      %2109 = vmatpush1.bf16.msra.mxu0 %v2005
      %2110 = vmatprep.subr.bf16.mxu0 0
      %2111 = vmatpush1.bf16.msra.mxu0 %v2006
      %2112 = vmatprep.mubr.bf16.mxu0 %v1842
      %2113 = vmatmul.mubr.bf16.gmra.mrb[0].mxu0 %v1841
      %v2114 = vpop.f32.mrb[0].mxu0
      %v2115 = vadd.f32 %v2074, %v2114
      %v2116 = vpop.f32.mrb[0].mxu0
      %v2117 = vpop.f32.mrb[0].mxu0
      %v2118 = vadd.f32 %v2077, %v2117
      %v2119 = vpop.f32.mrb[0].mxu0
      %2120 = vdwg.mxu0
      %v2121 = vadd.f32 %v1604, %v2115
      %v2122 = vadd.f32 %v1605, %v2118
      %v2123 = vld [vmem:[%s2] sm:$0x1]
      %v2125 = vlaneseq
      %v2126 = vshrl.u32 %v2125, 7
      %v2127 = vsub.s32 0, %v2126
      %v2128 = vrot.slane %v2123, %v2127
      %v2130 = vadd.f32 %v2121, %v2128
      %v2131 = vadd.f32 %v2122, %v2128
      %v2132 = vadd.f32 %v2130, %v2131
      %v2133 = vrot.slane %v2132, 4
      %v2134 = vadd.f32 %v2132, %v2133
      %v2135 = vrot.slane %v2134, 2
      %v2136 = vadd.f32 %v2134, %v2135
      %v2137 = vrot.slane %v2136, 1
      %v2138 = vadd.f32 %v2136, %v2137
      %v2139 = vmul.f32 %v2138, 0.0625
      %v2140 = vmul.f32 %v2130, %v2130
      %v2141 = vmul.f32 %v2131, %v2131
      %v2142 = vadd.f32 %v2140, %v2141
      %v2143 = vrot.slane %v2142, 4
      %v2144 = vadd.f32 %v2142, %v2143
      %v2145 = vrot.slane %v2144, 2
      %v2146 = vadd.f32 %v2144, %v2145
      %v2147 = vrot.slane %v2146, 1
      %v2148 = vadd.f32 %v2146, %v2147
      %v2149 = vmul.f32 %v2148, 0.0625
      %v2150 = vmul.f32 %v2139, %v2139
      %v2151 = vsub.f32 %v2149, %v2150
      %v2152 = vmax.f32 %v2151, 0.0
      %v2153 = vsub.f32 %v2130, %v2139
      %v2154 = vsub.f32 %v2131, %v2139
      %v2155 = vadd.f32 %v2152, 1e-08
      %v2156 = vrsqrt.pop %v2155
      %v2157 = vmul.f32 %v2153, %v2156
      %v2158 = vmul.f32 %v2154, %v2156
      %vm2159 = vcmp.gt.f32.partialorder %v2157, 0.0
      %vm2160 = vcmp.gt.f32.partialorder %v2158, 0.0
      %v2161 = vmul.f32 %v2157, 0.2
      %v2162 = vmul.f32 %v2158, 0.2
      %v2163 = vsel %vm2159, %v2157, %v2161
      %v2164 = vsel %vm2160, %v2158, %v2162
      %v2165 = vpack.c.bf16 %v2164, %v2163
      %v2167 = vunpack.c.l.b16 %v2165
      %v2168 = vunpack.c.h.b16 %v2165
      %v2169 = vpack.c.b16 %v2167, %v2167
      %v2170 = vpack.c.b16 %v2168, %v2168
      %2173 = vst [vmem:[%s170] sm:$0xf] %v2169
      %2174 = vst [vmem:[%s170 + $0x4] sm:$0xf] %v2170
      %p2175 = scmp.lt.s32.totalorder %s14, 1
      %s2176 = scalar_select %p2175, %s14, 1
      %s2177 = smul.addr %s2176, 2
      %s2178 = smul.addr %s2177, 4
      %s2179 = scalar_lea.vmem %s3, %s2178
      // Predicated region
      $region33: #{_lambda_.4} parent=31 // pred_check
        %p2180 = pneg %p100
      $region34: #{_lambda_.4} parent=31 // pred_check_branch
        %2182 = sbr.rel (%p2180) target = $region36
      $region35: #{_lambda_.4} parent=31 // pred_region
        _
      $region36: #{_lambda_.4} parent=31 // pred_fallthru
        _
    $region32: #{_lambda_.4} parent=5 // pred_fallthru
      _
    %p2183 = scmp.le.s32.totalorder 2, %s9
    // Predicated region
    $region37: #{_lambda_.4} parent=5 // pred_check
      %p2184 = pneg %p2183
    $region38: #{_lambda_.4} parent=5 // pred_check_branch
      %2186 = sbr.rel (%p2184) target = $region40
    $region39: #{_lambda_.4} parent=5 // pred_region
      %s2187 = ssub.s32 %s9, 2
      // Predicated region
      $region41: #{_lambda_.4} parent=39 // pred_check
        %p2188 = pneg %p106
      $region42: #{_lambda_.4} parent=39 // pred_check_branch
        %2190 = sbr.rel (%p2188) target = $region44
      $region43: #{_lambda_.4} parent=39 // pred_region
        %p2191 = scmp.lt.s32.totalorder %s15, 1
        %s2192 = scalar_select %p2191, %s15, 1
        %s2193 = smul.addr %s2192, 2
        %s2194 = smul.addr %s2193, 4
        %s2195 = scalar_lea.vmem %s3, %s2194
      $region44: #{_lambda_.4} parent=39 // pred_fallthru
        _
    $region40: #{_lambda_.4} parent=5 // pred_fallthru
      _
  $region6: #{_lambda_.4} parent=0 // loop_footer
    %s13 = sadd.s32 1, %s9
  $region7: #{_lambda_.4} parent=0 // loop_footer_branch
    %8 = sbr.rel target = $region3
  $region8: #{_lambda_.4} parent=0 // loop_exit
    _

// kernel: _lambda_.5
$region0: #{_lambda_.5}
  #allocation0 [shape = 'u32[]', space=smem, size = 0x4, offset = 0x4, fixed_abs, tag = 'smem constant byte address 0x4 - core index']
  #allocation1 [shape = 'u32[144,128]{1,0:T(1,128)}', space=vmem, size = 0x12000, scoped, tag = 'internal scratch']
  %s0 = inlined_call_operand.vmem [shape: bf16[2,2048], index: 0, kind: input, shape index: {}]
  %s1 = inlined_call_operand.vmem [shape: bf16[2048,128], index: 1, kind: input, shape index: {}]
  %s2 = inlined_call_operand.vmem [shape: f32[1,128], index: 2, kind: input, shape index: {}]
  %s3 = inlined_call_operand.hbm [shape: f32[2,128], index: 3, kind: output, shape index: {}]
  %s4 = sld [smem:[#allocation0]]
  $region22: #{_lambda_.5} parent=0
    _
  %s6 = ssub.s32 1, %s4
  %s7 = scalar_select 0, %s6, %s4
  $region1: #{_lambda_.5} parent=0
    #allocation2 [shape = 'u8[1024]{0}', space=vmem, size = 0x400, scoped, tag = 'output window, operand 0, single buffered']
    #allocation3 [shape = 's32[1]{0}', space=sflag, size = 0x4, scoped, tag = 'scoped memory for _lambda_.5']
    %8 = vsyncpa [#allocation3], 0
    // Predicated region
    $region2: #{_lambda_.5} parent=1 // pred_check
      _
    $region3: #{_lambda_.5} parent=1 // pred_check_branch
      %10 = sbr.rel (0) target = $region5
    $region4: #{_lambda_.5} parent=1 // pred_region
      _
    $region5: #{_lambda_.5} parent=1 // pred_fallthru
      _
    // Predicated region
    $region6: #{_lambda_.5} parent=1 // pred_check
      _
    $region7: #{_lambda_.5} parent=1 // pred_check_branch
      %12 = sbr.rel (0) target = $region9
    $region8: #{_lambda_.5} parent=1 // pred_region
      _
    $region9: #{_lambda_.5} parent=1 // pred_fallthru
      _
    // Predicated region
    $region10: #{_lambda_.5} parent=1 // pred_check
      _
    $region11: #{_lambda_.5} parent=1 // pred_check_branch
      %14 = sbr.rel (0) target = $region13
    $region12: #{_lambda_.5} parent=1 // pred_region
      _
    $region13: #{_lambda_.5} parent=1 // pred_fallthru
      _
    %v16 = vld [vmem:[%s0] sm:$0xff]
    %v17 = vld [vmem:[%s0 + $0x8] sm:$0xff]
    %v18 = vld [vmem:[%s1] sm:$0xf]
    %v19 = vld [vmem:[%s1 + $0x4] sm:$0xf]
    %v20 = vld [vmem:[%s1 + $0x8] sm:$0xf]
    %v21 = vld [vmem:[%s1 + $0xc] sm:$0xf]
    %v22 = vld [vmem:[%s1 + $0x10] sm:$0xf]
    %v23 = vld [vmem:[%s1 + $0x14] sm:$0xf]
    %v24 = vld [vmem:[%s1 + $0x18] sm:$0xf]
    %v25 = vld [vmem:[%s1 + $0x1c] sm:$0xf]
    %v26 = vld [vmem:[%s1 + $0x20] sm:$0xf]
    %v27 = vld [vmem:[%s1 + $0x24] sm:$0xf]
    %v28 = vld [vmem:[%s1 + $0x28] sm:$0xf]
    %v29 = vld [vmem:[%s1 + $0x2c] sm:$0xf]
    %v30 = vld [vmem:[%s1 + $0x30] sm:$0xf]
    %v31 = vld [vmem:[%s1 + $0x34] sm:$0xf]
    %v32 = vld [vmem:[%s1 + $0x38] sm:$0xf]
    %v33 = vld [vmem:[%s1 + $0x3c] sm:$0xf]
    %v34 = vld [vmem:[%s1 + $0x40] sm:$0xf]
    %v35 = vld [vmem:[%s1 + $0x44] sm:$0xf]
    %v36 = vld [vmem:[%s1 + $0x48] sm:$0xf]
    %v37 = vld [vmem:[%s1 + $0x4c] sm:$0xf]
    %v38 = vld [vmem:[%s1 + $0x50] sm:$0xf]
    %v39 = vld [vmem:[%s1 + $0x54] sm:$0xf]
    %v40 = vld [vmem:[%s1 + $0x58] sm:$0xf]
    %v41 = vld [vmem:[%s1 + $0x5c] sm:$0xf]
    %v42 = vld [vmem:[%s1 + $0x60] sm:$0xf]
    %v43 = vld [vmem:[%s1 + $0x64] sm:$0xf]
    %v44 = vld [vmem:[%s1 + $0x68] sm:$0xf]
    %v45 = vld [vmem:[%s1 + $0x6c] sm:$0xf]
    %v46 = vld [vmem:[%s1 + $0x70] sm:$0xf]
    %v47 = vld [vmem:[%s1 + $0x74] sm:$0xf]
    %v48 = vld [vmem:[%s1 + $0x78] sm:$0xf]
    %v49 = vld [vmem:[%s1 + $0x7c] sm:$0xf]
    %v50 = vld [vmem:[%s1 + $0x80] sm:$0xf]
    %v51 = vld [vmem:[%s1 + $0x84] sm:$0xf]
    %v52 = vld [vmem:[%s1 + $0x88] sm:$0xf]
    %v53 = vld [vmem:[%s1 + $0x8c] sm:$0xf]
    %v54 = vld [vmem:[%s1 + $0x90] sm:$0xf]
    %v55 = vld [vmem:[%s1 + $0x94] sm:$0xf]
    %v56 = vld [vmem:[%s1 + $0x98] sm:$0xf]
    %v57 = vld [vmem:[%s1 + $0x9c] sm:$0xf]
    %v58 = vld [vmem:[%s1 + $0xa0] sm:$0xf]
    %v59 = vld [vmem:[%s1 + $0xa4] sm:$0xf]
    %v60 = vld [vmem:[%s1 + $0xa8] sm:$0xf]
    %v61 = vld [vmem:[%s1 + $0xac] sm:$0xf]
    %v62 = vld [vmem:[%s1 + $0xb0] sm:$0xf]
    %v63 = vld [vmem:[%s1 + $0xb4] sm:$0xf]
    %v64 = vld [vmem:[%s1 + $0xb8] sm:$0xf]
    %v65 = vld [vmem:[%s1 + $0xbc] sm:$0xf]
    %v66 = vld [vmem:[%s1 + $0xc0] sm:$0xf]
    %v67 = vld [vmem:[%s1 + $0xc4] sm:$0xf]
    %v68 = vld [vmem:[%s1 + $0xc8] sm:$0xf]
    %v69 = vld [vmem:[%s1 + $0xcc] sm:$0xf]
    %v70 = vld [vmem:[%s1 + $0xd0] sm:$0xf]
    %v71 = vld [vmem:[%s1 + $0xd4] sm:$0xf]
    %v72 = vld [vmem:[%s1 + $0xd8] sm:$0xf]
    %v73 = vld [vmem:[%s1 + $0xdc] sm:$0xf]
    %v74 = vld [vmem:[%s1 + $0xe0] sm:$0xf]
    %v75 = vld [vmem:[%s1 + $0xe4] sm:$0xf]
    %v76 = vld [vmem:[%s1 + $0xe8] sm:$0xf]
    %v77 = vld [vmem:[%s1 + $0xec] sm:$0xf]
    %v78 = vld [vmem:[%s1 + $0xf0] sm:$0xf]
    %v79 = vld [vmem:[%s1 + $0xf4] sm:$0xf]
    %v80 = vld [vmem:[%s1 + $0xf8] sm:$0xf]
    %v81 = vld [vmem:[%s1 + $0xfc] sm:$0xf]
    %v82 = vld [vmem:[%s1 + $0x100] sm:$0xf]
    %v83 = vld [vmem:[%s1 + $0x104] sm:$0xf]
    %v84 = vld [vmem:[%s1 + $0x108] sm:$0xf]
    %v85 = vld [vmem:[%s1 + $0x10c] sm:$0xf]
    %v86 = vld [vmem:[%s1 + $0x110] sm:$0xf]
    %v87 = vld [vmem:[%s1 + $0x114] sm:$0xf]
    %v88 = vld [vmem:[%s1 + $0x118] sm:$0xf]
    %v89 = vld [vmem:[%s1 + $0x11c] sm:$0xf]
    %v90 = vld [vmem:[%s1 + $0x120] sm:$0xf]
    %v91 = vld [vmem:[%s1 + $0x124] sm:$0xf]
    %v92 = vld [vmem:[%s1 + $0x128] sm:$0xf]
    %v93 = vld [vmem:[%s1 + $0x12c] sm:$0xf]
    %v94 = vld [vmem:[%s1 + $0x130] sm:$0xf]
    %v95 = vld [vmem:[%s1 + $0x134] sm:$0xf]
    %v96 = vld [vmem:[%s1 + $0x138] sm:$0xf]
    %v97 = vld [vmem:[%s1 + $0x13c] sm:$0xf]
    %v98 = vld [vmem:[%s1 + $0x140] sm:$0xf]
    %v99 = vld [vmem:[%s1 + $0x144] sm:$0xf]
    %v100 = vld [vmem:[%s1 + $0x148] sm:$0xf]
    %v101 = vld [vmem:[%s1 + $0x14c] sm:$0xf]
    %v102 = vld [vmem:[%s1 + $0x150] sm:$0xf]
    %v103 = vld [vmem:[%s1 + $0x154] sm:$0xf]
    %v104 = vld [vmem:[%s1 + $0x158] sm:$0xf]
    %v105 = vld [vmem:[%s1 + $0x15c] sm:$0xf]
    %v106 = vld [vmem:[%s1 + $0x160] sm:$0xf]
    %v107 = vld [vmem:[%s1 + $0x164] sm:$0xf]
    %v108 = vld [vmem:[%s1 + $0x168] sm:$0xf]
    %v109 = vld [vmem:[%s1 + $0x16c] sm:$0xf]
    %v110 = vld [vmem:[%s1 + $0x170] sm:$0xf]
    %v111 = vld [vmem:[%s1 + $0x174] sm:$0xf]
    %v112 = vld [vmem:[%s1 + $0x178] sm:$0xf]
    %v113 = vld [vmem:[%s1 + $0x17c] sm:$0xf]
    %v114 = vld [vmem:[%s1 + $0x180] sm:$0xf]
    %v115 = vld [vmem:[%s1 + $0x184] sm:$0xf]
    %v116 = vld [vmem:[%s1 + $0x188] sm:$0xf]
    %v117 = vld [vmem:[%s1 + $0x18c] sm:$0xf]
    %v118 = vld [vmem:[%s1 + $0x190] sm:$0xf]
    %v119 = vld [vmem:[%s1 + $0x194] sm:$0xf]
    %v120 = vld [vmem:[%s1 + $0x198] sm:$0xf]
    %v121 = vld [vmem:[%s1 + $0x19c] sm:$0xf]
    %v122 = vld [vmem:[%s1 + $0x1a0] sm:$0xf]
    %v123 = vld [vmem:[%s1 + $0x1a4] sm:$0xf]
    %v124 = vld [vmem:[%s1 + $0x1a8] sm:$0xf]
    %v125 = vld [vmem:[%s1 + $0x1ac] sm:$0xf]
    %v126 = vld [vmem:[%s1 + $0x1b0] sm:$0xf]
    %v127 = vld [vmem:[%s1 + $0x1b4] sm:$0xf]
    %v128 = vld [vmem:[%s1 + $0x1b8] sm:$0xf]
    %v129 = vld [vmem:[%s1 + $0x1bc] sm:$0xf]
    %v130 = vld [vmem:[%s1 + $0x1c0] sm:$0xf]
    %v131 = vld [vmem:[%s1 + $0x1c4] sm:$0xf]
    %v132 = vld [vmem:[%s1 + $0x1c8] sm:$0xf]
    %v133 = vld [vmem:[%s1 + $0x1cc] sm:$0xf]
    %v134 = vld [vmem:[%s1 + $0x1d0] sm:$0xf]
    %v135 = vld [vmem:[%s1 + $0x1d4] sm:$0xf]
    %v136 = vld [vmem:[%s1 + $0x1d8] sm:$0xf]
    %v137 = vld [vmem:[%s1 + $0x1dc] sm:$0xf]
    %v138 = vld [vmem:[%s1 + $0x1e0] sm:$0xf]
    %v139 = vld [vmem:[%s1 + $0x1e4] sm:$0xf]
    %v140 = vld [vmem:[%s1 + $0x1e8] sm:$0xf]
    %v141 = vld [vmem:[%s1 + $0x1ec] sm:$0xf]
    %v142 = vld [vmem:[%s1 + $0x1f0] sm:$0xf]
    %v143 = vld [vmem:[%s1 + $0x1f4] sm:$0xf]
    %v144 = vld [vmem:[%s1 + $0x1f8] sm:$0xf]
    %v145 = vld [vmem:[%s1 + $0x1fc] sm:$0xf]
    %v146 = vld [vmem:[%s1 + $0x200] sm:$0xf]
    %v147 = vld [vmem:[%s1 + $0x204] sm:$0xf]
    %v148 = vld [vmem:[%s1 + $0x208] sm:$0xf]
    %v149 = vld [vmem:[%s1 + $0x20c] sm:$0xf]
    %v150 = vld [vmem:[%s1 + $0x210] sm:$0xf]
    %v151 = vld [vmem:[%s1 + $0x214] sm:$0xf]
    %v152 = vld [vmem:[%s1 + $0x218] sm:$0xf]
    %v153 = vld [vmem:[%s1 + $0x21c] sm:$0xf]
    %v154 = vld [vmem:[%s1 + $0x220] sm:$0xf]
    %v155 = vld [vmem:[%s1 + $0x224] sm:$0xf]
    %v156 = vld [vmem:[%s1 + $0x228] sm:$0xf]
    %v157 = vld [vmem:[%s1 + $0x22c] sm:$0xf]
    %v158 = vld [vmem:[%s1 + $0x230] sm:$0xf]
    %v159 = vld [vmem:[%s1 + $0x234] sm:$0xf]
    %v160 = vld [vmem:[%s1 + $0x238] sm:$0xf]
    %v161 = vld [vmem:[%s1 + $0x23c] sm:$0xf]
    %v162 = vld [vmem:[%s1 + $0x240] sm:$0xf]
    %v163 = vld [vmem:[%s1 + $0x244] sm:$0xf]
    %v164 = vld [vmem:[%s1 + $0x248] sm:$0xf]
    %v165 = vld [vmem:[%s1 + $0x24c] sm:$0xf]
    %v166 = vld [vmem:[%s1 + $0x250] sm:$0xf]
    %v167 = vld [vmem:[%s1 + $0x254] sm:$0xf]
    %v168 = vld [vmem:[%s1 + $0x258] sm:$0xf]
    %v169 = vld [vmem:[%s1 + $0x25c] sm:$0xf]
    %v170 = vld [vmem:[%s1 + $0x260] sm:$0xf]
    %v171 = vld [vmem:[%s1 + $0x264] sm:$0xf]
    %v172 = vld [vmem:[%s1 + $0x268] sm:$0xf]
    %v173 = vld [vmem:[%s1 + $0x26c] sm:$0xf]
    %v174 = vld [vmem:[%s1 + $0x270] sm:$0xf]
    %v175 = vld [vmem:[%s1 + $0x274] sm:$0xf]
    %v176 = vld [vmem:[%s1 + $0x278] sm:$0xf]
    %v177 = vld [vmem:[%s1 + $0x27c] sm:$0xf]
    %v178 = vld [vmem:[%s1 + $0x280] sm:$0xf]
    %v179 = vld [vmem:[%s1 + $0x284] sm:$0xf]
    %v180 = vld [vmem:[%s1 + $0x288] sm:$0xf]
    %v181 = vld [vmem:[%s1 + $0x28c] sm:$0xf]
    %v182 = vld [vmem:[%s1 + $0x290] sm:$0xf]
    %v183 = vld [vmem:[%s1 + $0x294] sm:$0xf]
    %v184 = vld [vmem:[%s1 + $0x298] sm:$0xf]
    %v185 = vld [vmem:[%s1 + $0x29c] sm:$0xf]
    %v186 = vld [vmem:[%s1 + $0x2a0] sm:$0xf]
    %v187 = vld [vmem:[%s1 + $0x2a4] sm:$0xf]
    %v188 = vld [vmem:[%s1 + $0x2a8] sm:$0xf]
    %v189 = vld [vmem:[%s1 + $0x2ac] sm:$0xf]
    %v190 = vld [vmem:[%s1 + $0x2b0] sm:$0xf]
    %v191 = vld [vmem:[%s1 + $0x2b4] sm:$0xf]
    %v192 = vld [vmem:[%s1 + $0x2b8] sm:$0xf]
    %v193 = vld [vmem:[%s1 + $0x2bc] sm:$0xf]
    %v194 = vld [vmem:[%s1 + $0x2c0] sm:$0xf]
    %v195 = vld [vmem:[%s1 + $0x2c4] sm:$0xf]
    %v196 = vld [vmem:[%s1 + $0x2c8] sm:$0xf]
    %v197 = vld [vmem:[%s1 + $0x2cc] sm:$0xf]
    %v198 = vld [vmem:[%s1 + $0x2d0] sm:$0xf]
    %v199 = vld [vmem:[%s1 + $0x2d4] sm:$0xf]
    %v200 = vld [vmem:[%s1 + $0x2d8] sm:$0xf]
    %v201 = vld [vmem:[%s1 + $0x2dc] sm:$0xf]
    %v202 = vld [vmem:[%s1 + $0x2e0] sm:$0xf]
    %v203 = vld [vmem:[%s1 + $0x2e4] sm:$0xf]
    %v204 = vld [vmem:[%s1 + $0x2e8] sm:$0xf]
    %v205 = vld [vmem:[%s1 + $0x2ec] sm:$0xf]
    %v206 = vld [vmem:[%s1 + $0x2f0] sm:$0xf]
    %v207 = vld [vmem:[%s1 + $0x2f4] sm:$0xf]
    %v208 = vld [vmem:[%s1 + $0x2f8] sm:$0xf]
    %v209 = vld [vmem:[%s1 + $0x2fc] sm:$0xf]
    %v210 = vld [vmem:[%s1 + $0x300] sm:$0xf]
    %v211 = vld [vmem:[%s1 + $0x304] sm:$0xf]
    %v212 = vld [vmem:[%s1 + $0x308] sm:$0xf]
    %v213 = vld [vmem:[%s1 + $0x30c] sm:$0xf]
    %v214 = vld [vmem:[%s1 + $0x310] sm:$0xf]
    %v215 = vld [vmem:[%s1 + $0x314] sm:$0xf]
    %v216 = vld [vmem:[%s1 + $0x318] sm:$0xf]
    %v217 = vld [vmem:[%s1 + $0x31c] sm:$0xf]
    %v218 = vld [vmem:[%s1 + $0x320] sm:$0xf]
    %v219 = vld [vmem:[%s1 + $0x324] sm:$0xf]
    %v220 = vld [vmem:[%s1 + $0x328] sm:$0xf]
    %v221 = vld [vmem:[%s1 + $0x32c] sm:$0xf]
    %v222 = vld [vmem:[%s1 + $0x330] sm:$0xf]
    %v223 = vld [vmem:[%s1 + $0x334] sm:$0xf]
    %v224 = vld [vmem:[%s1 + $0x338] sm:$0xf]
    %v225 = vld [vmem:[%s1 + $0x33c] sm:$0xf]
    %v226 = vld [vmem:[%s1 + $0x340] sm:$0xf]
    %v227 = vld [vmem:[%s1 + $0x344] sm:$0xf]
    %v228 = vld [vmem:[%s1 + $0x348] sm:$0xf]
    %v229 = vld [vmem:[%s1 + $0x34c] sm:$0xf]
    %v230 = vld [vmem:[%s1 + $0x350] sm:$0xf]
    %v231 = vld [vmem:[%s1 + $0x354] sm:$0xf]
    %v232 = vld [vmem:[%s1 + $0x358] sm:$0xf]
    %v233 = vld [vmem:[%s1 + $0x35c] sm:$0xf]
    %v234 = vld [vmem:[%s1 + $0x360] sm:$0xf]
    %v235 = vld [vmem:[%s1 + $0x364] sm:$0xf]
    %v236 = vld [vmem:[%s1 + $0x368] sm:$0xf]
    %v237 = vld [vmem:[%s1 + $0x36c] sm:$0xf]
    %v238 = vld [vmem:[%s1 + $0x370] sm:$0xf]
    %v239 = vld [vmem:[%s1 + $0x374] sm:$0xf]
    %v240 = vld [vmem:[%s1 + $0x378] sm:$0xf]
    %v241 = vld [vmem:[%s1 + $0x37c] sm:$0xf]
    %v242 = vld [vmem:[%s1 + $0x380] sm:$0xf]
    %v243 = vld [vmem:[%s1 + $0x384] sm:$0xf]
    %v244 = vld [vmem:[%s1 + $0x388] sm:$0xf]
    %v245 = vld [vmem:[%s1 + $0x38c] sm:$0xf]
    %v246 = vld [vmem:[%s1 + $0x390] sm:$0xf]
    %v247 = vld [vmem:[%s1 + $0x394] sm:$0xf]
    %v248 = vld [vmem:[%s1 + $0x398] sm:$0xf]
    %v249 = vld [vmem:[%s1 + $0x39c] sm:$0xf]
    %v250 = vld [vmem:[%s1 + $0x3a0] sm:$0xf]
    %v251 = vld [vmem:[%s1 + $0x3a4] sm:$0xf]
    %v252 = vld [vmem:[%s1 + $0x3a8] sm:$0xf]
    %v253 = vld [vmem:[%s1 + $0x3ac] sm:$0xf]
    %v254 = vld [vmem:[%s1 + $0x3b0] sm:$0xf]
    %v255 = vld [vmem:[%s1 + $0x3b4] sm:$0xf]
    %v256 = vld [vmem:[%s1 + $0x3b8] sm:$0xf]
    %v257 = vld [vmem:[%s1 + $0x3bc] sm:$0xf]
    %v258 = vld [vmem:[%s1 + $0x3c0] sm:$0xf]
    %v259 = vld [vmem:[%s1 + $0x3c4] sm:$0xf]
    %v260 = vld [vmem:[%s1 + $0x3c8] sm:$0xf]
    %v261 = vld [vmem:[%s1 + $0x3cc] sm:$0xf]
    %v262 = vld [vmem:[%s1 + $0x3d0] sm:$0xf]
    %v263 = vld [vmem:[%s1 + $0x3d4] sm:$0xf]
    %v264 = vld [vmem:[%s1 + $0x3d8] sm:$0xf]
    %v265 = vld [vmem:[%s1 + $0x3dc] sm:$0xf]
    %v266 = vld [vmem:[%s1 + $0x3e0] sm:$0xf]
    %v267 = vld [vmem:[%s1 + $0x3e4] sm:$0xf]
    %v268 = vld [vmem:[%s1 + $0x3e8] sm:$0xf]
    %v269 = vld [vmem:[%s1 + $0x3ec] sm:$0xf]
    %v270 = vld [vmem:[%s1 + $0x3f0] sm:$0xf]
    %v271 = vld [vmem:[%s1 + $0x3f4] sm:$0xf]
    %v272 = vld [vmem:[%s1 + $0x3f8] sm:$0xf]
    %v273 = vld [vmem:[%s1 + $0x3fc] sm:$0xf]
    %v274 = vld [vmem:[%s2] sm:$0x1]
    %v276 = vlaneseq
    %v277 = vshrl.u32 %v276, 7
    %v278 = vsub.s32 0, %v277
    %v279 = vrot.slane %v274, %v278
    %v283 = vcombine.high %v16, %v16
    %v285 = vunpack.c.l.s4 1966171168
    %v286 = vunpack.c.0.s8 %v285
    %v287 = vlaneseq
    %v288 = vshrl.u32 %v287, 7
    %v289 = vsub.s32 %v286, %v288
    %v290 = vrot.slane %v16, %v289
    %v292 = vunpack.c.l.s4 1966171168
    %v293 = vunpack.c.0.s8 %v292
    %v294 = vlaneseq
    %v295 = vshrl.u32 %v294, 7
    %v296 = vsub.s32 %v293, %v295
    %v297 = vrot.slane %v283, %v296
    %v298 = vcombine.high %v290, %v290
    %v299 = vcombine.high %v297, %v297
    %v301 = vunpack.c.l.s4 1966171168
    %v302 = vunpack.c.0.s8 %v301
    %v303 = vlaneseq
    %v304 = vshrl.u32 %v303, 7
    %v305 = vsub.s32 %v302, %v304
    %v306 = vrot.slane %v290, %v305
    %v308 = vunpack.c.l.s4 1966171168
    %v309 = vunpack.c.0.s8 %v308
    %v310 = vlaneseq
    %v311 = vshrl.u32 %v310, 7
    %v312 = vsub.s32 %v309, %v311
    %v313 = vrot.slane %v297, %v312
    %v315 = vunpack.c.l.s4 1966171168
    %v316 = vunpack.c.0.s8 %v315
    %v317 = vlaneseq
    %v318 = vshrl.u32 %v317, 7
    %v319 = vsub.s32 %v316, %v318
    %v320 = vrot.slane %v298, %v319
    %v322 = vunpack.c.l.s4 1966171168
    %v323 = vunpack.c.0.s8 %v322
    %v324 = vlaneseq
    %v325 = vshrl.u32 %v324, 7
    %v326 = vsub.s32 %v323, %v325
    %v327 = vrot.slane %v299, %v326
    %v328 = vcombine.high %v306, %v306
    %v329 = vcombine.high %v313, %v313
    %v330 = vcombine.high %v320, %v320
    %v331 = vcombine.high %v327, %v327
    %v332 = vcombine.high %v17, %v17
    %v334 = vunpack.c.l.s4 1966171168
    %v335 = vunpack.c.0.s8 %v334
    %v336 = vlaneseq
    %v337 = vshrl.u32 %v336, 7
    %v338 = vsub.s32 %v335, %v337
    %v339 = vrot.slane %v17, %v338
    %v341 = vunpack.c.l.s4 1966171168
    %v342 = vunpack.c.0.s8 %v341
    %v343 = vlaneseq
    %v344 = vshrl.u32 %v343, 7
    %v345 = vsub.s32 %v342, %v344
    %v346 = vrot.slane %v332, %v345
    %v347 = vcombine.high %v339, %v339
    %v348 = vcombine.high %v346, %v346
    %v350 = vunpack.c.l.s4 1966171168
    %v351 = vunpack.c.0.s8 %v350
    %v352 = vlaneseq
    %v353 = vshrl.u32 %v352, 7
    %v354 = vsub.s32 %v351, %v353
    %v355 = vrot.slane %v339, %v354
    %v357 = vunpack.c.l.s4 1966171168
    %v358 = vunpack.c.0.s8 %v357
    %v359 = vlaneseq
    %v360 = vshrl.u32 %v359, 7
    %v361 = vsub.s32 %v358, %v360
    %v362 = vrot.slane %v346, %v361
    %v364 = vunpack.c.l.s4 1966171168
    %v365 = vunpack.c.0.s8 %v364
    %v366 = vlaneseq
    %v367 = vshrl.u32 %v366, 7
    %v368 = vsub.s32 %v365, %v367
    %v369 = vrot.slane %v347, %v368
    %v371 = vunpack.c.l.s4 1966171168
    %v372 = vunpack.c.0.s8 %v371
    %v373 = vlaneseq
    %v374 = vshrl.u32 %v373, 7
    %v375 = vsub.s32 %v372, %v374
    %v376 = vrot.slane %v348, %v375
    %v377 = vcombine.high %v355, %v355
    %v378 = vcombine.high %v362, %v362
    %v379 = vcombine.high %v369, %v369
    %v380 = vcombine.high %v376, %v376
    %v653 = vunpack.c.l.b16 %v18
    %v654 = vunpack.c.l.b16 %v19
    %v655 = vunpack.c.l.b16 %v20
    %v656 = vunpack.c.l.b16 %v21
    %v657 = vunpack.c.l.b16 %v22
    %v658 = vunpack.c.l.b16 %v23
    %v659 = vunpack.c.l.b16 %v24
    %v660 = vunpack.c.l.b16 %v25
    %v661 = vunpack.c.l.b16 %v26
    %v662 = vunpack.c.l.b16 %v27
    %v663 = vunpack.c.l.b16 %v28
    %v664 = vunpack.c.l.b16 %v29
    %v665 = vunpack.c.l.b16 %v30
    %v666 = vunpack.c.l.b16 %v31
    %v667 = vunpack.c.l.b16 %v32
    %v668 = vunpack.c.l.b16 %v33
    %v669 = vunpack.c.l.b16 %v34
    %v670 = vunpack.c.l.b16 %v35
    %v671 = vunpack.c.l.b16 %v36
    %v672 = vunpack.c.l.b16 %v37
    %v673 = vunpack.c.l.b16 %v38
    %v674 = vunpack.c.l.b16 %v39
    %v675 = vunpack.c.l.b16 %v40
    %v676 = vunpack.c.l.b16 %v41
    %v677 = vunpack.c.l.b16 %v42
    %v678 = vunpack.c.l.b16 %v43
    %v679 = vunpack.c.l.b16 %v44
    %v680 = vunpack.c.l.b16 %v45
    %v681 = vunpack.c.l.b16 %v46
    %v682 = vunpack.c.l.b16 %v47
    %v683 = vunpack.c.l.b16 %v48
    %v684 = vunpack.c.l.b16 %v49
    %v685 = vunpack.c.l.b16 %v50
    %v686 = vunpack.c.l.b16 %v51
    %v687 = vunpack.c.l.b16 %v52
    %v688 = vunpack.c.l.b16 %v53
    %v689 = vunpack.c.l.b16 %v54
    %v690 = vunpack.c.l.b16 %v55
    %v691 = vunpack.c.l.b16 %v56
    %v692 = vunpack.c.l.b16 %v57
    %v693 = vunpack.c.l.b16 %v58
    %v694 = vunpack.c.l.b16 %v59
    %v695 = vunpack.c.l.b16 %v60
    %v696 = vunpack.c.l.b16 %v61
    %v697 = vunpack.c.l.b16 %v62
    %v698 = vunpack.c.l.b16 %v63
    %v699 = vunpack.c.l.b16 %v64
    %v700 = vunpack.c.l.b16 %v65
    %v701 = vunpack.c.l.b16 %v66
    %v702 = vunpack.c.l.b16 %v67
    %v703 = vunpack.c.l.b16 %v68
    %v704 = vunpack.c.l.b16 %v69
    %v705 = vunpack.c.l.b16 %v70
    %v706 = vunpack.c.l.b16 %v71
    %v707 = vunpack.c.l.b16 %v72
    %v708 = vunpack.c.l.b16 %v73
    %v709 = vunpack.c.l.b16 %v74
    %v710 = vunpack.c.l.b16 %v75
    %v711 = vunpack.c.l.b16 %v76
    %v712 = vunpack.c.l.b16 %v77
    %v713 = vunpack.c.l.b16 %v78
    %v714 = vunpack.c.l.b16 %v79
    %v715 = vunpack.c.l.b16 %v80
    %v716 = vunpack.c.l.b16 %v81
    %v717 = vunpack.c.l.b16 %v82
    %v718 = vunpack.c.l.b16 %v83
    %v719 = vunpack.c.l.b16 %v84
    %v720 = vunpack.c.l.b16 %v85
    %v721 = vunpack.c.l.b16 %v86
    %v722 = vunpack.c.l.b16 %v87
    %v723 = vunpack.c.l.b16 %v88
    %v724 = vunpack.c.l.b16 %v89
    %v725 = vunpack.c.l.b16 %v90
    %v726 = vunpack.c.l.b16 %v91
    %v727 = vunpack.c.l.b16 %v92
    %v728 = vunpack.c.l.b16 %v93
    %v729 = vunpack.c.l.b16 %v94
    %v730 = vunpack.c.l.b16 %v95
    %v731 = vunpack.c.l.b16 %v96
    %v732 = vunpack.c.l.b16 %v97
    %v733 = vunpack.c.l.b16 %v98
    %v734 = vunpack.c.l.b16 %v99
    %v735 = vunpack.c.l.b16 %v100
    %v736 = vunpack.c.l.b16 %v101
    %v737 = vunpack.c.l.b16 %v102
    %v738 = vunpack.c.l.b16 %v103
    %v739 = vunpack.c.l.b16 %v104
    %v740 = vunpack.c.l.b16 %v105
    %v741 = vunpack.c.l.b16 %v106
    %v742 = vunpack.c.l.b16 %v107
    %v743 = vunpack.c.l.b16 %v108
    %v744 = vunpack.c.l.b16 %v109
    %v745 = vunpack.c.l.b16 %v110
    %v746 = vunpack.c.l.b16 %v111
    %v747 = vunpack.c.l.b16 %v112
    %v748 = vunpack.c.l.b16 %v113
    %v749 = vunpack.c.l.b16 %v114
    %v750 = vunpack.c.l.b16 %v115
    %v751 = vunpack.c.l.b16 %v116
    %v752 = vunpack.c.l.b16 %v117
    %v753 = vunpack.c.l.b16 %v118
    %v754 = vunpack.c.l.b16 %v119
    %v755 = vunpack.c.l.b16 %v120
    %v756 = vunpack.c.l.b16 %v121
    %v757 = vunpack.c.l.b16 %v122
    %v758 = vunpack.c.l.b16 %v123
    %v759 = vunpack.c.l.b16 %v124
    %v760 = vunpack.c.l.b16 %v125
    %v761 = vunpack.c.l.b16 %v126
    %v762 = vunpack.c.l.b16 %v127
    %v763 = vunpack.c.l.b16 %v128
    %v764 = vunpack.c.l.b16 %v129
    %v765 = vunpack.c.l.b16 %v130
    %v766 = vunpack.c.l.b16 %v131
    %v767 = vunpack.c.l.b16 %v132
    %v768 = vunpack.c.l.b16 %v133
    %v769 = vunpack.c.l.b16 %v134
    %v770 = vunpack.c.l.b16 %v135
    %v771 = vunpack.c.l.b16 %v136
    %v772 = vunpack.c.l.b16 %v137
    %v773 = vunpack.c.l.b16 %v138
    %v774 = vunpack.c.l.b16 %v139
    %v775 = vunpack.c.l.b16 %v140
    %v776 = vunpack.c.l.b16 %v141
    %v777 = vunpack.c.l.b16 %v142
    %v778 = vunpack.c.l.b16 %v143
    %v779 = vunpack.c.l.b16 %v144
    %v780 = vunpack.c.l.b16 %v145
    %v781 = vunpack.c.l.b16 %v146
    %v782 = vunpack.c.l.b16 %v147
    %v783 = vunpack.c.l.b16 %v148
    %v784 = vunpack.c.l.b16 %v149
    %v785 = vunpack.c.l.b16 %v150
    %v786 = vunpack.c.l.b16 %v151
    %v787 = vunpack.c.l.b16 %v152
    %v788 = vunpack.c.l.b16 %v153
    %v789 = vunpack.c.l.b16 %v154
    %v790 = vunpack.c.l.b16 %v155
    %v791 = vunpack.c.l.b16 %v156
    %v792 = vunpack.c.l.b16 %v157
    %v793 = vunpack.c.l.b16 %v158
    %v794 = vunpack.c.l.b16 %v159
    %v795 = vunpack.c.l.b16 %v160
    %v796 = vunpack.c.l.b16 %v161
    %v797 = vunpack.c.l.b16 %v162
    %v798 = vunpack.c.l.b16 %v163
    %v799 = vunpack.c.l.b16 %v164
    %v800 = vunpack.c.l.b16 %v165
    %v801 = vunpack.c.l.b16 %v166
    %v802 = vunpack.c.l.b16 %v167
    %v803 = vunpack.c.l.b16 %v168
    %v804 = vunpack.c.l.b16 %v169
    %v805 = vunpack.c.l.b16 %v170
    %v806 = vunpack.c.l.b16 %v171
    %v807 = vunpack.c.l.b16 %v172
    %v808 = vunpack.c.l.b16 %v173
    %v809 = vunpack.c.l.b16 %v174
    %v810 = vunpack.c.l.b16 %v175
    %v811 = vunpack.c.l.b16 %v176
    %v812 = vunpack.c.l.b16 %v177
    %v813 = vunpack.c.l.b16 %v178
    %v814 = vunpack.c.l.b16 %v179
    %v815 = vunpack.c.l.b16 %v180
    %v816 = vunpack.c.l.b16 %v181
    %v817 = vunpack.c.l.b16 %v182
    %v818 = vunpack.c.l.b16 %v183
    %v819 = vunpack.c.l.b16 %v184
    %v820 = vunpack.c.l.b16 %v185
    %v821 = vunpack.c.l.b16 %v186
    %v822 = vunpack.c.l.b16 %v187
    %v823 = vunpack.c.l.b16 %v188
    %v824 = vunpack.c.l.b16 %v189
    %v825 = vunpack.c.l.b16 %v190
    %v826 = vunpack.c.l.b16 %v191
    %v827 = vunpack.c.l.b16 %v192
    %v828 = vunpack.c.l.b16 %v193
    %v829 = vunpack.c.l.b16 %v194
    %v830 = vunpack.c.l.b16 %v195
    %v831 = vunpack.c.l.b16 %v196
    %v832 = vunpack.c.l.b16 %v197
    %v833 = vunpack.c.l.b16 %v198
    %v834 = vunpack.c.l.b16 %v199
    %v835 = vunpack.c.l.b16 %v200
    %v836 = vunpack.c.l.b16 %v201
    %v837 = vunpack.c.l.b16 %v202
    %v838 = vunpack.c.l.b16 %v203
    %v839 = vunpack.c.l.b16 %v204
    %v840 = vunpack.c.l.b16 %v205
    %v841 = vunpack.c.l.b16 %v206
    %v842 = vunpack.c.l.b16 %v207
    %v843 = vunpack.c.l.b16 %v208
    %v844 = vunpack.c.l.b16 %v209
    %v845 = vunpack.c.l.b16 %v210
    %v846 = vunpack.c.l.b16 %v211
    %v847 = vunpack.c.l.b16 %v212
    %v848 = vunpack.c.l.b16 %v213
    %v849 = vunpack.c.l.b16 %v214
    %v850 = vunpack.c.l.b16 %v215
    %v851 = vunpack.c.l.b16 %v216
    %v852 = vunpack.c.l.b16 %v217
    %v853 = vunpack.c.l.b16 %v218
    %v854 = vunpack.c.l.b16 %v219
    %v855 = vunpack.c.l.b16 %v220
    %v856 = vunpack.c.l.b16 %v221
    %v857 = vunpack.c.l.b16 %v222
    %v858 = vunpack.c.l.b16 %v223
    %v859 = vunpack.c.l.b16 %v224
    %v860 = vunpack.c.l.b16 %v225
    %v861 = vunpack.c.l.b16 %v226
    %v862 = vunpack.c.l.b16 %v227
    %v863 = vunpack.c.l.b16 %v228
    %v864 = vunpack.c.l.b16 %v229
    %v865 = vunpack.c.l.b16 %v230
    %v866 = vunpack.c.l.b16 %v231
    %v867 = vunpack.c.l.b16 %v232
    %v868 = vunpack.c.l.b16 %v233
    %v869 = vunpack.c.l.b16 %v234
    %v870 = vunpack.c.l.b16 %v235
    %v871 = vunpack.c.l.b16 %v236
    %v872 = vunpack.c.l.b16 %v237
    %v873 = vunpack.c.l.b16 %v238
    %v874 = vunpack.c.l.b16 %v239
    %v875 = vunpack.c.l.b16 %v240
    %v876 = vunpack.c.l.b16 %v241
    %v877 = vunpack.c.l.b16 %v242
    %v878 = vunpack.c.l.b16 %v243
    %v879 = vunpack.c.l.b16 %v244
    %v880 = vunpack.c.l.b16 %v245
    %v881 = vunpack.c.l.b16 %v246
    %v882 = vunpack.c.l.b16 %v247
    %v883 = vunpack.c.l.b16 %v248
    %v884 = vunpack.c.l.b16 %v249
    %v885 = vunpack.c.l.b16 %v250
    %v886 = vunpack.c.l.b16 %v251
    %v887 = vunpack.c.l.b16 %v252
    %v888 = vunpack.c.l.b16 %v253
    %v889 = vunpack.c.l.b16 %v254
    %v890 = vunpack.c.l.b16 %v255
    %v891 = vunpack.c.l.b16 %v256
    %v892 = vunpack.c.l.b16 %v257
    %v893 = vunpack.c.l.b16 %v258
    %v894 = vunpack.c.l.b16 %v259
    %v895 = vunpack.c.l.b16 %v260
    %v896 = vunpack.c.l.b16 %v261
    %v897 = vunpack.c.l.b16 %v262
    %v898 = vunpack.c.l.b16 %v263
    %v899 = vunpack.c.l.b16 %v264
    %v900 = vunpack.c.l.b16 %v265
    %v901 = vunpack.c.l.b16 %v266
    %v902 = vunpack.c.l.b16 %v267
    %v903 = vunpack.c.l.b16 %v268
    %v904 = vunpack.c.l.b16 %v269
    %v905 = vunpack.c.l.b16 %v270
    %v906 = vunpack.c.l.b16 %v271
    %v907 = vunpack.c.l.b16 %v272
    %v908 = vunpack.c.l.b16 %v273
    %v909 = vpack.c.b16 %v654, %v653
    %v910 = vpack.c.b16 %v656, %v655
    %v911 = vpack.c.b16 %v658, %v657
    %v912 = vpack.c.b16 %v660, %v659
    %v913 = vpack.c.b16 %v662, %v661
    %v914 = vpack.c.b16 %v664, %v663
    %v915 = vpack.c.b16 %v666, %v665
    %v916 = vpack.c.b16 %v668, %v667
    %v917 = vpack.c.b16 %v670, %v669
    %v918 = vpack.c.b16 %v672, %v671
    %v919 = vpack.c.b16 %v674, %v673
    %v920 = vpack.c.b16 %v676, %v675
    %v921 = vpack.c.b16 %v678, %v677
    %v922 = vpack.c.b16 %v680, %v679
    %v923 = vpack.c.b16 %v682, %v681
    %v924 = vpack.c.b16 %v684, %v683
    %v925 = vpack.c.b16 %v686, %v685
    %v926 = vpack.c.b16 %v688, %v687
    %v927 = vpack.c.b16 %v690, %v689
    %v928 = vpack.c.b16 %v692, %v691
    %v929 = vpack.c.b16 %v694, %v693
    %v930 = vpack.c.b16 %v696, %v695
    %v931 = vpack.c.b16 %v698, %v697
    %v932 = vpack.c.b16 %v700, %v699
    %v933 = vpack.c.b16 %v702, %v701
    %v934 = vpack.c.b16 %v704, %v703
    %v935 = vpack.c.b16 %v706, %v705
    %v936 = vpack.c.b16 %v708, %v707
    %v937 = vpack.c.b16 %v710, %v709
    %v938 = vpack.c.b16 %v712, %v711
    %v939 = vpack.c.b16 %v714, %v713
    %v940 = vpack.c.b16 %v716, %v715
    %v941 = vpack.c.b16 %v718, %v717
    %v942 = vpack.c.b16 %v720, %v719
    %v943 = vpack.c.b16 %v722, %v721
    %v944 = vpack.c.b16 %v724, %v723
    %v945 = vpack.c.b16 %v726, %v725
    %v946 = vpack.c.b16 %v728, %v727
    %v947 = vpack.c.b16 %v730, %v729
    %v948 = vpack.c.b16 %v732, %v731
    %v949 = vpack.c.b16 %v734, %v733
    %v950 = vpack.c.b16 %v736, %v735
    %v951 = vpack.c.b16 %v738, %v737
    %v952 = vpack.c.b16 %v740, %v739
    %v953 = vpack.c.b16 %v742, %v741
    %v954 = vpack.c.b16 %v744, %v743
    %v955 = vpack.c.b16 %v746, %v745
    %v956 = vpack.c.b16 %v748, %v747
    %v957 = vpack.c.b16 %v750, %v749
    %v958 = vpack.c.b16 %v752, %v751
    %v959 = vpack.c.b16 %v754, %v753
    %v960 = vpack.c.b16 %v756, %v755
    %v961 = vpack.c.b16 %v758, %v757
    %v962 = vpack.c.b16 %v760, %v759
    %v963 = vpack.c.b16 %v762, %v761
    %v964 = vpack.c.b16 %v764, %v763
    %v965 = vpack.c.b16 %v766, %v765
    %v966 = vpack.c.b16 %v768, %v767
    %v967 = vpack.c.b16 %v770, %v769
    %v968 = vpack.c.b16 %v772, %v771
    %v969 = vpack.c.b16 %v774, %v773
    %v970 = vpack.c.b16 %v776, %v775
    %v971 = vpack.c.b16 %v778, %v777
    %v972 = vpack.c.b16 %v780, %v779
    %v973 = vpack.c.b16 %v782, %v781
    %v974 = vpack.c.b16 %v784, %v783
    %v975 = vpack.c.b16 %v786, %v785
    %v976 = vpack.c.b16 %v788, %v787
    %v977 = vpack.c.b16 %v790, %v789
    %v978 = vpack.c.b16 %v792, %v791
    %v979 = vpack.c.b16 %v794, %v793
    %v980 = vpack.c.b16 %v796, %v795
    %v981 = vpack.c.b16 %v798, %v797
    %v982 = vpack.c.b16 %v800, %v799
    %v983 = vpack.c.b16 %v802, %v801
    %v984 = vpack.c.b16 %v804, %v803
    %v985 = vpack.c.b16 %v806, %v805
    %v986 = vpack.c.b16 %v808, %v807
    %v987 = vpack.c.b16 %v810, %v809
    %v988 = vpack.c.b16 %v812, %v811
    %v989 = vpack.c.b16 %v814, %v813
    %v990 = vpack.c.b16 %v816, %v815
    %v991 = vpack.c.b16 %v818, %v817
    %v992 = vpack.c.b16 %v820, %v819
    %v993 = vpack.c.b16 %v822, %v821
    %v994 = vpack.c.b16 %v824, %v823
    %v995 = vpack.c.b16 %v826, %v825
    %v996 = vpack.c.b16 %v828, %v827
    %v997 = vpack.c.b16 %v830, %v829
    %v998 = vpack.c.b16 %v832, %v831
    %v999 = vpack.c.b16 %v834, %v833
    %v1000 = vpack.c.b16 %v836, %v835
    %v1001 = vpack.c.b16 %v838, %v837
    %v1002 = vpack.c.b16 %v840, %v839
    %v1003 = vpack.c.b16 %v842, %v841
    %v1004 = vpack.c.b16 %v844, %v843
    %v1005 = vpack.c.b16 %v846, %v845
    %v1006 = vpack.c.b16 %v848, %v847
    %v1007 = vpack.c.b16 %v850, %v849
    %v1008 = vpack.c.b16 %v852, %v851
    %v1009 = vpack.c.b16 %v854, %v853
    %v1010 = vpack.c.b16 %v856, %v855
    %v1011 = vpack.c.b16 %v858, %v857
    %v1012 = vpack.c.b16 %v860, %v859
    %v1013 = vpack.c.b16 %v862, %v861
    %v1014 = vpack.c.b16 %v864, %v863
    %v1015 = vpack.c.b16 %v866, %v865
    %v1016 = vpack.c.b16 %v868, %v867
    %v1017 = vpack.c.b16 %v870, %v869
    %v1018 = vpack.c.b16 %v872, %v871
    %v1019 = vpack.c.b16 %v874, %v873
    %v1020 = vpack.c.b16 %v876, %v875
    %v1021 = vpack.c.b16 %v878, %v877
    %v1022 = vpack.c.b16 %v880, %v879
    %v1023 = vpack.c.b16 %v882, %v881
    %v1024 = vpack.c.b16 %v884, %v883
    %v1025 = vpack.c.b16 %v886, %v885
    %v1026 = vpack.c.b16 %v888, %v887
    %v1027 = vpack.c.b16 %v890, %v889
    %v1028 = vpack.c.b16 %v892, %v891
    %v1029 = vpack.c.b16 %v894, %v893
    %v1030 = vpack.c.b16 %v896, %v895
    %v1031 = vpack.c.b16 %v898, %v897
    %v1032 = vpack.c.b16 %v900, %v899
    %v1033 = vpack.c.b16 %v902, %v901
    %v1034 = vpack.c.b16 %v904, %v903
    %v1035 = vpack.c.b16 %v906, %v905
    %v1036 = vpack.c.b16 %v908, %v907
    %1165 = vmatprep.subr.bf16.mxu0 0
    %1166 = vmatpush1.bf16.msra.mxu0 %v909
    %1167 = vmatprep.subr.bf16.mxu0 0
    %1168 = vmatpush1.bf16.msra.mxu0 %v910
    %1169 = vmatprep.subr.bf16.mxu0 0
    %1170 = vmatpush1.bf16.msra.mxu0 %v911
    %1171 = vmatprep.subr.bf16.mxu0 0
    %1172 = vmatpush1.bf16.msra.mxu0 %v912
    %1173 = vmatprep.subr.bf16.mxu0 0
    %1174 = vmatpush1.bf16.msra.mxu0 %v913
    %1175 = vmatprep.subr.bf16.mxu0 0
    %1176 = vmatpush1.bf16.msra.mxu0 %v914
    %1177 = vmatprep.subr.bf16.mxu0 0
    %1178 = vmatpush1.bf16.msra.mxu0 %v915
    %1179 = vmatprep.subr.bf16.mxu0 0
    %1180 = vmatpush1.bf16.msra.mxu0 %v916
    %1181 = vmatprep.subr.bf16.mxu0 0
    %1182 = vmatpush1.bf16.msra.mxu0 %v917
    %1183 = vmatprep.subr.bf16.mxu0 0
    %1184 = vmatpush1.bf16.msra.mxu0 %v918
    %1185 = vmatprep.subr.bf16.mxu0 0
    %1186 = vmatpush1.bf16.msra.mxu0 %v919
    %1187 = vmatprep.subr.bf16.mxu0 0
    %1188 = vmatpush1.bf16.msra.mxu0 %v920
    %1189 = vmatprep.subr.bf16.mxu0 0
    %1190 = vmatpush1.bf16.msra.mxu0 %v921
    %1191 = vmatprep.subr.bf16.mxu0 0
    %1192 = vmatpush1.bf16.msra.mxu0 %v922
    %1193 = vmatprep.subr.bf16.mxu0 0
    %1194 = vmatpush1.bf16.msra.mxu0 %v923
    %1195 = vmatprep.subr.bf16.mxu0 0
    %1196 = vmatpush1.bf16.msra.mxu0 %v924
    %1197 = vmatprep.mubr.bf16.mxu0 %v320
    %1198 = vmatmul.mubr.bf16.gmra.mrb[0].mxu0 %v306
    %v1199 = vpop.f32.mrb[0].mxu0
    %v1200 = vadd.f32 %v279, %v1199
    %v1201 = vpop.f32.mrb[0].mxu0
    %v1202 = vpop.f32.mrb[0].mxu0
    %v1203 = vpop.f32.mrb[0].mxu0
    %1204 = vdwg.mxu0
    %1205 = vmatprep.subr.bf16.mxu0 0
    %1206 = vmatpush1.bf16.msra.mxu0 %v925
    %1207 = vmatprep.subr.bf16.mxu0 0
    %1208 = vmatpush1.bf16.msra.mxu0 %v926
    %1209 = vmatprep.subr.bf16.mxu0 0
    %1210 = vmatpush1.bf16.msra.mxu0 %v927
    %1211 = vmatprep.subr.bf16.mxu0 0
    %1212 = vmatpush1.bf16.msra.mxu0 %v928
    %1213 = vmatprep.subr.bf16.mxu0 0
    %1214 = vmatpush1.bf16.msra.mxu0 %v929
    %1215 = vmatprep.subr.bf16.mxu0 0
    %1216 = vmatpush1.bf16.msra.mxu0 %v930
    %1217 = vmatprep.subr.bf16.mxu0 0
    %1218 = vmatpush1.bf16.msra.mxu0 %v931
    %1219 = vmatprep.subr.bf16.mxu0 0
    %1220 = vmatpush1.bf16.msra.mxu0 %v932
    %1221 = vmatprep.subr.bf16.mxu0 0
    %1222 = vmatpush1.bf16.msra.mxu0 %v933
    %1223 = vmatprep.subr.bf16.mxu0 0
    %1224 = vmatpush1.bf16.msra.mxu0 %v934
    %1225 = vmatprep.subr.bf16.mxu0 0
    %1226 = vmatpush1.bf16.msra.mxu0 %v935
    %1227 = vmatprep.subr.bf16.mxu0 0
    %1228 = vmatpush1.bf16.msra.mxu0 %v936
    %1229 = vmatprep.subr.bf16.mxu0 0
    %1230 = vmatpush1.bf16.msra.mxu0 %v937
    %1231 = vmatprep.subr.bf16.mxu0 0
    %1232 = vmatpush1.bf16.msra.mxu0 %v938
    %1233 = vmatprep.subr.bf16.mxu0 0
    %1234 = vmatpush1.bf16.msra.mxu0 %v939
    %1235 = vmatprep.subr.bf16.mxu0 0
    %1236 = vmatpush1.bf16.msra.mxu0 %v940
    %1237 = vmatprep.mubr.bf16.mxu0 %v330
    %1238 = vmatmul.mubr.bf16.gmra.mrb[0].mxu0 %v328
    %v1239 = vpop.f32.mrb[0].mxu0
    %v1240 = vadd.f32 %v1200, %v1239
    %v1241 = vpop.f32.mrb[0].mxu0
    %v1242 = vpop.f32.mrb[0].mxu0
    %v1243 = vpop.f32.mrb[0].mxu0
    %1244 = vdwg.mxu0
    %1245 = vmatprep.subr.bf16.mxu0 0
    %1246 = vmatpush1.bf16.msra.mxu0 %v941
    %1247 = vmatprep.subr.bf16.mxu0 0
    %1248 = vmatpush1.bf16.msra.mxu0 %v942
    %1249 = vmatprep.subr.bf16.mxu0 0
    %1250 = vmatpush1.bf16.msra.mxu0 %v943
    %1251 = vmatprep.subr.bf16.mxu0 0
    %1252 = vmatpush1.bf16.msra.mxu0 %v944
    %1253 = vmatprep.subr.bf16.mxu0 0
    %1254 = vmatpush1.bf16.msra.mxu0 %v945
    %1255 = vmatprep.subr.bf16.mxu0 0
    %1256 = vmatpush1.bf16.msra.mxu0 %v946
    %1257 = vmatprep.subr.bf16.mxu0 0
    %1258 = vmatpush1.bf16.msra.mxu0 %v947
    %1259 = vmatprep.subr.bf16.mxu0 0
    %1260 = vmatpush1.bf16.msra.mxu0 %v948
    %1261 = vmatprep.subr.bf16.mxu0 0
    %1262 = vmatpush1.bf16.msra.mxu0 %v949
    %1263 = vmatprep.subr.bf16.mxu0 0
    %1264 = vmatpush1.bf16.msra.mxu0 %v950
    %1265 = vmatprep.subr.bf16.mxu0 0
    %1266 = vmatpush1.bf16.msra.mxu0 %v951
    %1267 = vmatprep.subr.bf16.mxu0 0
    %1268 = vmatpush1.bf16.msra.mxu0 %v952
    %1269 = vmatprep.subr.bf16.mxu0 0
    %1270 = vmatpush1.bf16.msra.mxu0 %v953
    %1271 = vmatprep.subr.bf16.mxu0 0
    %1272 = vmatpush1.bf16.msra.mxu0 %v954
    %1273 = vmatprep.subr.bf16.mxu0 0
    %1274 = vmatpush1.bf16.msra.mxu0 %v955
    %1275 = vmatprep.subr.bf16.mxu0 0
    %1276 = vmatpush1.bf16.msra.mxu0 %v956
    %1277 = vmatprep.mubr.bf16.mxu0 %v327
    %1278 = vmatmul.mubr.bf16.gmra.mrb[0].mxu0 %v313
    %v1279 = vpop.f32.mrb[0].mxu0
    %v1280 = vadd.f32 %v1240, %v1279
    %v1281 = vpop.f32.mrb[0].mxu0
    %v1282 = vpop.f32.mrb[0].mxu0
    %v1283 = vpop.f32.mrb[0].mxu0
    %1284 = vdwg.mxu0
    %1285 = vmatprep.subr.bf16.mxu0 0
    %1286 = vmatpush1.bf16.msra.mxu0 %v957
    %1287 = vmatprep.subr.bf16.mxu0 0
    %1288 = vmatpush1.bf16.msra.mxu0 %v958
    %1289 = vmatprep.subr.bf16.mxu0 0
    %1290 = vmatpush1.bf16.msra.mxu0 %v959
    %1291 = vmatprep.subr.bf16.mxu0 0
    %1292 = vmatpush1.bf16.msra.mxu0 %v960
    %1293 = vmatprep.subr.bf16.mxu0 0
    %1294 = vmatpush1.bf16.msra.mxu0 %v961
    %1295 = vmatprep.subr.bf16.mxu0 0
    %1296 = vmatpush1.bf16.msra.mxu0 %v962
    %1297 = vmatprep.subr.bf16.mxu0 0
    %1298 = vmatpush1.bf16.msra.mxu0 %v963
    %1299 = vmatprep.subr.bf16.mxu0 0
    %1300 = vmatpush1.bf16.msra.mxu0 %v964
    %1301 = vmatprep.subr.bf16.mxu0 0
    %1302 = vmatpush1.bf16.msra.mxu0 %v965
    %1303 = vmatprep.subr.bf16.mxu0 0
    %1304 = vmatpush1.bf16.msra.mxu0 %v966
    %1305 = vmatprep.subr.bf16.mxu0 0
    %1306 = vmatpush1.bf16.msra.mxu0 %v967
    %1307 = vmatprep.subr.bf16.mxu0 0
    %1308 = vmatpush1.bf16.msra.mxu0 %v968
    %1309 = vmatprep.subr.bf16.mxu0 0
    %1310 = vmatpush1.bf16.msra.mxu0 %v969
    %1311 = vmatprep.subr.bf16.mxu0 0
    %1312 = vmatpush1.bf16.msra.mxu0 %v970
    %1313 = vmatprep.subr.bf16.mxu0 0
    %1314 = vmatpush1.bf16.msra.mxu0 %v971
    %1315 = vmatprep.subr.bf16.mxu0 0
    %1316 = vmatpush1.bf16.msra.mxu0 %v972
    %1317 = vmatprep.mubr.bf16.mxu0 %v331
    %1318 = vmatmul.mubr.bf16.gmra.mrb[0].mxu0 %v329
    %v1319 = vpop.f32.mrb[0].mxu0
    %v1320 = vadd.f32 %v1280, %v1319
    %v1321 = vpop.f32.mrb[0].mxu0
    %v1322 = vpop.f32.mrb[0].mxu0
    %v1323 = vpop.f32.mrb[0].mxu0
    %1324 = vdwg.mxu0
    %1325 = vmatprep.subr.bf16.mxu0 0
    %1326 = vmatpush1.bf16.msra.mxu0 %v973
    %1327 = vmatprep.subr.bf16.mxu0 0
    %1328 = vmatpush1.bf16.msra.mxu0 %v974
    %1329 = vmatprep.subr.bf16.mxu0 0
    %1330 = vmatpush1.bf16.msra.mxu0 %v975
    %1331 = vmatprep.subr.bf16.mxu0 0
    %1332 = vmatpush1.bf16.msra.mxu0 %v976
    %1333 = vmatprep.subr.bf16.mxu0 0
    %1334 = vmatpush1.bf16.msra.mxu0 %v977
    %1335 = vmatprep.subr.bf16.mxu0 0
    %1336 = vmatpush1.bf16.msra.mxu0 %v978
    %1337 = vmatprep.subr.bf16.mxu0 0
    %1338 = vmatpush1.bf16.msra.mxu0 %v979
    %1339 = vmatprep.subr.bf16.mxu0 0
    %1340 = vmatpush1.bf16.msra.mxu0 %v980
    %1341 = vmatprep.subr.bf16.mxu0 0
    %1342 = vmatpush1.bf16.msra.mxu0 %v981
    %1343 = vmatprep.subr.bf16.mxu0 0
    %1344 = vmatpush1.bf16.msra.mxu0 %v982
    %1345 = vmatprep.subr.bf16.mxu0 0
    %1346 = vmatpush1.bf16.msra.mxu0 %v983
    %1347 = vmatprep.subr.bf16.mxu0 0
    %1348 = vmatpush1.bf16.msra.mxu0 %v984
    %1349 = vmatprep.subr.bf16.mxu0 0
    %1350 = vmatpush1.bf16.msra.mxu0 %v985
    %1351 = vmatprep.subr.bf16.mxu0 0
    %1352 = vmatpush1.bf16.msra.mxu0 %v986
    %1353 = vmatprep.subr.bf16.mxu0 0
    %1354 = vmatpush1.bf16.msra.mxu0 %v987
    %1355 = vmatprep.subr.bf16.mxu0 0
    %1356 = vmatpush1.bf16.msra.mxu0 %v988
    %1357 = vmatprep.mubr.bf16.mxu0 %v369
    %1358 = vmatmul.mubr.bf16.gmra.mrb[0].mxu0 %v355
    %v1359 = vpop.f32.mrb[0].mxu0
    %v1360 = vadd.f32 %v1320, %v1359
    %v1361 = vpop.f32.mrb[0].mxu0
    %v1362 = vpop.f32.mrb[0].mxu0
    %v1363 = vpop.f32.mrb[0].mxu0
    %1364 = vdwg.mxu0
    %1365 = vmatprep.subr.bf16.mxu0 0
    %1366 = vmatpush1.bf16.msra.mxu0 %v989
    %1367 = vmatprep.subr.bf16.mxu0 0
    %1368 = vmatpush1.bf16.msra.mxu0 %v990
    %1369 = vmatprep.subr.bf16.mxu0 0
    %1370 = vmatpush1.bf16.msra.mxu0 %v991
    %1371 = vmatprep.subr.bf16.mxu0 0
    %1372 = vmatpush1.bf16.msra.mxu0 %v992
    %1373 = vmatprep.subr.bf16.mxu0 0
    %1374 = vmatpush1.bf16.msra.mxu0 %v993
    %1375 = vmatprep.subr.bf16.mxu0 0
    %1376 = vmatpush1.bf16.msra.mxu0 %v994
    %1377 = vmatprep.subr.bf16.mxu0 0
    %1378 = vmatpush1.bf16.msra.mxu0 %v995
    %1379 = vmatprep.subr.bf16.mxu0 0
    %1380 = vmatpush1.bf16.msra.mxu0 %v996
    %1381 = vmatprep.subr.bf16.mxu0 0
    %1382 = vmatpush1.bf16.msra.mxu0 %v997
    %1383 = vmatprep.subr.bf16.mxu0 0
    %1384 = vmatpush1.bf16.msra.mxu0 %v998
    %1385 = vmatprep.subr.bf16.mxu0 0
    %1386 = vmatpush1.bf16.msra.mxu0 %v999
    %1387 = vmatprep.subr.bf16.mxu0 0
    %1388 = vmatpush1.bf16.msra.mxu0 %v1000
    %1389 = vmatprep.subr.bf16.mxu0 0
    %1390 = vmatpush1.bf16.msra.mxu0 %v1001
    %1391 = vmatprep.subr.bf16.mxu0 0
    %1392 = vmatpush1.bf16.msra.mxu0 %v1002
    %1393 = vmatprep.subr.bf16.mxu0 0
    %1394 = vmatpush1.bf16.msra.mxu0 %v1003
    %1395 = vmatprep.subr.bf16.mxu0 0
    %1396 = vmatpush1.bf16.msra.mxu0 %v1004
    %1397 = vmatprep.mubr.bf16.mxu0 %v379
    %1398 = vmatmul.mubr.bf16.gmra.mrb[0].mxu0 %v377
    %v1399 = vpop.f32.mrb[0].mxu0
    %v1400 = vadd.f32 %v1360, %v1399
    %v1401 = vpop.f32.mrb[0].mxu0
    %v1402 = vpop.f32.mrb[0].mxu0
    %v1403 = vpop.f32.mrb[0].mxu0
    %1404 = vdwg.mxu0
    %1405 = vmatprep.subr.bf16.mxu0 0
    %1406 = vmatpush1.bf16.msra.mxu0 %v1005
    %1407 = vmatprep.subr.bf16.mxu0 0
    %1408 = vmatpush1.bf16.msra.mxu0 %v1006
    %1409 = vmatprep.subr.bf16.mxu0 0
    %1410 = vmatpush1.bf16.msra.mxu0 %v1007
    %1411 = vmatprep.subr.bf16.mxu0 0
    %1412 = vmatpush1.bf16.msra.mxu0 %v1008
    %1413 = vmatprep.subr.bf16.mxu0 0
    %1414 = vmatpush1.bf16.msra.mxu0 %v1009
    %1415 = vmatprep.subr.bf16.mxu0 0
    %1416 = vmatpush1.bf16.msra.mxu0 %v1010
    %1417 = vmatprep.subr.bf16.mxu0 0
    %1418 = vmatpush1.bf16.msra.mxu0 %v1011
    %1419 = vmatprep.subr.bf16.mxu0 0
    %1420 = vmatpush1.bf16.msra.mxu0 %v1012
    %1421 = vmatprep.subr.bf16.mxu0 0
    %1422 = vmatpush1.bf16.msra.mxu0 %v1013
    %1423 = vmatprep.subr.bf16.mxu0 0
    %1424 = vmatpush1.bf16.msra.mxu0 %v1014
    %1425 = vmatprep.subr.bf16.mxu0 0
    %1426 = vmatpush1.bf16.msra.mxu0 %v1015
    %1427 = vmatprep.subr.bf16.mxu0 0
    %1428 = vmatpush1.bf16.msra.mxu0 %v1016
    %1429 = vmatprep.subr.bf16.mxu0 0
    %1430 = vmatpush1.bf16.msra.mxu0 %v1017
    %1431 = vmatprep.subr.bf16.mxu0 0
    %1432 = vmatpush1.bf16.msra.mxu0 %v1018
    %1433 = vmatprep.subr.bf16.mxu0 0
    %1434 = vmatpush1.bf16.msra.mxu0 %v1019
    %1435 = vmatprep.subr.bf16.mxu0 0
    %1436 = vmatpush1.bf16.msra.mxu0 %v1020
    %1437 = vmatprep.mubr.bf16.mxu0 %v376
    %1438 = vmatmul.mubr.bf16.gmra.mrb[0].mxu0 %v362
    %v1439 = vpop.f32.mrb[0].mxu0
    %v1440 = vadd.f32 %v1400, %v1439
    %v1441 = vpop.f32.mrb[0].mxu0
    %v1442 = vpop.f32.mrb[0].mxu0
    %v1443 = vpop.f32.mrb[0].mxu0
    %1444 = vdwg.mxu0
    %1445 = vmatprep.subr.bf16.mxu0 0
    %1446 = vmatpush1.bf16.msra.mxu0 %v1021
    %1447 = vmatprep.subr.bf16.mxu0 0
    %1448 = vmatpush1.bf16.msra.mxu0 %v1022
    %1449 = vmatprep.subr.bf16.mxu0 0
    %1450 = vmatpush1.bf16.msra.mxu0 %v1023
    %1451 = vmatprep.subr.bf16.mxu0 0
    %1452 = vmatpush1.bf16.msra.mxu0 %v1024
    %1453 = vmatprep.subr.bf16.mxu0 0
    %1454 = vmatpush1.bf16.msra.mxu0 %v1025
    %1455 = vmatprep.subr.bf16.mxu0 0
    %1456 = vmatpush1.bf16.msra.mxu0 %v1026
    %1457 = vmatprep.subr.bf16.mxu0 0
    %1458 = vmatpush1.bf16.msra.mxu0 %v1027
    %1459 = vmatprep.subr.bf16.mxu0 0
    %1460 = vmatpush1.bf16.msra.mxu0 %v1028
    %1461 = vmatprep.subr.bf16.mxu0 0
    %1462 = vmatpush1.bf16.msra.mxu0 %v1029
    %1463 = vmatprep.subr.bf16.mxu0 0
    %1464 = vmatpush1.bf16.msra.mxu0 %v1030
    %1465 = vmatprep.subr.bf16.mxu0 0
    %1466 = vmatpush1.bf16.msra.mxu0 %v1031
    %1467 = vmatprep.subr.bf16.mxu0 0
    %1468 = vmatpush1.bf16.msra.mxu0 %v1032
    %1469 = vmatprep.subr.bf16.mxu0 0
    %1470 = vmatpush1.bf16.msra.mxu0 %v1033
    %1471 = vmatprep.subr.bf16.mxu0 0
    %1472 = vmatpush1.bf16.msra.mxu0 %v1034
    %1473 = vmatprep.subr.bf16.mxu0 0
    %1474 = vmatpush1.bf16.msra.mxu0 %v1035
    %1475 = vmatprep.subr.bf16.mxu0 0
    %1476 = vmatpush1.bf16.msra.mxu0 %v1036
    %1477 = vmatprep.mubr.bf16.mxu0 %v380
    %1478 = vmatmul.mubr.bf16.gmra.mrb[0].mxu0 %v378
    %v1479 = vpop.f32.mrb[0].mxu0
    %v1480 = vadd.f32 %v1440, %v1479
    %v1481 = vpop.f32.mrb[0].mxu0
    %v1482 = vpop.f32.mrb[0].mxu0
    %v1483 = vpop.f32.mrb[0].mxu0
    %1484 = vdwg.mxu0
    %1485 = vst [vmem:[#allocation2] sm:$0x3] %v1480
    // Predicated region
    $region14: #{_lambda_.5} parent=1 // pred_check
      _
    $region15: #{_lambda_.5} parent=1 // pred_check_branch
      %1487 = sbr.rel (0) target = $region17
    $region16: #{_lambda_.5} parent=1 // pred_region
      %s1489 = ssub.s32 32, 32
      %1490 = vsyncadd [#allocation3], %s1489
      %s1492 = sshll.u32 [#allocation2], 4
      %s1493 = int_to_ptr.vmem [resolvable:$true] %s1492
      %1495 = dma.vmem_to_hbm [thread:$0]  %s1493, 32, %s3, [#allocation3]
    $region17: #{_lambda_.5} parent=1 // pred_fallthru
      _
    // Predicated region
    $region18: #{_lambda_.5} parent=1 // pred_check
      _
    $region19: #{_lambda_.5} parent=1 // pred_check_branch
      %1497 = sbr.rel (0) target = $region21
    $region20: #{_lambda_.5} parent=1 // pred_region
      %1498 = dma.done [#allocation3], 32
    $region21: #{_lambda_.5} parent=1 // pred_fallthru
      _
    %1499 = vsyncpa [#allocation3], 1

</llo_original>
